<compile_context>
chip_gen: v5e
topology: v5e:2x2
jax: 0.10.0
libtpu: 0.0.40
codegen_flags: <defaults>
</compile_context>

<pallas_src>
from functools import partial

import numpy as np
import jax
import jax.numpy as jnp
from jax.experimental import pallas as pl
from jax.experimental.pallas import tpu as pltpu

LN_EPS = 1e-5     # nn.LayerNorm default eps
ATTN_EPS = 1e-6   # LoFTR LinearAttention eps

_VMEM_LIMIT = None


def _vmem_limit():
    """Per-generation VMEM budget: ~75% of physical, capped at 100 MiB."""
    global _VMEM_LIMIT
    if _VMEM_LIMIT is None:
        try:
            cap = pltpu.get_tpu_info().vmem_capacity_bytes
        except Exception:
            cap = 64 * 1024 * 1024            # conservative (v7x-sized) fallback
        _VMEM_LIMIT = int(min((cap * 3) // 4, 100 * 1024 * 1024))
    return _VMEM_LIMIT


def _pick_tile(n, target):
    """Largest divisor of n that is <= target and a multiple of 8 (else n)."""
    if n <= target:
        return n
    for t in range(min(target, n), 0, -1):
        if n % t == 0 and t % 8 == 0:
            return t
    return n


def _elu1(x):
    # elu(x) + 1; exp(min(x,0)) keeps the unselected where-branch finite.
    return jnp.where(x > 0, x + 1.0, jnp.exp(jnp.minimum(x, 0.0)))


# ----------------------------------------------------------------------------
# Kernel 1: fused dual projection  y = x @ W[C,2C] split into two [N,T,C]
# bf16 halves.  Used for (q | q_variant3) and for (k | v).
# ----------------------------------------------------------------------------
def _dual_proj_kernel(x_ref, w_ref, a_ref, b_ref):
    C = a_ref.shape[-1]
    y = jnp.dot(x_ref[0], w_ref[...], preferred_element_type=jnp.float32)
    a_ref[0] = y[:, :C].astype(a_ref.dtype)
    b_ref[0] = y[:, C:].astype(b_ref.dtype)


def dual_proj(x, w2c, *, block_t=None):
    N, T, C = x.shape
    TT = _pick_tile(T, block_t if block_t is not None else 512)
    return pl.pallas_call(
        _dual_proj_kernel,
        out_shape=(jax.ShapeDtypeStruct((N, T, C), jnp.bfloat16),
                   jax.ShapeDtypeStruct((N, T, C), jnp.bfloat16)),
        grid=(N, T // TT),
        in_specs=[pl.BlockSpec((1, TT, C), lambda n, t: (n, t, 0)),
                  pl.BlockSpec((C, 2 * C), lambda n, t: (0, 0))],
        out_specs=(pl.BlockSpec((1, TT, C), lambda n, t: (n, t, 0)),
                   pl.BlockSpec((1, TT, C), lambda n, t: (n, t, 0))),
        compiler_params=pltpu.CompilerParams(
            dimension_semantics=("parallel", "parallel"),
            vmem_limit_bytes=_vmem_limit()),
    )(x, w2c)


# ----------------------------------------------------------------------------
# Kernel 2: hoisted S-contraction.  For one flattened (k, v) variant compute
#   KV   = elu1(k)^T v        [N, C, C]  (unmasked, f32)
#   Ksum = sum_s elu1(k)      [N, 1, C]  (f32)
# Reduction over S tiles accumulates directly into the resident output block.
# ----------------------------------------------------------------------------
def _kv_stats_kernel(k_ref, v_ref, kv_ref, ks_ref):
    @pl.when(pl.program_id(1) == 0)
    def _():
        kv_ref[0] = jnp.zeros(kv_ref.shape[1:], kv_ref.dtype)
        ks_ref[0] = jnp.zeros(ks_ref.shape[1:], ks_ref.dtype)

    kf = _elu1(k_ref[0].astype(jnp.float32))                       # [TS, C]
    kv_ref[0] += jax.lax.dot_general(
        kf.astype(jnp.bfloat16), v_ref[0], (((0,), (0,)), ((), ())),
        preferred_element_type=jnp.float32)                        # [C, C]
    ks_ref[0] += jnp.sum(kf, axis=0, keepdims=True)                # [1, C]


def kv_stats(k, v, *, block_s=None):
    N, S, C = k.shape
    TS = _pick_tile(S, block_s if block_s is not None else 512)
    return pl.pallas_call(
        _kv_stats_kernel,
        out_shape=(jax.ShapeDtypeStruct((N, C, C), jnp.float32),
                   jax.ShapeDtypeStruct((N, 1, C), jnp.float32)),
        grid=(N, S // TS),
        in_specs=[pl.BlockSpec((1, TS, C), lambda n, s: (n, s, 0)),
                  pl.BlockSpec((1, TS, C), lambda n, s: (n, s, 0))],
        out_specs=(pl.BlockSpec((1, C, C), lambda n, s: (n, 0, 0)),
                   pl.BlockSpec((1, 1, C), lambda n, s: (n, 0, 0))),
        compiler_params=pltpu.CompilerParams(
            dimension_semantics=("parallel", "arbitrary"),
            vmem_limit_bytes=_vmem_limit()),
    )(k, v)


# ----------------------------------------------------------------------------
# Kernel 3: one "stage" = two attention blocks (a variant pair) + merge + LN1
# + MLP + LN2, with the residual combine fused into the epilogue:
#     out = x + 0.5 * (block_a + block_b)
# Grid = (batch, L-tile); both axes "parallel" (pipelining + megacore).
# ----------------------------------------------------------------------------
def _stage_kernel(x_ref, qa_ref, qb_ref, kva_ref, kvb_ref, ksa_ref, ksb_ref,
                  maskf_ref, wm_ref, g1_ref, b1_ref, w1a_ref, w1b_ref,
                  w2_ref, g2_ref, b2_ref, o_ref):
    xb = x_ref[0]                           # [TL, C] bf16 (residual / MLP cat input)
    x32 = xb.astype(jnp.float32)
    maskf = maskf_ref[...]                  # [C, C] f32 head-block 0/1 mask

    def ln(y, g_ref, b_ref):
        mu = jnp.mean(y, axis=-1, keepdims=True)
        var = jnp.mean((y - mu) ** 2, axis=-1, keepdims=True)
        return (y - mu) * jax.lax.rsqrt(var + LN_EPS) * g_ref[...] + b_ref[...]

    def block(q_raw, kv_m, ksum):
        # linear attention against the hoisted per-batch stats
        Qf = _elu1(q_raw.astype(jnp.float32))                          # [TL, C]
        num = jnp.dot(Qf.astype(jnp.bfloat16), kv_m,
                      preferred_element_type=jnp.float32)              # [TL, C]
        # denominator kept fully f32 (per-head segment sum via mask matmul)
        zden = jnp.dot(Qf * ksum, maskf,
                       preferred_element_type=jnp.float32)             # [TL, C]
        msg = num / (zden + ATTN_EPS)
        merged = jnp.dot(msg.astype(jnp.bfloat16), wm_ref[...],
                         preferred_element_type=jnp.float32)           # [TL, C]
        n1 = ln(merged, g1_ref, b1_ref)
        # MLP on concat([x, n1], -1) as split matmuls + ReLU
        h = (jnp.dot(xb, w1a_ref[...], preferred_element_type=jnp.float32)
             + jnp.dot(n1.astype(jnp.bfloat16), w1b_ref[...],
                       preferred_element_type=jnp.float32))
        h = jnp.maximum(h, 0.0)
        m = jnp.dot(h.astype(jnp.bfloat16), w2_ref[...],
                    preferred_element_type=jnp.float32)
        return ln(m, g2_ref, b2_ref)

    blk_a = block(qa_ref[0], kva_ref[0], ksa_ref[0])
    blk_b = block(qb_ref[0], kvb_ref[0], ksb_ref[0])
    o_ref[0] = (x32 + 0.5 * (blk_a + blk_b)).astype(o_ref.dtype)


def encoder_stage(x, q_a, q_b, kv_a, kv_b, ks_a, ks_b, p, *,
                  block_l=None, out_dtype=jnp.bfloat16):
    N, L, C = x.shape
    if block_l is None:
        block_l = 1024 if _vmem_limit() >= 90 * 1024 * 1024 else 512
    TL = _pick_tile(L, block_l)
    n_l = L // TL

    tile3 = lambda: pl.BlockSpec((1, TL, C), lambda n, l: (n, l, 0))
    per_n = lambda shape: pl.BlockSpec(shape, lambda n, l: (n, 0, 0))
    const = lambda shape: pl.BlockSpec(shape, lambda n, l: (0, 0))

    return pl.pallas_call(
        _stage_kernel,
        out_shape=jax.ShapeDtypeStruct((N, L, C), out_dtype),
        grid=(N, n_l),
        in_specs=[
            tile3(),                                   # x (bf16)
            tile3(), tile3(),                          # q variant a / b (bf16)
            per_n((1, C, C)), per_n((1, C, C)),        # masked KV a / b (bf16)
            per_n((1, 1, C)), per_n((1, 1, C)),        # Ksum a / b (f32)
            const((C, C)),                             # head-block mask (f32)
            const((C, C)),                             # merge W^T (bf16)
            const((1, C)), const((1, C)),              # gamma1, beta1 (f32)
            const((C, 2 * C)), const((C, 2 * C)),      # mlp W1^T (x | msg) (bf16)
            const((2 * C, C)),                         # mlp W2^T (bf16)
            const((1, C)), const((1, C)),              # gamma2, beta2 (f32)
        ],
        out_specs=tile3(),
        compiler_params=pltpu.CompilerParams(
            dimension_semantics=("parallel", "parallel"),
            vmem_limit_bytes=_vmem_limit()),
    )(x, q_a, q_b, kv_a, kv_b, ks_a, ks_b,
      p["head_mask"], p["wm_t"], p["g1"], p["b1"],
      p["w1a_t"], p["w1b_t"], p["w2_t"], p["g2"], p["b2"])


# ----------------------------------------------------------------------------
# Full forward (2 proj calls + 3 stats calls + 2 stage calls; plain-JAX glue
# only for the genuine token<->head reshuffles of variants 1 and 2).
# ----------------------------------------------------------------------------
def loftr_encoder_layer(x, source, kparams, nhead, *, block_l=None, block_s=None):
    N, L, C = x.shape
    xb = x.astype(jnp.bfloat16)
    sb = source.astype(jnp.bfloat16)

    # projections: q fused with its channel-permuted "variant 3", k fused with v
    q0, q3 = dual_proj(xb, kparams["wq_q3_t"], block_t=block_l)
    k0, v0 = dual_proj(sb, kparams["wkv_t"], block_t=block_s)

    # variants 1 / 2 genuinely remix tokens and heads -> plain-JAX layout glue
    def remap(t, order):
        n, T, c = t.shape
        return jnp.transpose(t.reshape(n, T, nhead, c // nhead), order).reshape(n, T, c)

    q1, q2 = remap(q0, (0, 2, 1, 3)), remap(q0, (0, 3, 2, 1))
    k1, k2 = remap(k0, (0, 2, 1, 3)), remap(k0, (0, 3, 2, 1))
    v1, v2 = remap(v0, (0, 2, 1, 3)), remap(v0, (0, 3, 2, 1))

    # per-(variant, batch) S-contraction, hoisted out of the L loop
    KV0, Ks0 = kv_stats(k0, v0, block_s=block_s)
    KV1, Ks1 = kv_stats(k1, v1, block_s=block_s)
    KV2, Ks2 = kv_stats(k2, v2, block_s=block_s)
    perm = kparams["perm3"]
    KV3 = KV0[:, perm, :][:, :, perm]       # variant 3 = pure channel permutation
    Ks3 = Ks0[:, :, perm]

    maskf = kparams["head_mask"]
    mk = lambda kv: (kv * maskf).astype(jnp.bfloat16)   # head-block-diag KV, bf16

    # stage A: variants 0 + 3, fused x_mid residual combine (bf16 boundary)
    x_mid = encoder_stage(xb, q0, q3, mk(KV0), mk(KV3), Ks0, Ks3, kparams,
                          block_l=block_l, out_dtype=jnp.bfloat16)
    # stage B: variants 1 + 2, fused final residual combine
    return encoder_stage(x_mid, q1, q2, mk(KV1), mk(KV2), Ks1, Ks2, kparams,
                         block_l=block_l, out_dtype=jnp.float32)


# ----------------------------------------------------------------------------
# Pure-JAX f32 reference (mirrors the PyTorch forward) for correctness check
# ----------------------------------------------------------------------------
def _layernorm(x, g, b):
    mu = jnp.mean(x, axis=-1, keepdims=True)
    var = jnp.mean((x - mu) ** 2, axis=-1, keepdims=True)
    return (x - mu) / jnp.sqrt(var + LN_EPS) * g + b


def _linear_attention_ref(q, k, v):
    Q = jnp.where(q > 0, q + 1.0, jnp.exp(q))
    K = jnp.where(k > 0, k + 1.0, jnp.exp(k))
    v_len = v.shape[1]
    values = v / v_len
    KV = jnp.einsum("nshd,nshv->nhdv", K, values)
    Z = 1.0 / (jnp.einsum("nlhd,nhd->nlh", Q, K.sum(axis=1)) + ATTN_EPS)
    return jnp.einsum("nlhd,nhdv,nlh->nlhv", Q, KV, Z) * v_len


def _block_ref(x_cat, q4, k4, v4, params):
    N, L = q4.shape[0], q4.shape[1]
    C = x_cat.shape[-1]
    msg = _linear_attention_ref(q4, k4, v4).reshape(N, L, C)
    msg = msg @ params["wm_t"]
    msg = _layernorm(msg, params["g1"][0], params["b1"][0])
    cat = jnp.concatenate([x_cat, msg], axis=-1)
    w1_t = jnp.concatenate([params["w1a_t"], params["w1b_t"]], axis=0)
    h = jnp.maximum(cat @ w1_t, 0.0)
    m = h @ params["w2_t"]
    return _layernorm(m, params["g2"][0], params["b2"][0])


def loftr_ref(x, source, params, nhead):
    N, L, C = x.shape
    S = source.shape[1]
    D = C // nhead
    q = (x @ params["wq_t"]).reshape(N, L, nhead, D)
    k = (source @ params["wk_t"]).reshape(N, S, nhead, D)
    v = (source @ params["wv_t"]).reshape(N, S, nhead, D)

    def p3(t):
        n, t_, h, d = t.shape
        return jnp.transpose(t, (0, 1, 3, 2)).reshape(n, t_, h, d)

    def p1(t):
        n, t_, h, d = t.shape
        return jnp.transpose(t, (0, 2, 1, 3)).reshape(n, t_, h, d)

    def p2(t):
        n, t_, h, d = t.shape
        return jnp.transpose(t, (0, 3, 2, 1)).reshape(n, t_, h, d)

    m = _block_ref(x, q, k, v, params)
    m3 = _block_ref(x, p3(q), p3(k), p3(v), params)
    x_mid = x + 0.5 * (m + m3)
    m1 = _block_ref(x_mid, p1(q), p1(k), p1(v), params)
    m2 = _block_ref(x_mid, p2(q), p2(k), p2(v), params)
    return x_mid + 0.5 * (m1 + m2)


# ----------------------------------------------------------------------------
# Parameters
# ----------------------------------------------------------------------------
def init_params(key, d_model):
    C = d_model
    ks = jax.random.split(key, 9)

    def lin(k, fan_in, fan_out):
        return jax.random.normal(k, (fan_in, fan_out), jnp.float32) / np.sqrt(fan_in)

    return dict(
        wq_t=lin(ks[0], C, C),
        wk_t=lin(ks[1], C, C),
        wv_t=lin(ks[2], C, C),
        wm_t=lin(ks[3], C, C),
        w1a_t=lin(ks[4], C, 2 * C),      # first half of mlp[0].weight.T  (x part)
        w1b_t=lin(ks[5], C, 2 * C),      # second half of mlp[0].weight.T (msg part)
        w2_t=lin(ks[6], 2 * C, C),       # mlp[2].weight.T
        g1=1.0 + 0.1 * jax.random.normal(ks[7], (1, C), jnp.float32),
        b1=0.1 * jax.random.normal(ks[8], (1, C), jnp.float32),
        g2=jnp.ones((1, C), jnp.float32),
        b2=jnp.zeros((1, C), jnp.float32),
    )


def prepare_params(params, d_model, nhead):
    """Kernel-ready params: bf16 matmul weights, fused q|q3 and k|v weights,
    f32 head-block mask and the variant-3 channel permutation."""
    C = d_model
    D = C // nhead
    ids = np.arange(C) // D
    head_mask = jnp.asarray((ids[:, None] == ids[None, :]).astype(np.float32))
    c3 = np.arange(C)
    perm3 = jnp.asarray((c3 % nhead) * D + c3 // nhead, dtype=jnp.int32)
    bf = lambda a: a.astype(jnp.bfloat16)
    wq3_t = params["wq_t"][:, perm3]
    return dict(
        wq_q3_t=bf(jnp.concatenate([params["wq_t"], wq3_t], axis=1)),
        wkv_t=bf(jnp.concatenate([params["wk_t"], params["wv_t"]], axis=1)),
        wm_t=bf(params["wm_t"]),
        w1a_t=bf(params["w1a_t"]),
        w1b_t=bf(params["w1b_t"]),
        w2_t=bf(params["w2_t"]),
        g1=params["g1"].astype(jnp.float32),
        b1=params["b1"].astype(jnp.float32),
        g2=params["g2"].astype(jnp.float32),
        b2=params["b2"].astype(jnp.float32),
        head_mask=head_mask,
        perm3=perm3,
    )


if __name__ == "__main__":
    N, L, S, C, H = 2, 8, 16, 32, 4   # batch, query len, kv len, d_model, nhead
    key = jax.random.PRNGKey(0)
    kx, ksrc, kp = jax.random.split(key, 3)
    x = jax.random.normal(kx, (N, L, C), jnp.float32)
    source = jax.random.normal(ksrc, (N, S, C), jnp.float32)
    params = init_params(kp, C)
    kparams = prepare_params(params, C, H)

    fwd = jax.jit(partial(loftr_encoder_layer, nhead=H))
    out = fwd(x, source, kparams)
    out = jax.block_until_ready(out)
    assert out.shape == (N, L, C)

    ref = loftr_ref(x, source, params, H)
    # bf16 matmul operands / bf16 stage boundary vs. f32 reference
    np.testing.assert_allclose(np.asarray(out), np.asarray(ref),
                               rtol=5e-2, atol=5e-2)

    print("KERNEL_OK")
</pallas_src>

<mosaic_0001>
module attributes {stable_mosaic.version = 11 : i64} {
  func.func @_dual_proj_kernel(%arg0: i32, %arg1: i32, %arg2: memref<1x16x32xbf16, #tpu.memory_space<vmem>>, %arg3: memref<32x64xbf16, #tpu.memory_space<vmem>>, %arg4: memref<1x16x32xbf16, #tpu.memory_space<vmem>>, %arg5: memref<1x16x32xbf16, #tpu.memory_space<vmem>>) attributes {dimension_semantics = [#tpu.dimension_semantics<parallel>, #tpu.dimension_semantics<parallel>], iteration_bounds = array<i64: 2, 1>, scalar_prefetch = 0 : i64, scratch_operands = 0 : i64, tpu.core_type = #tpu.core_type<tc>, window_params = [{transform_indices = @transform_0, window_bounds = array<i64: 1, 16, 32>}, {pipeline_mode = #tpu.pipeline_mode<synchronous>, transform_indices = @transform_1, window_bounds = array<i64: 32, 64>}, {transform_indices = @transform_2, window_bounds = array<i64: 1, 16, 32>}, {transform_indices = @transform_3, window_bounds = array<i64: 1, 16, 32>}]} {
    %c0 = arith.constant 0 : index
    %c0_0 = arith.constant 0 : index
    %c0_1 = arith.constant 0 : index
    %0 = vector.load %arg2[%c0, %c0_0, %c0_1] : memref<1x16x32xbf16, #tpu.memory_space<vmem>>, vector<1x16x32xbf16>
    %1 = vector.shape_cast %0 : vector<1x16x32xbf16> to vector<16x32xbf16>
    %c0_2 = arith.constant 0 : index
    %c0_3 = arith.constant 0 : index
    %2 = vector.load %arg3[%c0_2, %c0_3] : memref<32x64xbf16, #tpu.memory_space<vmem>>, vector<32x64xbf16>
    %cst = arith.constant dense<0.000000e+00> : vector<16x64xf32>
    %3 = tpu.matmul %1, %2, %cst {dimension_numbers = #tpu.dot_dimension_numbers<[1], [0], [0], [1], [0, 0, 1, 1], [], []>} : vector<16x32xbf16>, vector<32x64xbf16>, vector<16x64xf32> -> vector<16x64xf32>
    %4 = vector.extract_strided_slice %3 {offsets = [0, 0], sizes = [16, 32], strides = [1, 1]} : vector<16x64xf32> to vector<16x32xf32>
    %5 = arith.truncf %4 : vector<16x32xf32> to vector<16x32xbf16>
    %c0_4 = arith.constant 0 : index
    %c0_5 = arith.constant 0 : index
    %c0_6 = arith.constant 0 : index
    %6 = vector.load %arg4[%c0_4, %c0_5, %c0_6] : memref<1x16x32xbf16, #tpu.memory_space<vmem>>, vector<1x16x32xbf16>
    %7 = vector.shape_cast %6 : vector<1x16x32xbf16> to vector<16x32xbf16>
    %8 = vector.shape_cast %5 : vector<16x32xbf16> to vector<1x16x32xbf16>
    tpu.vector_store %arg4[%c0_4, %c0_5, %c0_6], %8 {strides = array<i32>} : memref<1x16x32xbf16, #tpu.memory_space<vmem>>, vector<1x16x32xbf16>,
    %9 = vector.extract_strided_slice %3 {offsets = [0, 32], sizes = [16, 32], strides = [1, 1]} : vector<16x64xf32> to vector<16x32xf32>
    %10 = arith.truncf %9 : vector<16x32xf32> to vector<16x32xbf16>
    %c0_7 = arith.constant 0 : index
    %c0_8 = arith.constant 0 : index
    %c0_9 = arith.constant 0 : index
    %11 = vector.load %arg5[%c0_7, %c0_8, %c0_9] : memref<1x16x32xbf16, #tpu.memory_space<vmem>>, vector<1x16x32xbf16>
    %12 = vector.shape_cast %11 : vector<1x16x32xbf16> to vector<16x32xbf16>
    %13 = vector.shape_cast %10 : vector<16x32xbf16> to vector<1x16x32xbf16>
    tpu.vector_store %arg5[%c0_7, %c0_8, %c0_9], %13 {strides = array<i32>} : memref<1x16x32xbf16, #tpu.memory_space<vmem>>, vector<1x16x32xbf16>,
    return
  }
  func.func @transform_0(%arg0: i32, %arg1: i32) -> (i32, i32, i32) {
    %c0_i32 = arith.constant 0 : i32
    %c0_i32_0 = arith.constant 0 : i32
    return %arg0, %arg1, %c0_i32 : i32, i32, i32
  }
  func.func @transform_1(%arg0: i32, %arg1: i32) -> (i32, i32) {
    %c0_i32 = arith.constant 0 : i32
    %c0_i32_0 = arith.constant 0 : i32
    %c0_i32_1 = arith.constant 0 : i32
    return %c0_i32, %c0_i32_0 : i32, i32
  }
  func.func @transform_2(%arg0: i32, %arg1: i32) -> (i32, i32, i32) {
    %c0_i32 = arith.constant 0 : i32
    %c0_i32_0 = arith.constant 0 : i32
    return %arg0, %arg1, %c0_i32 : i32, i32, i32
  }
  func.func @transform_3(%arg0: i32, %arg1: i32) -> (i32, i32, i32) {
    %c0_i32 = arith.constant 0 : i32
    %c0_i32_0 = arith.constant 0 : i32
    return %arg0, %arg1, %c0_i32 : i32, i32, i32
  }
}

module attributes {stable_mosaic.version = 11 : i64} {
  func.func @_kv_stats_kernel(%arg0: i32, %arg1: i32, %arg2: memref<1x16x32xbf16, #tpu.memory_space<vmem>>, %arg3: memref<1x16x32xbf16, #tpu.memory_space<vmem>>, %arg4: memref<1x32x32xf32, #tpu.memory_space<vmem>>, %arg5: memref<1x1x32xf32, #tpu.memory_space<vmem>>) attributes {dimension_semantics = [#tpu.dimension_semantics<parallel>, #tpu.dimension_semantics<arbitrary>], iteration_bounds = array<i64: 2, 1>, scalar_prefetch = 0 : i64, scratch_operands = 0 : i64, tpu.core_type = #tpu.core_type<tc>, window_params = [{transform_indices = @transform_0, window_bounds = array<i64: 1, 16, 32>}, {transform_indices = @transform_1, window_bounds = array<i64: 1, 16, 32>}, {transform_indices = @transform_2, window_bounds = array<i64: 1, 32, 32>}, {transform_indices = @transform_3, window_bounds = array<i64: 1, 1, 32>}]} {
    %c0_i32 = arith.constant 0 : i32
    %0 = arith.cmpi eq, %arg1, %c0_i32 : i32
    %1 = arith.extui %0 : i1 to i32
    %c0_i32_0 = arith.constant 0 : i32
    %2 = arith.cmpi ne, %1, %c0_i32_0 : i32
    scf.if %2 {
      %cst_22 = arith.constant 0.000000e+00 : f32
      %32 = vector.broadcast %cst_22 : f32 to vector<32x32xf32>
      %c0_23 = arith.constant 0 : index
      %c0_24 = arith.constant 0 : index
      %c0_25 = arith.constant 0 : index
      %33 = vector.load %arg4[%c0_23, %c0_24, %c0_25] : memref<1x32x32xf32, #tpu.memory_space<vmem>>, vector<1x32x32xf32>
      %34 = vector.shape_cast %33 : vector<1x32x32xf32> to vector<32x32xf32>
      %35 = vector.shape_cast %32 : vector<32x32xf32> to vector<1x32x32xf32>
      tpu.vector_store %arg4[%c0_23, %c0_24, %c0_25], %35 {strides = array<i32>} : memref<1x32x32xf32, #tpu.memory_space<vmem>>, vector<1x32x32xf32>,
      %cst_26 = arith.constant 0.000000e+00 : f32
      %36 = vector.broadcast %cst_26 : f32 to vector<1x32xf32>
      %c0_27 = arith.constant 0 : index
      %c0_28 = arith.constant 0 : index
      %c0_29 = arith.constant 0 : index
      %37 = vector.load %arg5[%c0_27, %c0_28, %c0_29] : memref<1x1x32xf32, #tpu.memory_space<vmem>>, vector<1x1x32xf32>
      %38 = vector.shape_cast %37 : vector<1x1x32xf32> to vector<1x32xf32>
      %39 = vector.shape_cast %36 : vector<1x32xf32> to vector<1x1x32xf32>
      tpu.vector_store %arg5[%c0_27, %c0_28, %c0_29], %39 {strides = array<i32>} : memref<1x1x32xf32, #tpu.memory_space<vmem>>, vector<1x1x32xf32>,
    } else {
    }
    %c0 = arith.constant 0 : index
    %c0_1 = arith.constant 0 : index
    %c0_2 = arith.constant 0 : index
    %3 = vector.load %arg2[%c0, %c0_1, %c0_2] : memref<1x16x32xbf16, #tpu.memory_space<vmem>>, vector<1x16x32xbf16>
    %4 = vector.shape_cast %3 : vector<1x16x32xbf16> to vector<16x32xbf16>
    %5 = arith.extf %4 : vector<16x32xbf16> to vector<16x32xf32>
    %cst = arith.constant 0.000000e+00 : f32
    %6 = vector.broadcast %cst : f32 to vector<16x32xf32>
    %7 = arith.cmpf ogt, %5, %6 : vector<16x32xf32>
    %cst_3 = arith.constant 1.000000e+00 : f32
    %8 = vector.broadcast %cst_3 : f32 to vector<16x32xf32>
    %9 = arith.addf %5, %8 : vector<16x32xf32>
    %cst_4 = arith.constant 0.000000e+00 : f32
    %10 = vector.broadcast %cst_4 : f32 to vector<16x32xf32>
    %11 = arith.minimumf %5, %10 : vector<16x32xf32>
    %12 = math.exp %11 : vector<16x32xf32>
    %13 = arith.select %7, %9, %12 : vector<16x32xi1>, vector<16x32xf32>
    %c0_5 = arith.constant 0 : index
    %c0_6 = arith.constant 0 : index
    %c0_7 = arith.constant 0 : index
    %14 = vector.load %arg4[%c0_5, %c0_6, %c0_7] : memref<1x32x32xf32, #tpu.memory_space<vmem>>, vector<1x32x32xf32>
    %15 = vector.shape_cast %14 : vector<1x32x32xf32> to vector<32x32xf32>
    %16 = arith.truncf %13 : vector<16x32xf32> to vector<16x32xbf16>
    %c0_8 = arith.constant 0 : index
    %c0_9 = arith.constant 0 : index
    %c0_10 = arith.constant 0 : index
    %17 = vector.load %arg3[%c0_8, %c0_9, %c0_10] : memref<1x16x32xbf16, #tpu.memory_space<vmem>>, vector<1x16x32xbf16>
    %18 = vector.shape_cast %17 : vector<1x16x32xbf16> to vector<16x32xbf16>
    %cst_11 = arith.constant dense<0.000000e+00> : vector<32x32xf32>
    %19 = tpu.matmul %16, %18, %cst_11 {dimension_numbers = #tpu.dot_dimension_numbers<[0], [0], [1], [1], [0, 1, 1, 1], [], []>} : vector<16x32xbf16>, vector<16x32xbf16>, vector<32x32xf32> -> vector<32x32xf32>
    %20 = arith.addf %15, %19 : vector<32x32xf32>
    %c0_12 = arith.constant 0 : index
    %c0_13 = arith.constant 0 : index
    %c0_14 = arith.constant 0 : index
    %21 = vector.load %arg4[%c0_12, %c0_13, %c0_14] : memref<1x32x32xf32, #tpu.memory_space<vmem>>, vector<1x32x32xf32>
    %22 = vector.shape_cast %21 : vector<1x32x32xf32> to vector<32x32xf32>
    %23 = vector.shape_cast %20 : vector<32x32xf32> to vector<1x32x32xf32>
    tpu.vector_store %arg4[%c0_12, %c0_13, %c0_14], %23 {strides = array<i32>} : memref<1x32x32xf32, #tpu.memory_space<vmem>>, vector<1x32x32xf32>,
    %c0_15 = arith.constant 0 : index
    %c0_16 = arith.constant 0 : index
    %c0_17 = arith.constant 0 : index
    %24 = vector.load %arg5[%c0_15, %c0_16, %c0_17] : memref<1x1x32xf32, #tpu.memory_space<vmem>>, vector<1x1x32xf32>
    %25 = vector.shape_cast %24 : vector<1x1x32xf32> to vector<1x32xf32>
    %cst_18 = arith.constant dense<0.000000e+00> : vector<32xf32>
    %26 = vector.multi_reduction <add>, %13, %cst_18 [0] : vector<16x32xf32> to vector<32xf32>
    %27 = vector.shape_cast %26 : vector<32xf32> to vector<1x32xf32>
    %28 = arith.addf %25, %27 : vector<1x32xf32>
    %c0_19 = arith.constant 0 : index
    %c0_20 = arith.constant 0 : index
    %c0_21 = arith.constant 0 : index
    %29 = vector.load %arg5[%c0_19, %c0_20, %c0_21] : memref<1x1x32xf32, #tpu.memory_space<vmem>>, vector<1x1x32xf32>
    %30 = vector.shape_cast %29 : vector<1x1x32xf32> to vector<1x32xf32>
    %31 = vector.shape_cast %28 : vector<1x32xf32> to vector<1x1x32xf32>
    tpu.vector_store %arg5[%c0_19, %c0_20, %c0_21], %31 {strides = array<i32>} : memref<1x1x32xf32, #tpu.memory_space<vmem>>, vector<1x1x32xf32>,
    return
  }
  func.func @transform_0(%arg0: i32, %arg1: i32) -> (i32, i32, i32) {
    %c0_i32 = arith.constant 0 : i32
    %c0_i32_0 = arith.constant 0 : i32
    return %arg0, %arg1, %c0_i32 : i32, i32, i32
  }
  func.func @transform_1(%arg0: i32, %arg1: i32) -> (i32, i32, i32) {
    %c0_i32 = arith.constant 0 : i32
    %c0_i32_0 = arith.constant 0 : i32
    return %arg0, %arg1, %c0_i32 : i32, i32, i32
  }
  func.func @transform_2(%arg0: i32, %arg1: i32) -> (i32, i32, i32) {
    %c0_i32 = arith.constant 0 : i32
    %c0_i32_0 = arith.constant 0 : i32
    %c0_i32_1 = arith.constant 0 : i32
    return %arg0, %c0_i32, %c0_i32_0 : i32, i32, i32
  }
  func.func @transform_3(%arg0: i32, %arg1: i32) -> (i32, i32, i32) {
    %c0_i32 = arith.constant 0 : i32
    %c0_i32_0 = arith.constant 0 : i32
    %c0_i32_1 = arith.constant 0 : i32
    return %arg0, %c0_i32, %c0_i32_0 : i32, i32, i32
  }
}

module attributes {stable_mosaic.version = 11 : i64} {
  func.func @_stage_kernel(%arg0: i32, %arg1: i32, %arg2: memref<1x8x32xbf16, #tpu.memory_space<vmem>>, %arg3: memref<1x8x32xbf16, #tpu.memory_space<vmem>>, %arg4: memref<1x8x32xbf16, #tpu.memory_space<vmem>>, %arg5: memref<1x32x32xbf16, #tpu.memory_space<vmem>>, %arg6: memref<1x32x32xbf16, #tpu.memory_space<vmem>>, %arg7: memref<1x1x32xf32, #tpu.memory_space<vmem>>, %arg8: memref<1x1x32xf32, #tpu.memory_space<vmem>>, %arg9: memref<32x32xf32, #tpu.memory_space<vmem>>, %arg10: memref<32x32xbf16, #tpu.memory_space<vmem>>, %arg11: memref<1x32xf32, #tpu.memory_space<vmem>>, %arg12: memref<1x32xf32, #tpu.memory_space<vmem>>, %arg13: memref<32x64xbf16, #tpu.memory_space<vmem>>, %arg14: memref<32x64xbf16, #tpu.memory_space<vmem>>, %arg15: memref<64x32xbf16, #tpu.memory_space<vmem>>, %arg16: memref<1x32xf32, #tpu.memory_space<vmem>>, %arg17: memref<1x32xf32, #tpu.memory_space<vmem>>, %arg18: memref<1x8x32xbf16, #tpu.memory_space<vmem>>) attributes {dimension_semantics = [#tpu.dimension_semantics<parallel>, #tpu.dimension_semantics<parallel>], iteration_bounds = array<i64: 2, 1>, scalar_prefetch = 0 : i64, scratch_operands = 0 : i64, tpu.core_type = #tpu.core_type<tc>, window_params = [{transform_indices = @transform_0, window_bounds = array<i64: 1, 8, 32>}, {transform_indices = @transform_1, window_bounds = array<i64: 1, 8, 32>}, {transform_indices = @transform_2, window_bounds = array<i64: 1, 8, 32>}, {transform_indices = @transform_3, window_bounds = array<i64: 1, 32, 32>}, {transform_indices = @transform_4, window_bounds = array<i64: 1, 32, 32>}, {transform_indices = @transform_5, window_bounds = array<i64: 1, 1, 32>}, {transform_indices = @transform_6, window_bounds = array<i64: 1, 1, 32>}, {pipeline_mode = #tpu.pipeline_mode<synchronous>, transform_indices = @transform_7, window_bounds = array<i64: 32, 32>}, {pipeline_mode = #tpu.pipeline_mode<synchronous>, transform_indices = @transform_8, window_bounds = array<i64: 32, 32>}, {pipeline_mode = #tpu.pipeline_mode<synchronous>, transform_indices = @transform_9, window_bounds = array<i64: 1, 32>}, {pipeline_mode = #tpu.pipeline_mode<synchronous>, transform_indices = @transform_10, window_bounds = array<i64: 1, 32>}, {pipeline_mode = #tpu.pipeline_mode<synchronous>, transform_indices = @transform_11, window_bounds = array<i64: 32, 64>}, {pipeline_mode = #tpu.pipeline_mode<synchronous>, transform_indices = @transform_12, window_bounds = array<i64: 32, 64>}, {pipeline_mode = #tpu.pipeline_mode<synchronous>, transform_indices = @transform_13, window_bounds = array<i64: 64, 32>}, {pipeline_mode = #tpu.pipeline_mode<synchronous>, transform_indices = @transform_14, window_bounds = array<i64: 1, 32>}, {pipeline_mode = #tpu.pipeline_mode<synchronous>, transform_indices = @transform_15, window_bounds = array<i64: 1, 32>}, {transform_indices = @transform_16, window_bounds = array<i64: 1, 8, 32>}]} {
    %c0 = arith.constant 0 : index
    %c0_0 = arith.constant 0 : index
    %c0_1 = arith.constant 0 : index
    %0 = vector.load %arg2[%c0, %c0_0, %c0_1] : memref<1x8x32xbf16, #tpu.memory_space<vmem>>, vector<1x8x32xbf16>
    %1 = vector.shape_cast %0 : vector<1x8x32xbf16> to vector<8x32xbf16>
    %2 = arith.extf %1 : vector<8x32xbf16> to vector<8x32xf32>
    %c0_2 = arith.constant 0 : index
    %c0_3 = arith.constant 0 : index
    %3 = vector.load %arg9[%c0_2, %c0_3] : memref<32x32xf32, #tpu.memory_space<vmem>>, vector<32x32xf32>
    %c0_4 = arith.constant 0 : index
    %c0_5 = arith.constant 0 : index
    %c0_6 = arith.constant 0 : index
    %4 = vector.load %arg3[%c0_4, %c0_5, %c0_6] : memref<1x8x32xbf16, #tpu.memory_space<vmem>>, vector<1x8x32xbf16>
    %5 = vector.shape_cast %4 : vector<1x8x32xbf16> to vector<8x32xbf16>
    %c0_7 = arith.constant 0 : index
    %c0_8 = arith.constant 0 : index
    %c0_9 = arith.constant 0 : index
    %6 = vector.load %arg5[%c0_7, %c0_8, %c0_9] : memref<1x32x32xbf16, #tpu.memory_space<vmem>>, vector<1x32x32xbf16>
    %7 = vector.shape_cast %6 : vector<1x32x32xbf16> to vector<32x32xbf16>
    %c0_10 = arith.constant 0 : index
    %c0_11 = arith.constant 0 : index
    %c0_12 = arith.constant 0 : index
    %8 = vector.load %arg7[%c0_10, %c0_11, %c0_12] : memref<1x1x32xf32, #tpu.memory_space<vmem>>, vector<1x1x32xf32>
    %9 = vector.shape_cast %8 : vector<1x1x32xf32> to vector<1x32xf32>
    %10 = arith.extf %5 : vector<8x32xbf16> to vector<8x32xf32>
    %cst = arith.constant 0.000000e+00 : f32
    %11 = vector.broadcast %cst : f32 to vector<8x32xf32>
    %12 = arith.cmpf ogt, %10, %11 : vector<8x32xf32>
    %cst_13 = arith.constant 1.000000e+00 : f32
    %13 = vector.broadcast %cst_13 : f32 to vector<8x32xf32>
    %14 = arith.addf %10, %13 : vector<8x32xf32>
    %cst_14 = arith.constant 0.000000e+00 : f32
    %15 = vector.broadcast %cst_14 : f32 to vector<8x32xf32>
    %16 = arith.minimumf %10, %15 : vector<8x32xf32>
    %17 = math.exp %16 : vector<8x32xf32>
    %18 = arith.select %12, %14, %17 : vector<8x32xi1>, vector<8x32xf32>
    %19 = arith.truncf %18 : vector<8x32xf32> to vector<8x32xbf16>
    %cst_15 = arith.constant dense<0.000000e+00> : vector<8x32xf32>
    %20 = tpu.matmul %19, %7, %cst_15 {dimension_numbers = #tpu.dot_dimension_numbers<[1], [0], [0], [1], [0, 0, 1, 1], [], []>} : vector<8x32xbf16>, vector<32x32xbf16>, vector<8x32xf32> -> vector<8x32xf32>
    %21 = vector.broadcast %9 : vector<1x32xf32> to vector<8x32xf32>
    %22 = arith.mulf %18, %21 : vector<8x32xf32>
    %cst_16 = arith.constant dense<0.000000e+00> : vector<8x32xf32>
    %23 = tpu.matmul %22, %3, %cst_16 {dimension_numbers = #tpu.dot_dimension_numbers<[1], [0], [0], [1], [0, 0, 1, 1], [], []>} : vector<8x32xf32>, vector<32x32xf32>, vector<8x32xf32> -> vector<8x32xf32>
    %cst_17 = arith.constant 9.99999997E-7 : f32
    %24 = vector.broadcast %cst_17 : f32 to vector<8x32xf32>
    %25 = arith.addf %23, %24 : vector<8x32xf32>
    %26 = arith.divf %20, %25 : vector<8x32xf32>
    %27 = arith.truncf %26 : vector<8x32xf32> to vector<8x32xbf16>
    %c0_18 = arith.constant 0 : index
    %c0_19 = arith.constant 0 : index
    %28 = vector.load %arg10[%c0_18, %c0_19] : memref<32x32xbf16, #tpu.memory_space<vmem>>, vector<32x32xbf16>
    %cst_20 = arith.constant dense<0.000000e+00> : vector<8x32xf32>
    %29 = tpu.matmul %27, %28, %cst_20 {dimension_numbers = #tpu.dot_dimension_numbers<[1], [0], [0], [1], [0, 0, 1, 1], [], []>} : vector<8x32xbf16>, vector<32x32xbf16>, vector<8x32xf32> -> vector<8x32xf32>
    %cst_21 = arith.constant dense<0.000000e+00> : vector<8xf32>
    %30 = vector.multi_reduction <add>, %29, %cst_21 [1] : vector<8x32xf32> to vector<8xf32>
    %31 = vector.shape_cast %30 : vector<8xf32> to vector<8x1xf32>
    %cst_22 = arith.constant 3.200000e+01 : f32
    %32 = vector.broadcast %cst_22 : f32 to vector<8x1xf32>
    %33 = arith.divf %31, %32 : vector<8x1xf32>
    %34 = vector.broadcast %33 : vector<8x1xf32> to vector<8x32xf32>
    %35 = arith.subf %29, %34 : vector<8x32xf32>
    %36 = arith.mulf %35, %35 : vector<8x32xf32>
    %cst_23 = arith.constant dense<0.000000e+00> : vector<8xf32>
    %37 = vector.multi_reduction <add>, %36, %cst_23 [1] : vector<8x32xf32> to vector<8xf32>
    %38 = vector.shape_cast %37 : vector<8xf32> to vector<8x1xf32>
    %cst_24 = arith.constant 3.200000e+01 : f32
    %39 = vector.broadcast %cst_24 : f32 to vector<8x1xf32>
    %40 = arith.divf %38, %39 : vector<8x1xf32>
    %41 = vector.broadcast %33 : vector<8x1xf32> to vector<8x32xf32>
    %42 = arith.subf %29, %41 : vector<8x32xf32>
    %cst_25 = arith.constant 9.99999974E-6 : f32
    %43 = vector.broadcast %cst_25 : f32 to vector<8x1xf32>
    %44 = arith.addf %40, %43 : vector<8x1xf32>
    %45 = math.rsqrt %44 : vector<8x1xf32>
    %46 = vector.broadcast %45 : vector<8x1xf32> to vector<8x32xf32>
    %47 = arith.mulf %42, %46 : vector<8x32xf32>
    %c0_26 = arith.constant 0 : index
    %c0_27 = arith.constant 0 : index
    %48 = vector.load %arg11[%c0_26, %c0_27] : memref<1x32xf32, #tpu.memory_space<vmem>>, vector<1x32xf32>
    %49 = vector.broadcast %48 : vector<1x32xf32> to vector<8x32xf32>
    %50 = arith.mulf %47, %49 : vector<8x32xf32>
    %c0_28 = arith.constant 0 : index
    %c0_29 = arith.constant 0 : index
    %51 = vector.load %arg12[%c0_28, %c0_29] : memref<1x32xf32, #tpu.memory_space<vmem>>, vector<1x32xf32>
    %52 = vector.broadcast %51 : vector<1x32xf32> to vector<8x32xf32>
    %53 = arith.addf %50, %52 : vector<8x32xf32>
    %c0_30 = arith.constant 0 : index
    %c0_31 = arith.constant 0 : index
    %54 = vector.load %arg13[%c0_30, %c0_31] : memref<32x64xbf16, #tpu.memory_space<vmem>>, vector<32x64xbf16>
    %cst_32 = arith.constant dense<0.000000e+00> : vector<8x64xf32>
    %55 = tpu.matmul %1, %54, %cst_32 {dimension_numbers = #tpu.dot_dimension_numbers<[1], [0], [0], [1], [0, 0, 1, 1], [], []>} : vector<8x32xbf16>, vector<32x64xbf16>, vector<8x64xf32> -> vector<8x64xf32>
    %56 = arith.truncf %53 : vector<8x32xf32> to vector<8x32xbf16>
    %c0_33 = arith.constant 0 : index
    %c0_34 = arith.constant 0 : index
    %57 = vector.load %arg14[%c0_33, %c0_34] : memref<32x64xbf16, #tpu.memory_space<vmem>>, vector<32x64xbf16>
    %cst_35 = arith.constant dense<0.000000e+00> : vector<8x64xf32>
    %58 = tpu.matmul %56, %57, %cst_35 {dimension_numbers = #tpu.dot_dimension_numbers<[1], [0], [0], [1], [0, 0, 1, 1], [], []>} : vector<8x32xbf16>, vector<32x64xbf16>, vector<8x64xf32> -> vector<8x64xf32>
    %59 = arith.addf %55, %58 : vector<8x64xf32>
    %cst_36 = arith.constant 0.000000e+00 : f32
    %60 = vector.broadcast %cst_36 : f32 to vector<8x64xf32>
    %61 = arith.maximumf %59, %60 : vector<8x64xf32>
    %62 = arith.truncf %61 : vector<8x64xf32> to vector<8x64xbf16>
    %c0_37 = arith.constant 0 : index
    %c0_38 = arith.constant 0 : index
    %63 = vector.load %arg15[%c0_37, %c0_38] : memref<64x32xbf16, #tpu.memory_space<vmem>>, vector<64x32xbf16>
    %cst_39 = arith.constant dense<0.000000e+00> : vector<8x32xf32>
    %64 = tpu.matmul %62, %63, %cst_39 {dimension_numbers = #tpu.dot_dimension_numbers<[1], [0], [0], [1], [0, 0, 1, 1], [], []>} : vector<8x64xbf16>, vector<64x32xbf16>, vector<8x32xf32> -> vector<8x32xf32>
    %cst_40 = arith.constant dense<0.000000e+00> : vector<8xf32>
    %65 = vector.multi_reduction <add>, %64, %cst_40 [1] : vector<8x32xf32> to vector<8xf32>
    %66 = vector.shape_cast %65 : vector<8xf32> to vector<8x1xf32>
    %cst_41 = arith.constant 3.200000e+01 : f32
    %67 = vector.broadcast %cst_41 : f32 to vector<8x1xf32>
    %68 = arith.divf %66, %67 : vector<8x1xf32>
    %69 = vector.broadcast %68 : vector<8x1xf32> to vector<8x32xf32>
    %70 = arith.subf %64, %69 : vector<8x32xf32>
    %71 = arith.mulf %70, %70 : vector<8x32xf32>
    %cst_42 = arith.constant dense<0.000000e+00> : vector<8xf32>
    %72 = vector.multi_reduction <add>, %71, %cst_42 [1] : vector<8x32xf32> to vector<8xf32>
    %73 = vector.shape_cast %72 : vector<8xf32> to vector<8x1xf32>
    %cst_43 = arith.constant 3.200000e+01 : f32
    %74 = vector.broadcast %cst_43 : f32 to vector<8x1xf32>
    %75 = arith.divf %73, %74 : vector<8x1xf32>
    %76 = vector.broadcast %68 : vector<8x1xf32> to vector<8x32xf32>
    %77 = arith.subf %64, %76 : vector<8x32xf32>
    %cst_44 = arith.constant 9.99999974E-6 : f32
    %78 = vector.broadcast %cst_44 : f32 to vector<8x1xf32>
    %79 = arith.addf %75, %78 : vector<8x1xf32>
    %80 = math.rsqrt %79 : vector<8x1xf32>
    %81 = vector.broadcast %80 : vector<8x1xf32> to vector<8x32xf32>
    %82 = arith.mulf %77, %81 : vector<8x32xf32>
    %c0_45 = arith.constant 0 : index
    %c0_46 = arith.constant 0 : index
    %83 = vector.load %arg16[%c0_45, %c0_46] : memref<1x32xf32, #tpu.memory_space<vmem>>, vector<1x32xf32>
    %84 = vector.broadcast %83 : vector<1x32xf32> to vector<8x32xf32>
    %85 = arith.mulf %82, %84 : vector<8x32xf32>
    %c0_47 = arith.constant 0 : index
    %c0_48 = arith.constant 0 : index
    %86 = vector.load %arg17[%c0_47, %c0_48] : memref<1x32xf32, #tpu.memory_space<vmem>>, vector<1x32xf32>
    %87 = vector.broadcast %86 : vector<1x32xf32> to vector<8x32xf32>
    %88 = arith.addf %85, %87 : vector<8x32xf32>
    %c0_49 = arith.constant 0 : index
    %c0_50 = arith.constant 0 : index
    %c0_51 = arith.constant 0 : index
    %89 = vector.load %arg4[%c0_49, %c0_50, %c0_51] : memref<1x8x32xbf16, #tpu.memory_space<vmem>>, vector<1x8x32xbf16>
    %90 = vector.shape_cast %89 : vector<1x8x32xbf16> to vector<8x32xbf16>
    %c0_52 = arith.constant 0 : index
    %c0_53 = arith.constant 0 : index
    %c0_54 = arith.constant 0 : index
    %91 = vector.load %arg6[%c0_52, %c0_53, %c0_54] : memref<1x32x32xbf16, #tpu.memory_space<vmem>>, vector<1x32x32xbf16>
    %92 = vector.shape_cast %91 : vector<1x32x32xbf16> to vector<32x32xbf16>
    %c0_55 = arith.constant 0 : index
    %c0_56 = arith.constant 0 : index
    %c0_57 = arith.constant 0 : index
    %93 = vector.load %arg8[%c0_55, %c0_56, %c0_57] : memref<1x1x32xf32, #tpu.memory_space<vmem>>, vector<1x1x32xf32>
    %94 = vector.shape_cast %93 : vector<1x1x32xf32> to vector<1x32xf32>
    %95 = arith.extf %90 : vector<8x32xbf16> to vector<8x32xf32>
    %cst_58 = arith.constant 0.000000e+00 : f32
    %96 = vector.broadcast %cst_58 : f32 to vector<8x32xf32>
    %97 = arith.cmpf ogt, %95, %96 : vector<8x32xf32>
    %cst_59 = arith.constant 1.000000e+00 : f32
    %98 = vector.broadcast %cst_59 : f32 to vector<8x32xf32>
    %99 = arith.addf %95, %98 : vector<8x32xf32>
    %cst_60 = arith.constant 0.000000e+00 : f32
    %100 = vector.broadcast %cst_60 : f32 to vector<8x32xf32>
    %101 = arith.minimumf %95, %100 : vector<8x32xf32>
    %102 = math.exp %101 : vector<8x32xf32>
    %103 = arith.select %97, %99, %102 : vector<8x32xi1>, vector<8x32xf32>
    %104 = arith.truncf %103 : vector<8x32xf32> to vector<8x32xbf16>
    %cst_61 = arith.constant dense<0.000000e+00> : vector<8x32xf32>
    %105 = tpu.matmul %104, %92, %cst_61 {dimension_numbers = #tpu.dot_dimension_numbers<[1], [0], [0], [1], [0, 0, 1, 1], [], []>} : vector<8x32xbf16>, vector<32x32xbf16>, vector<8x32xf32> -> vector<8x32xf32>
    %106 = vector.broadcast %94 : vector<1x32xf32> to vector<8x32xf32>
    %107 = arith.mulf %103, %106 : vector<8x32xf32>
    %cst_62 = arith.constant dense<0.000000e+00> : vector<8x32xf32>
    %108 = tpu.matmul %107, %3, %cst_62 {dimension_numbers = #tpu.dot_dimension_numbers<[1], [0], [0], [1], [0, 0, 1, 1], [], []>} : vector<8x32xf32>, vector<32x32xf32>, vector<8x32xf32> -> vector<8x32xf32>
    %cst_63 = arith.constant 9.99999997E-7 : f32
    %109 = vector.broadcast %cst_63 : f32 to vector<8x32xf32>
    %110 = arith.addf %108, %109 : vector<8x32xf32>
    %111 = arith.divf %105, %110 : vector<8x32xf32>
    %112 = arith.truncf %111 : vector<8x32xf32> to vector<8x32xbf16>
    %c0_64 = arith.constant 0 : index
    %c0_65 = arith.constant 0 : index
    %113 = vector.load %arg10[%c0_64, %c0_65] : memref<32x32xbf16, #tpu.memory_space<vmem>>, vector<32x32xbf16>
    %cst_66 = arith.constant dense<0.000000e+00> : vector<8x32xf32>
    %114 = tpu.matmul %112, %113, %cst_66 {dimension_numbers = #tpu.dot_dimension_numbers<[1], [0], [0], [1], [0, 0, 1, 1], [], []>} : vector<8x32xbf16>, vector<32x32xbf16>, vector<8x32xf32> -> vector<8x32xf32>
    %cst_67 = arith.constant dense<0.000000e+00> : vector<8xf32>
    %115 = vector.multi_reduction <add>, %114, %cst_67 [1] : vector<8x32xf32> to vector<8xf32>
    %116 = vector.shape_cast %115 : vector<8xf32> to vector<8x1xf32>
    %cst_68 = arith.constant 3.200000e+01 : f32
    %117 = vector.broadcast %cst_68 : f32 to vector<8x1xf32>
    %118 = arith.divf %116, %117 : vector<8x1xf32>
    %119 = vector.broadcast %118 : vector<8x1xf32> to vector<8x32xf32>
    %120 = arith.subf %114, %119 : vector<8x32xf32>
    %121 = arith.mulf %120, %120 : vector<8x32xf32>
    %cst_69 = arith.constant dense<0.000000e+00> : vector<8xf32>
    %122 = vector.multi_reduction <add>, %121, %cst_69 [1] : vector<8x32xf32> to vector<8xf32>
    %123 = vector.shape_cast %122 : vector<8xf32> to vector<8x1xf32>
    %cst_70 = arith.constant 3.200000e+01 : f32
    %124 = vector.broadcast %cst_70 : f32 to vector<8x1xf32>
    %125 = arith.divf %123, %124 : vector<8x1xf32>
    %126 = vector.broadcast %118 : vector<8x1xf32> to vector<8x32xf32>
    %127 = arith.subf %114, %126 : vector<8x32xf32>
    %cst_71 = arith.constant 9.99999974E-6 : f32
    %128 = vector.broadcast %cst_71 : f32 to vector<8x1xf32>
    %129 = arith.addf %125, %128 : vector<8x1xf32>
    %130 = math.rsqrt %129 : vector<8x1xf32>
    %131 = vector.broadcast %130 : vector<8x1xf32> to vector<8x32xf32>
    %132 = arith.mulf %127, %131 : vector<8x32xf32>
    %c0_72 = arith.constant 0 : index
    %c0_73 = arith.constant 0 : index
    %133 = vector.load %arg11[%c0_72, %c0_73] : memref<1x32xf32, #tpu.memory_space<vmem>>, vector<1x32xf32>
    %134 = vector.broadcast %133 : vector<1x32xf32> to vector<8x32xf32>
    %135 = arith.mulf %132, %134 : vector<8x32xf32>
    %c0_74 = arith.constant 0 : index
    %c0_75 = arith.constant 0 : index
    %136 = vector.load %arg12[%c0_74, %c0_75] : memref<1x32xf32, #tpu.memory_space<vmem>>, vector<1x32xf32>
    %137 = vector.broadcast %136 : vector<1x32xf32> to vector<8x32xf32>
    %138 = arith.addf %135, %137 : vector<8x32xf32>
    %c0_76 = arith.constant 0 : index
    %c0_77 = arith.constant 0 : index
    %139 = vector.load %arg13[%c0_76, %c0_77] : memref<32x64xbf16, #tpu.memory_space<vmem>>, vector<32x64xbf16>
    %cst_78 = arith.constant dense<0.000000e+00> : vector<8x64xf32>
    %140 = tpu.matmul %1, %139, %cst_78 {dimension_numbers = #tpu.dot_dimension_numbers<[1], [0], [0], [1], [0, 0, 1, 1], [], []>} : vector<8x32xbf16>, vector<32x64xbf16>, vector<8x64xf32> -> vector<8x64xf32>
    %141 = arith.truncf %138 : vector<8x32xf32> to vector<8x32xbf16>
    %c0_79 = arith.constant 0 : index
    %c0_80 = arith.constant 0 : index
    %142 = vector.load %arg14[%c0_79, %c0_80] : memref<32x64xbf16, #tpu.memory_space<vmem>>, vector<32x64xbf16>
    %cst_81 = arith.constant dense<0.000000e+00> : vector<8x64xf32>
    %143 = tpu.matmul %141, %142, %cst_81 {dimension_numbers = #tpu.dot_dimension_numbers<[1], [0], [0], [1], [0, 0, 1, 1], [], []>} : vector<8x32xbf16>, vector<32x64xbf16>, vector<8x64xf32> -> vector<8x64xf32>
    %144 = arith.addf %140, %143 : vector<8x64xf32>
    %cst_82 = arith.constant 0.000000e+00 : f32
    %145 = vector.broadcast %cst_82 : f32 to vector<8x64xf32>
    %146 = arith.maximumf %144, %145 : vector<8x64xf32>
    %147 = arith.truncf %146 : vector<8x64xf32> to vector<8x64xbf16>
    %c0_83 = arith.constant 0 : index
    %c0_84 = arith.constant 0 : index
    %148 = vector.load %arg15[%c0_83, %c0_84] : memref<64x32xbf16, #tpu.memory_space<vmem>>, vector<64x32xbf16>
    %cst_85 = arith.constant dense<0.000000e+00> : vector<8x32xf32>
    %149 = tpu.matmul %147, %148, %cst_85 {dimension_numbers = #tpu.dot_dimension_numbers<[1], [0], [0], [1], [0, 0, 1, 1], [], []>} : vector<8x64xbf16>, vector<64x32xbf16>, vector<8x32xf32> -> vector<8x32xf32>
    %cst_86 = arith.constant dense<0.000000e+00> : vector<8xf32>
    %150 = vector.multi_reduction <add>, %149, %cst_86 [1] : vector<8x32xf32> to vector<8xf32>
    %151 = vector.shape_cast %150 : vector<8xf32> to vector<8x1xf32>
    %cst_87 = arith.constant 3.200000e+01 : f32
    %152 = vector.broadcast %cst_87 : f32 to vector<8x1xf32>
    %153 = arith.divf %151, %152 : vector<8x1xf32>
    %154 = vector.broadcast %153 : vector<8x1xf32> to vector<8x32xf32>
    %155 = arith.subf %149, %154 : vector<8x32xf32>
    %156 = arith.mulf %155, %155 : vector<8x32xf32>
    %cst_88 = arith.constant dense<0.000000e+00> : vector<8xf32>
    %157 = vector.multi_reduction <add>, %156, %cst_88 [1] : vector<8x32xf32> to vector<8xf32>
    %158 = vector.shape_cast %157 : vector<8xf32> to vector<8x1xf32>
    %cst_89 = arith.constant 3.200000e+01 : f32
    %159 = vector.broadcast %cst_89 : f32 to vector<8x1xf32>
    %160 = arith.divf %158, %159 : vector<8x1xf32>
    %161 = vector.broadcast %153 : vector<8x1xf32> to vector<8x32xf32>
    %162 = arith.subf %149, %161 : vector<8x32xf32>
    %cst_90 = arith.constant 9.99999974E-6 : f32
    %163 = vector.broadcast %cst_90 : f32 to vector<8x1xf32>
    %164 = arith.addf %160, %163 : vector<8x1xf32>
    %165 = math.rsqrt %164 : vector<8x1xf32>
    %166 = vector.broadcast %165 : vector<8x1xf32> to vector<8x32xf32>
    %167 = arith.mulf %162, %166 : vector<8x32xf32>
    %c0_91 = arith.constant 0 : index
    %c0_92 = arith.constant 0 : index
    %168 = vector.load %arg16[%c0_91, %c0_92] : memref<1x32xf32, #tpu.memory_space<vmem>>, vector<1x32xf32>
    %169 = vector.broadcast %168 : vector<1x32xf32> to vector<8x32xf32>
    %170 = arith.mulf %167, %169 : vector<8x32xf32>
    %c0_93 = arith.constant 0 : index
    %c0_94 = arith.constant 0 : index
    %171 = vector.load %arg17[%c0_93, %c0_94] : memref<1x32xf32, #tpu.memory_space<vmem>>, vector<1x32xf32>
    %172 = vector.broadcast %171 : vector<1x32xf32> to vector<8x32xf32>
    %173 = arith.addf %170, %172 : vector<8x32xf32>
    %174 = arith.addf %88, %173 : vector<8x32xf32>
    %cst_95 = arith.constant 5.000000e-01 : f32
    %175 = vector.broadcast %cst_95 : f32 to vector<8x32xf32>
    %176 = arith.mulf %175, %174 : vector<8x32xf32>
    %177 = arith.addf %2, %176 : vector<8x32xf32>
    %178 = arith.truncf %177 : vector<8x32xf32> to vector<8x32xbf16>
    %c0_96 = arith.constant 0 : index
    %c0_97 = arith.constant 0 : index
    %c0_98 = arith.constant 0 : index
    %179 = vector.load %arg18[%c0_96, %c0_97, %c0_98] : memref<1x8x32xbf16, #tpu.memory_space<vmem>>, vector<1x8x32xbf16>
    %180 = vector.shape_cast %179 : vector<1x8x32xbf16> to vector<8x32xbf16>
    %181 = vector.shape_cast %178 : vector<8x32xbf16> to vector<1x8x32xbf16>
    tpu.vector_store %arg18[%c0_96, %c0_97, %c0_98], %181 {strides = array<i32>} : memref<1x8x32xbf16, #tpu.memory_space<vmem>>, vector<1x8x32xbf16>,
    return
  }
  func.func @transform_0(%arg0: i32, %arg1: i32) -> (i32, i32, i32) {
    %c0_i32 = arith.constant 0 : i32
    %c0_i32_0 = arith.constant 0 : i32
    return %arg0, %arg1, %c0_i32 : i32, i32, i32
  }
  func.func @transform_1(%arg0: i32, %arg1: i32) -> (i32, i32, i32) {
    %c0_i32 = arith.constant 0 : i32
    %c0_i32_0 = arith.constant 0 : i32
    return %arg0, %arg1, %c0_i32 : i32, i32, i32
  }
  func.func @transform_2(%arg0: i32, %arg1: i32) -> (i32, i32, i32) {
    %c0_i32 = arith.constant 0 : i32
    %c0_i32_0 = arith.constant 0 : i32
    return %arg0, %arg1, %c0_i32 : i32, i32, i32
  }
  func.func @transform_3(%arg0: i32, %arg1: i32) -> (i32, i32, i32) {
    %c0_i32 = arith.constant 0 : i32
    %c0_i32_0 = arith.constant 0 : i32
    %c0_i32_1 = arith.constant 0 : i32
    return %arg0, %c0_i32, %c0_i32_0 : i32, i32, i32
  }
  func.func @transform_4(%arg0: i32, %arg1: i32) -> (i32, i32, i32) {
    %c0_i32 = arith.constant 0 : i32
    %c0_i32_0 = arith.constant 0 : i32
    %c0_i32_1 = arith.constant 0 : i32
    return %arg0, %c0_i32, %c0_i32_0 : i32, i32, i32
  }
  func.func @transform_5(%arg0: i32, %arg1: i32) -> (i32, i32, i32) {
    %c0_i32 = arith.constant 0 : i32
    %c0_i32_0 = arith.constant 0 : i32
    %c0_i32_1 = arith.constant 0 : i32
    return %arg0, %c0_i32, %c0_i32_0 : i32, i32, i32
  }
  func.func @transform_6(%arg0: i32, %arg1: i32) -> (i32, i32, i32) {
    %c0_i32 = arith.constant 0 : i32
    %c0_i32_0 = arith.constant 0 : i32
    %c0_i32_1 = arith.constant 0 : i32
    return %arg0, %c0_i32, %c0_i32_0 : i32, i32, i32
  }
  func.func @transform_7(%arg0: i32, %arg1: i32) -> (i32, i32) {
    %c0_i32 = arith.constant 0 : i32
    %c0_i32_0 = arith.constant 0 : i32
    %c0_i32_1 = arith.constant 0 : i32
    return %c0_i32, %c0_i32_0 : i32, i32
  }
  func.func @transform_8(%arg0: i32, %arg1: i32) -> (i32, i32) {
    %c0_i32 = arith.constant 0 : i32
    %c0_i32_0 = arith.constant 0 : i32
    %c0_i32_1 = arith.constant 0 : i32
    return %c0_i32, %c0_i32_0 : i32, i32
  }
  func.func @transform_9(%arg0: i32, %arg1: i32) -> (i32, i32) {
    %c0_i32 = arith.constant 0 : i32
    %c0_i32_0 = arith.constant 0 : i32
    %c0_i32_1 = arith.constant 0 : i32
    return %c0_i32, %c0_i32_0 : i32, i32
  }
  func.func @transform_10(%arg0: i32, %arg1: i32) -> (i32, i32) {
    %c0_i32 = arith.constant 0 : i32
    %c0_i32_0 = arith.constant 0 : i32
    %c0_i32_1 = arith.constant 0 : i32
    return %c0_i32, %c0_i32_0 : i32, i32
  }
  func.func @transform_11(%arg0: i32, %arg1: i32) -> (i32, i32) {
    %c0_i32 = arith.constant 0 : i32
    %c0_i32_0 = arith.constant 0 : i32
    %c0_i32_1 = arith.constant 0 : i32
    return %c0_i32, %c0_i32_0 : i32, i32
  }
  func.func @transform_12(%arg0: i32, %arg1: i32) -> (i32, i32) {
    %c0_i32 = arith.constant 0 : i32
    %c0_i32_0 = arith.constant 0 : i32
    %c0_i32_1 = arith.constant 0 : i32
    return %c0_i32, %c0_i32_0 : i32, i32
  }
  func.func @transform_13(%arg0: i32, %arg1: i32) -> (i32, i32) {
    %c0_i32 = arith.constant 0 : i32
    %c0_i32_0 = arith.constant 0 : i32
    %c0_i32_1 = arith.constant 0 : i32
    return %c0_i32, %c0_i32_0 : i32, i32
  }
  func.func @transform_14(%arg0: i32, %arg1: i32) -> (i32, i32) {
    %c0_i32 = arith.constant 0 : i32
    %c0_i32_0 = arith.constant 0 : i32
    %c0_i32_1 = arith.constant 0 : i32
    return %c0_i32, %c0_i32_0 : i32, i32
  }
  func.func @transform_15(%arg0: i32, %arg1: i32) -> (i32, i32) {
    %c0_i32 = arith.constant 0 : i32
    %c0_i32_0 = arith.constant 0 : i32
    %c0_i32_1 = arith.constant 0 : i32
    return %c0_i32, %c0_i32_0 : i32, i32
  }
  func.func @transform_16(%arg0: i32, %arg1: i32) -> (i32, i32, i32) {
    %c0_i32 = arith.constant 0 : i32
    %c0_i32_0 = arith.constant 0 : i32
    return %arg0, %arg1, %c0_i32 : i32, i32, i32
  }
}

module attributes {stable_mosaic.version = 11 : i64} {
  func.func @_dual_proj_kernel(%arg0: i32, %arg1: i32, %arg2: memref<1x8x32xbf16, #tpu.memory_space<vmem>>, %arg3: memref<32x64xbf16, #tpu.memory_space<vmem>>, %arg4: memref<1x8x32xbf16, #tpu.memory_space<vmem>>, %arg5: memref<1x8x32xbf16, #tpu.memory_space<vmem>>) attributes {dimension_semantics = [#tpu.dimension_semantics<parallel>, #tpu.dimension_semantics<parallel>], iteration_bounds = array<i64: 2, 1>, scalar_prefetch = 0 : i64, scratch_operands = 0 : i64, tpu.core_type = #tpu.core_type<tc>, window_params = [{transform_indices = @transform_0, window_bounds = array<i64: 1, 8, 32>}, {pipeline_mode = #tpu.pipeline_mode<synchronous>, transform_indices = @transform_1, window_bounds = array<i64: 32, 64>}, {transform_indices = @transform_2, window_bounds = array<i64: 1, 8, 32>}, {transform_indices = @transform_3, window_bounds = array<i64: 1, 8, 32>}]} {
    %c0 = arith.constant 0 : index
    %c0_0 = arith.constant 0 : index
    %c0_1 = arith.constant 0 : index
    %0 = vector.load %arg2[%c0, %c0_0, %c0_1] : memref<1x8x32xbf16, #tpu.memory_space<vmem>>, vector<1x8x32xbf16>
    %1 = vector.shape_cast %0 : vector<1x8x32xbf16> to vector<8x32xbf16>
    %c0_2 = arith.constant 0 : index
    %c0_3 = arith.constant 0 : index
    %2 = vector.load %arg3[%c0_2, %c0_3] : memref<32x64xbf16, #tpu.memory_space<vmem>>, vector<32x64xbf16>
    %cst = arith.constant dense<0.000000e+00> : vector<8x64xf32>
    %3 = tpu.matmul %1, %2, %cst {dimension_numbers = #tpu.dot_dimension_numbers<[1], [0], [0], [1], [0, 0, 1, 1], [], []>} : vector<8x32xbf16>, vector<32x64xbf16>, vector<8x64xf32> -> vector<8x64xf32>
    %4 = vector.extract_strided_slice %3 {offsets = [0, 0], sizes = [8, 32], strides = [1, 1]} : vector<8x64xf32> to vector<8x32xf32>
    %5 = arith.truncf %4 : vector<8x32xf32> to vector<8x32xbf16>
    %c0_4 = arith.constant 0 : index
    %c0_5 = arith.constant 0 : index
    %c0_6 = arith.constant 0 : index
    %6 = vector.load %arg4[%c0_4, %c0_5, %c0_6] : memref<1x8x32xbf16, #tpu.memory_space<vmem>>, vector<1x8x32xbf16>
    %7 = vector.shape_cast %6 : vector<1x8x32xbf16> to vector<8x32xbf16>
    %8 = vector.shape_cast %5 : vector<8x32xbf16> to vector<1x8x32xbf16>
    tpu.vector_store %arg4[%c0_4, %c0_5, %c0_6], %8 {strides = array<i32>} : memref<1x8x32xbf16, #tpu.memory_space<vmem>>, vector<1x8x32xbf16>,
    %9 = vector.extract_strided_slice %3 {offsets = [0, 32], sizes = [8, 32], strides = [1, 1]} : vector<8x64xf32> to vector<8x32xf32>
    %10 = arith.truncf %9 : vector<8x32xf32> to vector<8x32xbf16>
    %c0_7 = arith.constant 0 : index
    %c0_8 = arith.constant 0 : index
    %c0_9 = arith.constant 0 : index
    %11 = vector.load %arg5[%c0_7, %c0_8, %c0_9] : memref<1x8x32xbf16, #tpu.memory_space<vmem>>, vector<1x8x32xbf16>
    %12 = vector.shape_cast %11 : vector<1x8x32xbf16> to vector<8x32xbf16>
    %13 = vector.shape_cast %10 : vector<8x32xbf16> to vector<1x8x32xbf16>
    tpu.vector_store %arg5[%c0_7, %c0_8, %c0_9], %13 {strides = array<i32>} : memref<1x8x32xbf16, #tpu.memory_space<vmem>>, vector<1x8x32xbf16>,
    return
  }
  func.func @transform_0(%arg0: i32, %arg1: i32) -> (i32, i32, i32) {
    %c0_i32 = arith.constant 0 : i32
    %c0_i32_0 = arith.constant 0 : i32
    return %arg0, %arg1, %c0_i32 : i32, i32, i32
  }
  func.func @transform_1(%arg0: i32, %arg1: i32) -> (i32, i32) {
    %c0_i32 = arith.constant 0 : i32
    %c0_i32_0 = arith.constant 0 : i32
    %c0_i32_1 = arith.constant 0 : i32
    return %c0_i32, %c0_i32_0 : i32, i32
  }
  func.func @transform_2(%arg0: i32, %arg1: i32) -> (i32, i32, i32) {
    %c0_i32 = arith.constant 0 : i32
    %c0_i32_0 = arith.constant 0 : i32
    return %arg0, %arg1, %c0_i32 : i32, i32, i32
  }
  func.func @transform_3(%arg0: i32, %arg1: i32) -> (i32, i32, i32) {
    %c0_i32 = arith.constant 0 : i32
    %c0_i32_0 = arith.constant 0 : i32
    return %arg0, %arg1, %c0_i32 : i32, i32, i32
  }
}

module attributes {stable_mosaic.version = 11 : i64} {
  func.func @_stage_kernel(%arg0: i32, %arg1: i32, %arg2: memref<1x8x32xbf16, #tpu.memory_space<vmem>>, %arg3: memref<1x8x32xbf16, #tpu.memory_space<vmem>>, %arg4: memref<1x8x32xbf16, #tpu.memory_space<vmem>>, %arg5: memref<1x32x32xbf16, #tpu.memory_space<vmem>>, %arg6: memref<1x32x32xbf16, #tpu.memory_space<vmem>>, %arg7: memref<1x1x32xf32, #tpu.memory_space<vmem>>, %arg8: memref<1x1x32xf32, #tpu.memory_space<vmem>>, %arg9: memref<32x32xf32, #tpu.memory_space<vmem>>, %arg10: memref<32x32xbf16, #tpu.memory_space<vmem>>, %arg11: memref<1x32xf32, #tpu.memory_space<vmem>>, %arg12: memref<1x32xf32, #tpu.memory_space<vmem>>, %arg13: memref<32x64xbf16, #tpu.memory_space<vmem>>, %arg14: memref<32x64xbf16, #tpu.memory_space<vmem>>, %arg15: memref<64x32xbf16, #tpu.memory_space<vmem>>, %arg16: memref<1x32xf32, #tpu.memory_space<vmem>>, %arg17: memref<1x32xf32, #tpu.memory_space<vmem>>, %arg18: memref<1x8x32xf32, #tpu.memory_space<vmem>>) attributes {dimension_semantics = [#tpu.dimension_semantics<parallel>, #tpu.dimension_semantics<parallel>], iteration_bounds = array<i64: 2, 1>, scalar_prefetch = 0 : i64, scratch_operands = 0 : i64, tpu.core_type = #tpu.core_type<tc>, window_params = [{transform_indices = @transform_0, window_bounds = array<i64: 1, 8, 32>}, {transform_indices = @transform_1, window_bounds = array<i64: 1, 8, 32>}, {transform_indices = @transform_2, window_bounds = array<i64: 1, 8, 32>}, {transform_indices = @transform_3, window_bounds = array<i64: 1, 32, 32>}, {transform_indices = @transform_4, window_bounds = array<i64: 1, 32, 32>}, {transform_indices = @transform_5, window_bounds = array<i64: 1, 1, 32>}, {transform_indices = @transform_6, window_bounds = array<i64: 1, 1, 32>}, {pipeline_mode = #tpu.pipeline_mode<synchronous>, transform_indices = @transform_7, window_bounds = array<i64: 32, 32>}, {pipeline_mode = #tpu.pipeline_mode<synchronous>, transform_indices = @transform_8, window_bounds = array<i64: 32, 32>}, {pipeline_mode = #tpu.pipeline_mode<synchronous>, transform_indices = @transform_9, window_bounds = array<i64: 1, 32>}, {pipeline_mode = #tpu.pipeline_mode<synchronous>, transform_indices = @transform_10, window_bounds = array<i64: 1, 32>}, {pipeline_mode = #tpu.pipeline_mode<synchronous>, transform_indices = @transform_11, window_bounds = array<i64: 32, 64>}, {pipeline_mode = #tpu.pipeline_mode<synchronous>, transform_indices = @transform_12, window_bounds = array<i64: 32, 64>}, {pipeline_mode = #tpu.pipeline_mode<synchronous>, transform_indices = @transform_13, window_bounds = array<i64: 64, 32>}, {pipeline_mode = #tpu.pipeline_mode<synchronous>, transform_indices = @transform_14, window_bounds = array<i64: 1, 32>}, {pipeline_mode = #tpu.pipeline_mode<synchronous>, transform_indices = @transform_15, window_bounds = array<i64: 1, 32>}, {transform_indices = @transform_16, window_bounds = array<i64: 1, 8, 32>}]} {
    %c0 = arith.constant 0 : index
    %c0_0 = arith.constant 0 : index
    %c0_1 = arith.constant 0 : index
    %0 = vector.load %arg2[%c0, %c0_0, %c0_1] : memref<1x8x32xbf16, #tpu.memory_space<vmem>>, vector<1x8x32xbf16>
    %1 = vector.shape_cast %0 : vector<1x8x32xbf16> to vector<8x32xbf16>
    %2 = arith.extf %1 : vector<8x32xbf16> to vector<8x32xf32>
    %c0_2 = arith.constant 0 : index
    %c0_3 = arith.constant 0 : index
    %3 = vector.load %arg9[%c0_2, %c0_3] : memref<32x32xf32, #tpu.memory_space<vmem>>, vector<32x32xf32>
    %c0_4 = arith.constant 0 : index
    %c0_5 = arith.constant 0 : index
    %c0_6 = arith.constant 0 : index
    %4 = vector.load %arg3[%c0_4, %c0_5, %c0_6] : memref<1x8x32xbf16, #tpu.memory_space<vmem>>, vector<1x8x32xbf16>
    %5 = vector.shape_cast %4 : vector<1x8x32xbf16> to vector<8x32xbf16>
    %c0_7 = arith.constant 0 : index
    %c0_8 = arith.constant 0 : index
    %c0_9 = arith.constant 0 : index
    %6 = vector.load %arg5[%c0_7, %c0_8, %c0_9] : memref<1x32x32xbf16, #tpu.memory_space<vmem>>, vector<1x32x32xbf16>
    %7 = vector.shape_cast %6 : vector<1x32x32xbf16> to vector<32x32xbf16>
    %c0_10 = arith.constant 0 : index
    %c0_11 = arith.constant 0 : index
    %c0_12 = arith.constant 0 : index
    %8 = vector.load %arg7[%c0_10, %c0_11, %c0_12] : memref<1x1x32xf32, #tpu.memory_space<vmem>>, vector<1x1x32xf32>
    %9 = vector.shape_cast %8 : vector<1x1x32xf32> to vector<1x32xf32>
    %10 = arith.extf %5 : vector<8x32xbf16> to vector<8x32xf32>
    %cst = arith.constant 0.000000e+00 : f32
    %11 = vector.broadcast %cst : f32 to vector<8x32xf32>
    %12 = arith.cmpf ogt, %10, %11 : vector<8x32xf32>
    %cst_13 = arith.constant 1.000000e+00 : f32
    %13 = vector.broadcast %cst_13 : f32 to vector<8x32xf32>
    %14 = arith.addf %10, %13 : vector<8x32xf32>
    %cst_14 = arith.constant 0.000000e+00 : f32
    %15 = vector.broadcast %cst_14 : f32 to vector<8x32xf32>
    %16 = arith.minimumf %10, %15 : vector<8x32xf32>
    %17 = math.exp %16 : vector<8x32xf32>
    %18 = arith.select %12, %14, %17 : vector<8x32xi1>, vector<8x32xf32>
    %19 = arith.truncf %18 : vector<8x32xf32> to vector<8x32xbf16>
    %cst_15 = arith.constant dense<0.000000e+00> : vector<8x32xf32>
    %20 = tpu.matmul %19, %7, %cst_15 {dimension_numbers = #tpu.dot_dimension_numbers<[1], [0], [0], [1], [0, 0, 1, 1], [], []>} : vector<8x32xbf16>, vector<32x32xbf16>, vector<8x32xf32> -> vector<8x32xf32>
    %21 = vector.broadcast %9 : vector<1x32xf32> to vector<8x32xf32>
    %22 = arith.mulf %18, %21 : vector<8x32xf32>
    %cst_16 = arith.constant dense<0.000000e+00> : vector<8x32xf32>
    %23 = tpu.matmul %22, %3, %cst_16 {dimension_numbers = #tpu.dot_dimension_numbers<[1], [0], [0], [1], [0, 0, 1, 1], [], []>} : vector<8x32xf32>, vector<32x32xf32>, vector<8x32xf32> -> vector<8x32xf32>
    %cst_17 = arith.constant 9.99999997E-7 : f32
    %24 = vector.broadcast %cst_17 : f32 to vector<8x32xf32>
    %25 = arith.addf %23, %24 : vector<8x32xf32>
    %26 = arith.divf %20, %25 : vector<8x32xf32>
    %27 = arith.truncf %26 : vector<8x32xf32> to vector<8x32xbf16>
    %c0_18 = arith.constant 0 : index
    %c0_19 = arith.constant 0 : index
    %28 = vector.load %arg10[%c0_18, %c0_19] : memref<32x32xbf16, #tpu.memory_space<vmem>>, vector<32x32xbf16>
    %cst_20 = arith.constant dense<0.000000e+00> : vector<8x32xf32>
    %29 = tpu.matmul %27, %28, %cst_20 {dimension_numbers = #tpu.dot_dimension_numbers<[1], [0], [0], [1], [0, 0, 1, 1], [], []>} : vector<8x32xbf16>, vector<32x32xbf16>, vector<8x32xf32> -> vector<8x32xf32>
    %cst_21 = arith.constant dense<0.000000e+00> : vector<8xf32>
    %30 = vector.multi_reduction <add>, %29, %cst_21 [1] : vector<8x32xf32> to vector<8xf32>
    %31 = vector.shape_cast %30 : vector<8xf32> to vector<8x1xf32>
    %cst_22 = arith.constant 3.200000e+01 : f32
    %32 = vector.broadcast %cst_22 : f32 to vector<8x1xf32>
    %33 = arith.divf %31, %32 : vector<8x1xf32>
    %34 = vector.broadcast %33 : vector<8x1xf32> to vector<8x32xf32>
    %35 = arith.subf %29, %34 : vector<8x32xf32>
    %36 = arith.mulf %35, %35 : vector<8x32xf32>
    %cst_23 = arith.constant dense<0.000000e+00> : vector<8xf32>
    %37 = vector.multi_reduction <add>, %36, %cst_23 [1] : vector<8x32xf32> to vector<8xf32>
    %38 = vector.shape_cast %37 : vector<8xf32> to vector<8x1xf32>
    %cst_24 = arith.constant 3.200000e+01 : f32
    %39 = vector.broadcast %cst_24 : f32 to vector<8x1xf32>
    %40 = arith.divf %38, %39 : vector<8x1xf32>
    %41 = vector.broadcast %33 : vector<8x1xf32> to vector<8x32xf32>
    %42 = arith.subf %29, %41 : vector<8x32xf32>
    %cst_25 = arith.constant 9.99999974E-6 : f32
    %43 = vector.broadcast %cst_25 : f32 to vector<8x1xf32>
    %44 = arith.addf %40, %43 : vector<8x1xf32>
    %45 = math.rsqrt %44 : vector<8x1xf32>
    %46 = vector.broadcast %45 : vector<8x1xf32> to vector<8x32xf32>
    %47 = arith.mulf %42, %46 : vector<8x32xf32>
    %c0_26 = arith.constant 0 : index
    %c0_27 = arith.constant 0 : index
    %48 = vector.load %arg11[%c0_26, %c0_27] : memref<1x32xf32, #tpu.memory_space<vmem>>, vector<1x32xf32>
    %49 = vector.broadcast %48 : vector<1x32xf32> to vector<8x32xf32>
    %50 = arith.mulf %47, %49 : vector<8x32xf32>
    %c0_28 = arith.constant 0 : index
    %c0_29 = arith.constant 0 : index
    %51 = vector.load %arg12[%c0_28, %c0_29] : memref<1x32xf32, #tpu.memory_space<vmem>>, vector<1x32xf32>
    %52 = vector.broadcast %51 : vector<1x32xf32> to vector<8x32xf32>
    %53 = arith.addf %50, %52 : vector<8x32xf32>
    %c0_30 = arith.constant 0 : index
    %c0_31 = arith.constant 0 : index
    %54 = vector.load %arg13[%c0_30, %c0_31] : memref<32x64xbf16, #tpu.memory_space<vmem>>, vector<32x64xbf16>
    %cst_32 = arith.constant dense<0.000000e+00> : vector<8x64xf32>
    %55 = tpu.matmul %1, %54, %cst_32 {dimension_numbers = #tpu.dot_dimension_numbers<[1], [0], [0], [1], [0, 0, 1, 1], [], []>} : vector<8x32xbf16>, vector<32x64xbf16>, vector<8x64xf32> -> vector<8x64xf32>
    %56 = arith.truncf %53 : vector<8x32xf32> to vector<8x32xbf16>
    %c0_33 = arith.constant 0 : index
    %c0_34 = arith.constant 0 : index
    %57 = vector.load %arg14[%c0_33, %c0_34] : memref<32x64xbf16, #tpu.memory_space<vmem>>, vector<32x64xbf16>
    %cst_35 = arith.constant dense<0.000000e+00> : vector<8x64xf32>
    %58 = tpu.matmul %56, %57, %cst_35 {dimension_numbers = #tpu.dot_dimension_numbers<[1], [0], [0], [1], [0, 0, 1, 1], [], []>} : vector<8x32xbf16>, vector<32x64xbf16>, vector<8x64xf32> -> vector<8x64xf32>
    %59 = arith.addf %55, %58 : vector<8x64xf32>
    %cst_36 = arith.constant 0.000000e+00 : f32
    %60 = vector.broadcast %cst_36 : f32 to vector<8x64xf32>
    %61 = arith.maximumf %59, %60 : vector<8x64xf32>
    %62 = arith.truncf %61 : vector<8x64xf32> to vector<8x64xbf16>
    %c0_37 = arith.constant 0 : index
    %c0_38 = arith.constant 0 : index
    %63 = vector.load %arg15[%c0_37, %c0_38] : memref<64x32xbf16, #tpu.memory_space<vmem>>, vector<64x32xbf16>
    %cst_39 = arith.constant dense<0.000000e+00> : vector<8x32xf32>
    %64 = tpu.matmul %62, %63, %cst_39 {dimension_numbers = #tpu.dot_dimension_numbers<[1], [0], [0], [1], [0, 0, 1, 1], [], []>} : vector<8x64xbf16>, vector<64x32xbf16>, vector<8x32xf32> -> vector<8x32xf32>
    %cst_40 = arith.constant dense<0.000000e+00> : vector<8xf32>
    %65 = vector.multi_reduction <add>, %64, %cst_40 [1] : vector<8x32xf32> to vector<8xf32>
    %66 = vector.shape_cast %65 : vector<8xf32> to vector<8x1xf32>
    %cst_41 = arith.constant 3.200000e+01 : f32
    %67 = vector.broadcast %cst_41 : f32 to vector<8x1xf32>
    %68 = arith.divf %66, %67 : vector<8x1xf32>
    %69 = vector.broadcast %68 : vector<8x1xf32> to vector<8x32xf32>
    %70 = arith.subf %64, %69 : vector<8x32xf32>
    %71 = arith.mulf %70, %70 : vector<8x32xf32>
    %cst_42 = arith.constant dense<0.000000e+00> : vector<8xf32>
    %72 = vector.multi_reduction <add>, %71, %cst_42 [1] : vector<8x32xf32> to vector<8xf32>
    %73 = vector.shape_cast %72 : vector<8xf32> to vector<8x1xf32>
    %cst_43 = arith.constant 3.200000e+01 : f32
    %74 = vector.broadcast %cst_43 : f32 to vector<8x1xf32>
    %75 = arith.divf %73, %74 : vector<8x1xf32>
    %76 = vector.broadcast %68 : vector<8x1xf32> to vector<8x32xf32>
    %77 = arith.subf %64, %76 : vector<8x32xf32>
    %cst_44 = arith.constant 9.99999974E-6 : f32
    %78 = vector.broadcast %cst_44 : f32 to vector<8x1xf32>
    %79 = arith.addf %75, %78 : vector<8x1xf32>
    %80 = math.rsqrt %79 : vector<8x1xf32>
    %81 = vector.broadcast %80 : vector<8x1xf32> to vector<8x32xf32>
    %82 = arith.mulf %77, %81 : vector<8x32xf32>
    %c0_45 = arith.constant 0 : index
    %c0_46 = arith.constant 0 : index
    %83 = vector.load %arg16[%c0_45, %c0_46] : memref<1x32xf32, #tpu.memory_space<vmem>>, vector<1x32xf32>
    %84 = vector.broadcast %83 : vector<1x32xf32> to vector<8x32xf32>
    %85 = arith.mulf %82, %84 : vector<8x32xf32>
    %c0_47 = arith.constant 0 : index
    %c0_48 = arith.constant 0 : index
    %86 = vector.load %arg17[%c0_47, %c0_48] : memref<1x32xf32, #tpu.memory_space<vmem>>, vector<1x32xf32>
    %87 = vector.broadcast %86 : vector<1x32xf32> to vector<8x32xf32>
    %88 = arith.addf %85, %87 : vector<8x32xf32>
    %c0_49 = arith.constant 0 : index
    %c0_50 = arith.constant 0 : index
    %c0_51 = arith.constant 0 : index
    %89 = vector.load %arg4[%c0_49, %c0_50, %c0_51] : memref<1x8x32xbf16, #tpu.memory_space<vmem>>, vector<1x8x32xbf16>
    %90 = vector.shape_cast %89 : vector<1x8x32xbf16> to vector<8x32xbf16>
    %c0_52 = arith.constant 0 : index
    %c0_53 = arith.constant 0 : index
    %c0_54 = arith.constant 0 : index
    %91 = vector.load %arg6[%c0_52, %c0_53, %c0_54] : memref<1x32x32xbf16, #tpu.memory_space<vmem>>, vector<1x32x32xbf16>
    %92 = vector.shape_cast %91 : vector<1x32x32xbf16> to vector<32x32xbf16>
    %c0_55 = arith.constant 0 : index
    %c0_56 = arith.constant 0 : index
    %c0_57 = arith.constant 0 : index
    %93 = vector.load %arg8[%c0_55, %c0_56, %c0_57] : memref<1x1x32xf32, #tpu.memory_space<vmem>>, vector<1x1x32xf32>
    %94 = vector.shape_cast %93 : vector<1x1x32xf32> to vector<1x32xf32>
    %95 = arith.extf %90 : vector<8x32xbf16> to vector<8x32xf32>
    %cst_58 = arith.constant 0.000000e+00 : f32
    %96 = vector.broadcast %cst_58 : f32 to vector<8x32xf32>
    %97 = arith.cmpf ogt, %95, %96 : vector<8x32xf32>
    %cst_59 = arith.constant 1.000000e+00 : f32
    %98 = vector.broadcast %cst_59 : f32 to vector<8x32xf32>
    %99 = arith.addf %95, %98 : vector<8x32xf32>
    %cst_60 = arith.constant 0.000000e+00 : f32
    %100 = vector.broadcast %cst_60 : f32 to vector<8x32xf32>
    %101 = arith.minimumf %95, %100 : vector<8x32xf32>
    %102 = math.exp %101 : vector<8x32xf32>
    %103 = arith.select %97, %99, %102 : vector<8x32xi1>, vector<8x32xf32>
    %104 = arith.truncf %103 : vector<8x32xf32> to vector<8x32xbf16>
    %cst_61 = arith.constant dense<0.000000e+00> : vector<8x32xf32>
    %105 = tpu.matmul %104, %92, %cst_61 {dimension_numbers = #tpu.dot_dimension_numbers<[1], [0], [0], [1], [0, 0, 1, 1], [], []>} : vector<8x32xbf16>, vector<32x32xbf16>, vector<8x32xf32> -> vector<8x32xf32>
    %106 = vector.broadcast %94 : vector<1x32xf32> to vector<8x32xf32>
    %107 = arith.mulf %103, %106 : vector<8x32xf32>
    %cst_62 = arith.constant dense<0.000000e+00> : vector<8x32xf32>
    %108 = tpu.matmul %107, %3, %cst_62 {dimension_numbers = #tpu.dot_dimension_numbers<[1], [0], [0], [1], [0, 0, 1, 1], [], []>} : vector<8x32xf32>, vector<32x32xf32>, vector<8x32xf32> -> vector<8x32xf32>
    %cst_63 = arith.constant 9.99999997E-7 : f32
    %109 = vector.broadcast %cst_63 : f32 to vector<8x32xf32>
    %110 = arith.addf %108, %109 : vector<8x32xf32>
    %111 = arith.divf %105, %110 : vector<8x32xf32>
    %112 = arith.truncf %111 : vector<8x32xf32> to vector<8x32xbf16>
    %c0_64 = arith.constant 0 : index
    %c0_65 = arith.constant 0 : index
    %113 = vector.load %arg10[%c0_64, %c0_65] : memref<32x32xbf16, #tpu.memory_space<vmem>>, vector<32x32xbf16>
    %cst_66 = arith.constant dense<0.000000e+00> : vector<8x32xf32>
    %114 = tpu.matmul %112, %113, %cst_66 {dimension_numbers = #tpu.dot_dimension_numbers<[1], [0], [0], [1], [0, 0, 1, 1], [], []>} : vector<8x32xbf16>, vector<32x32xbf16>, vector<8x32xf32> -> vector<8x32xf32>
    %cst_67 = arith.constant dense<0.000000e+00> : vector<8xf32>
    %115 = vector.multi_reduction <add>, %114, %cst_67 [1] : vector<8x32xf32> to vector<8xf32>
    %116 = vector.shape_cast %115 : vector<8xf32> to vector<8x1xf32>
    %cst_68 = arith.constant 3.200000e+01 : f32
    %117 = vector.broadcast %cst_68 : f32 to vector<8x1xf32>
    %118 = arith.divf %116, %117 : vector<8x1xf32>
    %119 = vector.broadcast %118 : vector<8x1xf32> to vector<8x32xf32>
    %120 = arith.subf %114, %119 : vector<8x32xf32>
    %121 = arith.mulf %120, %120 : vector<8x32xf32>
    %cst_69 = arith.constant dense<0.000000e+00> : vector<8xf32>
    %122 = vector.multi_reduction <add>, %121, %cst_69 [1] : vector<8x32xf32> to vector<8xf32>
    %123 = vector.shape_cast %122 : vector<8xf32> to vector<8x1xf32>
    %cst_70 = arith.constant 3.200000e+01 : f32
    %124 = vector.broadcast %cst_70 : f32 to vector<8x1xf32>
    %125 = arith.divf %123, %124 : vector<8x1xf32>
    %126 = vector.broadcast %118 : vector<8x1xf32> to vector<8x32xf32>
    %127 = arith.subf %114, %126 : vector<8x32xf32>
    %cst_71 = arith.constant 9.99999974E-6 : f32
    %128 = vector.broadcast %cst_71 : f32 to vector<8x1xf32>
    %129 = arith.addf %125, %128 : vector<8x1xf32>
    %130 = math.rsqrt %129 : vector<8x1xf32>
    %131 = vector.broadcast %130 : vector<8x1xf32> to vector<8x32xf32>
    %132 = arith.mulf %127, %131 : vector<8x32xf32>
    %c0_72 = arith.constant 0 : index
    %c0_73 = arith.constant 0 : index
    %133 = vector.load %arg11[%c0_72, %c0_73] : memref<1x32xf32, #tpu.memory_space<vmem>>, vector<1x32xf32>
    %134 = vector.broadcast %133 : vector<1x32xf32> to vector<8x32xf32>
    %135 = arith.mulf %132, %134 : vector<8x32xf32>
    %c0_74 = arith.constant 0 : index
    %c0_75 = arith.constant 0 : index
    %136 = vector.load %arg12[%c0_74, %c0_75] : memref<1x32xf32, #tpu.memory_space<vmem>>, vector<1x32xf32>
    %137 = vector.broadcast %136 : vector<1x32xf32> to vector<8x32xf32>
    %138 = arith.addf %135, %137 : vector<8x32xf32>
    %c0_76 = arith.constant 0 : index
    %c0_77 = arith.constant 0 : index
    %139 = vector.load %arg13[%c0_76, %c0_77] : memref<32x64xbf16, #tpu.memory_space<vmem>>, vector<32x64xbf16>
    %cst_78 = arith.constant dense<0.000000e+00> : vector<8x64xf32>
    %140 = tpu.matmul %1, %139, %cst_78 {dimension_numbers = #tpu.dot_dimension_numbers<[1], [0], [0], [1], [0, 0, 1, 1], [], []>} : vector<8x32xbf16>, vector<32x64xbf16>, vector<8x64xf32> -> vector<8x64xf32>
    %141 = arith.truncf %138 : vector<8x32xf32> to vector<8x32xbf16>
    %c0_79 = arith.constant 0 : index
    %c0_80 = arith.constant 0 : index
    %142 = vector.load %arg14[%c0_79, %c0_80] : memref<32x64xbf16, #tpu.memory_space<vmem>>, vector<32x64xbf16>
    %cst_81 = arith.constant dense<0.000000e+00> : vector<8x64xf32>
    %143 = tpu.matmul %141, %142, %cst_81 {dimension_numbers = #tpu.dot_dimension_numbers<[1], [0], [0], [1], [0, 0, 1, 1], [], []>} : vector<8x32xbf16>, vector<32x64xbf16>, vector<8x64xf32> -> vector<8x64xf32>
    %144 = arith.addf %140, %143 : vector<8x64xf32>
    %cst_82 = arith.constant 0.000000e+00 : f32
    %145 = vector.broadcast %cst_82 : f32 to vector<8x64xf32>
    %146 = arith.maximumf %144, %145 : vector<8x64xf32>
    %147 = arith.truncf %146 : vector<8x64xf32> to vector<8x64xbf16>
    %c0_83 = arith.constant 0 : index
    %c0_84 = arith.constant 0 : index
    %148 = vector.load %arg15[%c0_83, %c0_84] : memref<64x32xbf16, #tpu.memory_space<vmem>>, vector<64x32xbf16>
    %cst_85 = arith.constant dense<0.000000e+00> : vector<8x32xf32>
    %149 = tpu.matmul %147, %148, %cst_85 {dimension_numbers = #tpu.dot_dimension_numbers<[1], [0], [0], [1], [0, 0, 1, 1], [], []>} : vector<8x64xbf16>, vector<64x32xbf16>, vector<8x32xf32> -> vector<8x32xf32>
    %cst_86 = arith.constant dense<0.000000e+00> : vector<8xf32>
    %150 = vector.multi_reduction <add>, %149, %cst_86 [1] : vector<8x32xf32> to vector<8xf32>
    %151 = vector.shape_cast %150 : vector<8xf32> to vector<8x1xf32>
    %cst_87 = arith.constant 3.200000e+01 : f32
    %152 = vector.broadcast %cst_87 : f32 to vector<8x1xf32>
    %153 = arith.divf %151, %152 : vector<8x1xf32>
    %154 = vector.broadcast %153 : vector<8x1xf32> to vector<8x32xf32>
    %155 = arith.subf %149, %154 : vector<8x32xf32>
    %156 = arith.mulf %155, %155 : vector<8x32xf32>
    %cst_88 = arith.constant dense<0.000000e+00> : vector<8xf32>
    %157 = vector.multi_reduction <add>, %156, %cst_88 [1] : vector<8x32xf32> to vector<8xf32>
    %158 = vector.shape_cast %157 : vector<8xf32> to vector<8x1xf32>
    %cst_89 = arith.constant 3.200000e+01 : f32
    %159 = vector.broadcast %cst_89 : f32 to vector<8x1xf32>
    %160 = arith.divf %158, %159 : vector<8x1xf32>
    %161 = vector.broadcast %153 : vector<8x1xf32> to vector<8x32xf32>
    %162 = arith.subf %149, %161 : vector<8x32xf32>
    %cst_90 = arith.constant 9.99999974E-6 : f32
    %163 = vector.broadcast %cst_90 : f32 to vector<8x1xf32>
    %164 = arith.addf %160, %163 : vector<8x1xf32>
    %165 = math.rsqrt %164 : vector<8x1xf32>
    %166 = vector.broadcast %165 : vector<8x1xf32> to vector<8x32xf32>
    %167 = arith.mulf %162, %166 : vector<8x32xf32>
    %c0_91 = arith.constant 0 : index
    %c0_92 = arith.constant 0 : index
    %168 = vector.load %arg16[%c0_91, %c0_92] : memref<1x32xf32, #tpu.memory_space<vmem>>, vector<1x32xf32>
    %169 = vector.broadcast %168 : vector<1x32xf32> to vector<8x32xf32>
    %170 = arith.mulf %167, %169 : vector<8x32xf32>
    %c0_93 = arith.constant 0 : index
    %c0_94 = arith.constant 0 : index
    %171 = vector.load %arg17[%c0_93, %c0_94] : memref<1x32xf32, #tpu.memory_space<vmem>>, vector<1x32xf32>
    %172 = vector.broadcast %171 : vector<1x32xf32> to vector<8x32xf32>
    %173 = arith.addf %170, %172 : vector<8x32xf32>
    %174 = arith.addf %88, %173 : vector<8x32xf32>
    %cst_95 = arith.constant 5.000000e-01 : f32
    %175 = vector.broadcast %cst_95 : f32 to vector<8x32xf32>
    %176 = arith.mulf %175, %174 : vector<8x32xf32>
    %177 = arith.addf %2, %176 : vector<8x32xf32>
    %c0_96 = arith.constant 0 : index
    %c0_97 = arith.constant 0 : index
    %c0_98 = arith.constant 0 : index
    %178 = vector.load %arg18[%c0_96, %c0_97, %c0_98] : memref<1x8x32xf32, #tpu.memory_space<vmem>>, vector<1x8x32xf32>
    %179 = vector.shape_cast %178 : vector<1x8x32xf32> to vector<8x32xf32>
    %180 = vector.shape_cast %177 : vector<8x32xf32> to vector<1x8x32xf32>
    tpu.vector_store %arg18[%c0_96, %c0_97, %c0_98], %180 {strides = array<i32>} : memref<1x8x32xf32, #tpu.memory_space<vmem>>, vector<1x8x32xf32>,
    return
  }
  func.func @transform_0(%arg0: i32, %arg1: i32) -> (i32, i32, i32) {
    %c0_i32 = arith.constant 0 : i32
    %c0_i32_0 = arith.constant 0 : i32
    return %arg0, %arg1, %c0_i32 : i32, i32, i32
  }
  func.func @transform_1(%arg0: i32, %arg1: i32) -> (i32, i32, i32) {
    %c0_i32 = arith.constant 0 : i32
    %c0_i32_0 = arith.constant 0 : i32
    return %arg0, %arg1, %c0_i32 : i32, i32, i32
  }
  func.func @transform_2(%arg0: i32, %arg1: i32) -> (i32, i32, i32) {
    %c0_i32 = arith.constant 0 : i32
    %c0_i32_0 = arith.constant 0 : i32
    return %arg0, %arg1, %c0_i32 : i32, i32, i32
  }
  func.func @transform_3(%arg0: i32, %arg1: i32) -> (i32, i32, i32) {
    %c0_i32 = arith.constant 0 : i32
    %c0_i32_0 = arith.constant 0 : i32
    %c0_i32_1 = arith.constant 0 : i32
    return %arg0, %c0_i32, %c0_i32_0 : i32, i32, i32
  }
  func.func @transform_4(%arg0: i32, %arg1: i32) -> (i32, i32, i32) {
    %c0_i32 = arith.constant 0 : i32
    %c0_i32_0 = arith.constant 0 : i32
    %c0_i32_1 = arith.constant 0 : i32
    return %arg0, %c0_i32, %c0_i32_0 : i32, i32, i32
  }
  func.func @transform_5(%arg0: i32, %arg1: i32) -> (i32, i32, i32) {
    %c0_i32 = arith.constant 0 : i32
    %c0_i32_0 = arith.constant 0 : i32
    %c0_i32_1 = arith.constant 0 : i32
    return %arg0, %c0_i32, %c0_i32_0 : i32, i32, i32
  }
  func.func @transform_6(%arg0: i32, %arg1: i32) -> (i32, i32, i32) {
    %c0_i32 = arith.constant 0 : i32
    %c0_i32_0 = arith.constant 0 : i32
    %c0_i32_1 = arith.constant 0 : i32
    return %arg0, %c0_i32, %c0_i32_0 : i32, i32, i32
  }
  func.func @transform_7(%arg0: i32, %arg1: i32) -> (i32, i32) {
    %c0_i32 = arith.constant 0 : i32
    %c0_i32_0 = arith.constant 0 : i32
    %c0_i32_1 = arith.constant 0 : i32
    return %c0_i32, %c0_i32_0 : i32, i32
  }
  func.func @transform_8(%arg0: i32, %arg1: i32) -> (i32, i32) {
    %c0_i32 = arith.constant 0 : i32
    %c0_i32_0 = arith.constant 0 : i32
    %c0_i32_1 = arith.constant 0 : i32
    return %c0_i32, %c0_i32_0 : i32, i32
  }
  func.func @transform_9(%arg0: i32, %arg1: i32) -> (i32, i32) {
    %c0_i32 = arith.constant 0 : i32
    %c0_i32_0 = arith.constant 0 : i32
    %c0_i32_1 = arith.constant 0 : i32
    return %c0_i32, %c0_i32_0 : i32, i32
  }
  func.func @transform_10(%arg0: i32, %arg1: i32) -> (i32, i32) {
    %c0_i32 = arith.constant 0 : i32
    %c0_i32_0 = arith.constant 0 : i32
    %c0_i32_1 = arith.constant 0 : i32
    return %c0_i32, %c0_i32_0 : i32, i32
  }
  func.func @transform_11(%arg0: i32, %arg1: i32) -> (i32, i32) {
    %c0_i32 = arith.constant 0 : i32
    %c0_i32_0 = arith.constant 0 : i32
    %c0_i32_1 = arith.constant 0 : i32
    return %c0_i32, %c0_i32_0 : i32, i32
  }
  func.func @transform_12(%arg0: i32, %arg1: i32) -> (i32, i32) {
    %c0_i32 = arith.constant 0 : i32
    %c0_i32_0 = arith.constant 0 : i32
    %c0_i32_1 = arith.constant 0 : i32
    return %c0_i32, %c0_i32_0 : i32, i32
  }
  func.func @transform_13(%arg0: i32, %arg1: i32) -> (i32, i32) {
    %c0_i32 = arith.constant 0 : i32
    %c0_i32_0 = arith.constant 0 : i32
    %c0_i32_1 = arith.constant 0 : i32
    return %c0_i32, %c0_i32_0 : i32, i32
  }
  func.func @transform_14(%arg0: i32, %arg1: i32) -> (i32, i32) {
    %c0_i32 = arith.constant 0 : i32
    %c0_i32_0 = arith.constant 0 : i32
    %c0_i32_1 = arith.constant 0 : i32
    return %c0_i32, %c0_i32_0 : i32, i32
  }
  func.func @transform_15(%arg0: i32, %arg1: i32) -> (i32, i32) {
    %c0_i32 = arith.constant 0 : i32
    %c0_i32_0 = arith.constant 0 : i32
    %c0_i32_1 = arith.constant 0 : i32
    return %c0_i32, %c0_i32_0 : i32, i32
  }
  func.func @transform_16(%arg0: i32, %arg1: i32) -> (i32, i32, i32) {
    %c0_i32 = arith.constant 0 : i32
    %c0_i32_0 = arith.constant 0 : i32
    return %arg0, %arg1, %c0_i32 : i32, i32, i32
  }
}

</mosaic_0001>

<llo_original>
// kernel: loftr_encoder_layer.8
$region0: #{loftr_encoder_layer.8}
  #allocation0 [shape = 'u32[]', space=smem, size = 0x4, offset = 0x4, fixed_abs, tag = 'smem constant byte address 0x4 - core index']
  #allocation1 [shape = 'u32[72,128]{1,0:T(1,128)}', space=vmem, size = 0x9000, scoped, tag = 'internal scratch']
  %s0 = inlined_call_operand.vmem [shape: bf16[2,16,32], index: 0, kind: input, shape index: {}]
  %s1 = inlined_call_operand.vmem [shape: bf16[32,64], index: 1, kind: input, shape index: {}]
  %s2 = inlined_call_operand.vmem [shape: bf16[2,16,32], index: 2, kind: output, shape index: {0}]
  %s3 = inlined_call_operand.vmem [shape: bf16[2,16,32], index: 3, kind: output, shape index: {1}]
  %4 = xla_tuple %s2, %s3
  %s5 = sld [smem:[#allocation0]]
  $region49: #{loftr_encoder_layer.8} parent=0
    _
  %s7 = ssub.s32 1, %s5
  %s8 = scalar_select 0, %s7, %s5
  loop: start=0, step=1, limit=4
  $region2: #{loftr_encoder_layer.8} parent=0 // loop_pre_header
    _
  $region3: #{loftr_encoder_layer.8} parent=0 // loop_header
    %s10 = sphi 0, %s14
    %p11 = scmp.ge.s32.totalorder %s10, 4
    %s17 = sphi 0, %s29
    %s18 = sphi 0, %s25
    %s19 = sphi 0, %s17
    %s20 = sphi 0, %s18
    %s21 = sphi 0, %s19
    %s22 = sphi 0, %s20
    %s34 = sphi 0, %s36
    %s37 = sphi 0, %s34
    %s38 = sphi 0, %s37
    %s54 = sphi 0, %s38
    %s58 = sphi 0, %s58
    %s60 = sphi 0, %s58
    %s61 = sphi 0, %s60
    %s75 = sphi 0, %s61
    %s83 = sphi 0, %s85
    %s86 = sphi 0, %s83
    %s87 = sphi 0, %s86
    %s103 = sphi 0, %s87
    %s111 = sphi 0, %s113
    %s114 = sphi 0, %s111
    %s115 = sphi 0, %s114
    %s131 = sphi 0, %s115
  $region4: #{loftr_encoder_layer.8} parent=0 // loop_header_branch
    %13 = sbr.rel (%p11) target = $region8
  $region5: #{loftr_encoder_layer.8} parent=0 // loop_body
    %s15 = ssub.s32 %s10, 1
    %s16 = ssub.s32 %s10, 2
    %s23 = sadd.s32 1, %s18
    %p24 = scmp.ge.s32.totalorder %s23, 1
    %s25 = scalar_select %p24, 0, %s23
    %s26 = sadd.s32 1, %s17
    %s27 = scalar_select %p24, %s26, %s17
    %p28 = scmp.ge.s32.totalorder %s27, 2
    %s29 = scalar_select %p28, 0, %s27
    %s30 = ssub.s32 %s17, %s29
    %s31 = ssub.s32 %s18, %s25
    %s32 = sor.u32 %s30, %s31
    %p33 = scmp.eq.s32.totalorder %s32, 0
    %s35 = sadd.s32 %s34, 1
    %s36 = scalar_select %p33, %s34, %s35
    %p39 = pneg %p33
    %p40 = scmp.eq.s32.totalorder %s10, 1
    %p41 = por %p39, %p40
    %p42 = scmp.ne.s32.totalorder %s34, %s37
    %p43 = scmp.eq.s32.totalorder %s10, 0
    %p44 = por %p42, %p43
    %p45 = scmp.ne.s32.totalorder %s34, %s37
    %p46 = scmp.eq.s32.totalorder %s15, 1
    %p47 = por %p45, %p46
    %p48 = scmp.ne.s32.totalorder %s37, %s38
    %p49 = scmp.eq.s32.totalorder %s15, 0
    %p50 = por %p48, %p49
    %p51 = scmp.ne.s32.totalorder %s37, %s38
    %p52 = scmp.eq.s32.totalorder %s16, 1
    %p53 = por %p51, %p52
    %p55 = scmp.ne.s32.totalorder %s38, %s54
    %p56 = scmp.eq.s32.totalorder %s16, 0
    %p57 = por %p55, %p56
    %s59 = sadd.s32 %s58, 1
    %p62 = scmp.eq.s32.totalorder %s10, 1
    %p63 = scmp.ne.s32.totalorder %s58, %s60
    %p64 = scmp.eq.s32.totalorder %s10, 0
    %p65 = por %p63, %p64
    %p66 = scmp.ne.s32.totalorder %s58, %s60
    %p67 = scmp.eq.s32.totalorder %s15, 1
    %p68 = por %p66, %p67
    %p69 = scmp.ne.s32.totalorder %s60, %s61
    %p70 = scmp.eq.s32.totalorder %s15, 0
    %p71 = por %p69, %p70
    %p72 = scmp.ne.s32.totalorder %s60, %s61
    %p73 = scmp.eq.s32.totalorder %s16, 1
    %p74 = por %p72, %p73
    %p76 = scmp.ne.s32.totalorder %s61, %s75
    %p77 = scmp.eq.s32.totalorder %s16, 0
    %p78 = por %p76, %p77
    %s79 = ssub.s32 %s17, %s29
    %s80 = ssub.s32 %s18, %s25
    %s81 = sor.u32 %s79, %s80
    %p82 = scmp.eq.s32.totalorder %s81, 0
    %s84 = sadd.s32 %s83, 1
    %s85 = scalar_select %p82, %s83, %s84
    %p88 = pneg %p82
    %p89 = scmp.eq.s32.totalorder %s10, 1
    %p90 = por %p88, %p89
    %p91 = scmp.ne.s32.totalorder %s83, %s86
    %p92 = scmp.eq.s32.totalorder %s10, 0
    %p93 = por %p91, %p92
    %p94 = scmp.ne.s32.totalorder %s83, %s86
    %p95 = scmp.eq.s32.totalorder %s15, 1
    %p96 = por %p94, %p95
    %p97 = scmp.ne.s32.totalorder %s86, %s87
    %p98 = scmp.eq.s32.totalorder %s15, 0
    %p99 = por %p97, %p98
    %p100 = scmp.ne.s32.totalorder %s86, %s87
    %p101 = scmp.eq.s32.totalorder %s16, 1
    %p102 = por %p100, %p101
    %p104 = scmp.ne.s32.totalorder %s87, %s103
    %p105 = scmp.eq.s32.totalorder %s16, 0
    %p106 = por %p104, %p105
    %s107 = ssub.s32 %s17, %s29
    %s108 = ssub.s32 %s18, %s25
    %s109 = sor.u32 %s107, %s108
    %p110 = scmp.eq.s32.totalorder %s109, 0
    %s112 = sadd.s32 %s111, 1
    %s113 = scalar_select %p110, %s111, %s112
    %p116 = pneg %p110
    %p117 = scmp.eq.s32.totalorder %s10, 1
    %p118 = por %p116, %p117
    %p119 = scmp.ne.s32.totalorder %s111, %s114
    %p120 = scmp.eq.s32.totalorder %s10, 0
    %p121 = por %p119, %p120
    %p122 = scmp.ne.s32.totalorder %s111, %s114
    %p123 = scmp.eq.s32.totalorder %s15, 1
    %p124 = por %p122, %p123
    %p125 = scmp.ne.s32.totalorder %s114, %s115
    %p126 = scmp.eq.s32.totalorder %s15, 0
    %p127 = por %p125, %p126
    %p128 = scmp.ne.s32.totalorder %s114, %s115
    %p129 = scmp.eq.s32.totalorder %s16, 1
    %p130 = por %p128, %p129
    %p132 = scmp.ne.s32.totalorder %s115, %s131
    %p133 = scmp.eq.s32.totalorder %s16, 0
    %p134 = por %p132, %p133
    %p135 = scmp.le.s32.totalorder 1, %s10
    %p136 = scmp.lt.s32.totalorder %s10, 3
    %p137 = pnand %p135, %p136
    %p138 = pneg %p137
    // Predicated region
    $region9: #{loftr_encoder_layer.8} parent=5 // pred_check
      _
    $region10: #{loftr_encoder_layer.8} parent=5 // pred_check_branch
      %140 = sbr.rel (%p137) target = $region12
    $region11: #{loftr_encoder_layer.8} parent=5 // pred_region
      %s141 = ssub.s32 %s10, 1
      // Predicated region
      $region13: #{loftr_encoder_layer.8} parent=11 // pred_check
        %p142 = pneg %p71
      $region14: #{loftr_encoder_layer.8} parent=11 // pred_check_branch
        %144 = sbr.rel (%p142) target = $region16
      $region15: #{loftr_encoder_layer.8} parent=11 // pred_region
        _
      $region16: #{loftr_encoder_layer.8} parent=11 // pred_fallthru
        _
    $region12: #{loftr_encoder_layer.8} parent=5 // pred_fallthru
      _
    %p145 = scmp.lt.s32.totalorder %s10, 2
    // Predicated region
    $region17: #{loftr_encoder_layer.8} parent=5 // pred_check
      %p146 = pneg %p145
    $region18: #{loftr_encoder_layer.8} parent=5 // pred_check_branch
      %148 = sbr.rel (%p146) target = $region20
    $region19: #{loftr_encoder_layer.8} parent=5 // pred_region
      // Predicated region
      $region21: #{loftr_encoder_layer.8} parent=19 // pred_check
        %p149 = pneg %p44
      $region22: #{loftr_encoder_layer.8} parent=19 // pred_check_branch
        %151 = sbr.rel (%p149) target = $region24
      $region23: #{loftr_encoder_layer.8} parent=19 // pred_region
        %s152 = smul.u32 2, %s18
        %p153 = scmp.lt.s32.totalorder %s17, 1
        %s154 = scalar_select %p153, %s17, 1
        %p155 = scmp.lt.s32.totalorder %s152, 1
        %s156 = scalar_select %p155, %s152, 1
        %s157 = smul.addr %s154, 2
        %s158 = sadd.s32 %s156, %s157
        %s159 = smul.addr %s158, 4
        %s160 = scalar_lea.vmem %s0, %s159
        %s161 = smul.u32 2, %s18
      $region24: #{loftr_encoder_layer.8} parent=19 // pred_fallthru
        _
    $region20: #{loftr_encoder_layer.8} parent=5 // pred_fallthru
      _
    %p162 = scmp.le.s32.totalorder 1, %s10
    %p163 = scmp.lt.s32.totalorder %s10, 3
    %p164 = pnand %p162, %p163
    %p165 = pneg %p164
    // Predicated region
    $region25: #{loftr_encoder_layer.8} parent=5 // pred_check
      _
    $region26: #{loftr_encoder_layer.8} parent=5 // pred_check_branch
      %167 = sbr.rel (%p164) target = $region28
    $region27: #{loftr_encoder_layer.8} parent=5 // pred_region
      %s168 = ssub.s32 %s10, 1
      %s169 = smul.u32 2, %s20
      %p170 = scmp.lt.s32.totalorder %s19, 1
      %s171 = scalar_select %p170, %s19, 1
      %p172 = scmp.lt.s32.totalorder %s169, 1
      %s173 = scalar_select %p172, %s169, 1
      %s174 = smul.addr %s171, 2
      %s175 = sadd.s32 %s173, %s174
      %s176 = smul.addr %s175, 4
      %s177 = scalar_lea.vmem %s0, %s176
      %p178 = pneg %p50
      %p179 = pneg %p47
      %p180 = pneg %p71
      %p181 = pneg %p68
      %p182 = pneg %p99
      %p183 = pneg %p96
      %s184 = smul.u32 2, %s20
      %p185 = scmp.lt.s32.totalorder %s19, 1
      %s186 = scalar_select %p185, %s19, 1
      %p187 = scmp.lt.s32.totalorder %s184, 1
      %s188 = scalar_select %p187, %s184, 1
      %s189 = smul.addr %s186, 2
      %s190 = sadd.s32 %s188, %s189
      %s191 = smul.addr %s190, 4
      %s192 = scalar_lea.vmem %s2, %s191
      %p193 = pneg %p127
      %p194 = pneg %p124
      %s195 = smul.u32 2, %s20
      %p196 = scmp.lt.s32.totalorder %s19, 1
      %s197 = scalar_select %p196, %s19, 1
      %p198 = scmp.lt.s32.totalorder %s195, 1
      %s199 = scalar_select %p198, %s195, 1
      %s200 = smul.addr %s197, 2
      %s201 = sadd.s32 %s199, %s200
      %s202 = smul.addr %s201, 4
      %s203 = scalar_lea.vmem %s3, %s202
      %s204 = smul.u32 2, %s20
      %p205 = scmp.lt.s32.totalorder %s19, 1
      %s206 = scalar_select %p205, %s19, 1
      %p207 = scmp.lt.s32.totalorder %s204, 1
      %s208 = scalar_select %p207, %s204, 1
      %s209 = smul.addr %s206, 2
      %s210 = sadd.s32 %s208, %s209
      %s211 = smul.addr %s210, 4
      %s212 = scalar_lea.vmem %s0, %s211
      %s213 = smul.u32 2, %s20
      %s214 = smul.u32 2, %s20
      %p215 = scmp.lt.s32.totalorder %s19, 1
      %s216 = scalar_select %p215, %s19, 1
      %p217 = scmp.lt.s32.totalorder %s214, 1
      %s218 = scalar_select %p217, %s214, 1
      %s219 = smul.addr %s216, 2
      %s220 = sadd.s32 %s218, %s219
      %s221 = smul.addr %s220, 4
      %s222 = scalar_lea.vmem %s2, %s221
      %s223 = smul.u32 2, %s20
      %s224 = smul.u32 2, %s20
      %p225 = scmp.lt.s32.totalorder %s19, 1
      %s226 = scalar_select %p225, %s19, 1
      %p227 = scmp.lt.s32.totalorder %s224, 1
      %s228 = scalar_select %p227, %s224, 1
      %s229 = smul.addr %s226, 2
      %s230 = sadd.s32 %s228, %s229
      %s231 = smul.addr %s230, 4
      %s232 = scalar_lea.vmem %s3, %s231
      %s233 = smul.u32 2, %s20
      %v235 = vld [vmem:[%s212] sm:$0xf]
      %v236 = vld [vmem:[%s212 + $0x4] sm:$0xf]
      %v237 = vld [vmem:[%s1] sm:$0xf]
      %v238 = vld [vmem:[%s1 + $0x4] sm:$0xf]
      %v239 = vld [vmem:[%s1 + $0x8] sm:$0xf]
      %v240 = vld [vmem:[%s1 + $0xc] sm:$0xf]
      %v243 = vunpack.c.l.b16 %v235
      %v244 = vunpack.c.l.b16 %v236
      %v245 = vpack.c.b16 %v244, %v243
      %v250 = vunpack.c.l.b16 %v237
      %v251 = vunpack.c.l.b16 %v238
      %v252 = vunpack.c.l.b16 %v239
      %v253 = vunpack.c.l.b16 %v240
      %v254 = vpack.c.b16 %v251, %v250
      %v255 = vpack.c.b16 %v253, %v252
      %vm258 = vcmask 261120
      %v260 = vsel %vm258, %v245, 0
      %262 = vmatpush.bf16.msra.mxu0 0
      %263 = vmatpush.bf16.msra.mxu0 0
      %264 = vmatpush.bf16.msra.mxu0 0
      %265 = vmatpush.bf16.msra.mxu0 0
      %266 = vmatpush.bf16.msra.mxu0 0
      %267 = vmatpush.bf16.msra.mxu0 0
      %268 = vmatpush.bf16.msra.mxu0 %v255
      %269 = vmatpush.bf16.msra.mxu0 %v254
      %270 = vmatmul.bf16.gmra.mxu0 %v260
      %v271 = vpop.f32.mrf.mxu0
      %v272 = vadd.f32 0.0, %v271
      %v273 = vpop.f32.mrf.mxu0
      %v274 = vadd.f32 0.0, %v273
      %275 = vdwg.mxu0
      %v276 = vpack.c.bf16 %v272, %v272
      %v277 = vpack.c.bf16 %v274, %v274
      %vm278 = vcmask 257024
      %279 = vst.msk [vmem:[%s222] sm:$0xf] %vm278, %v276
      %280 = vst.msk [vmem:[%s222 + $0x4] sm:$0xf] %vm278, %v277
      %283 = vrot.lane.b32.xlu0 %v276, 96
      %v284 = vpop.permute.xlu0 %283
      %285 = vrot.lane.b32.xlu0 %v277, 96
      %v286 = vpop.permute.xlu0 %285
      %289 = vst.msk [vmem:[%s232] sm:$0xf] %vm278, %v284
      %290 = vst.msk [vmem:[%s232 + $0x4] sm:$0xf] %vm278, %v286
      %s291 = smul.u32 2, %s20
      %p292 = scmp.lt.s32.totalorder %s19, 1
      %s293 = scalar_select %p292, %s19, 1
      %p294 = scmp.lt.s32.totalorder %s291, 1
      %s295 = scalar_select %p294, %s291, 1
      %s296 = smul.addr %s293, 2
      %s297 = sadd.s32 %s295, %s296
      %s298 = smul.addr %s297, 4
      %s299 = scalar_lea.vmem %s2, %s298
      %s300 = smul.u32 2, %s20
      %p301 = scmp.lt.s32.totalorder %s19, 1
      %s302 = scalar_select %p301, %s19, 1
      %p303 = scmp.lt.s32.totalorder %s300, 1
      %s304 = scalar_select %p303, %s300, 1
      %s305 = smul.addr %s302, 2
      %s306 = sadd.s32 %s304, %s305
      %s307 = smul.addr %s306, 4
      %s308 = scalar_lea.vmem %s3, %s307
      // Predicated region
      $region29: #{loftr_encoder_layer.8} parent=27 // pred_check
        %p309 = pneg %p96
      $region30: #{loftr_encoder_layer.8} parent=27 // pred_check_branch
        %311 = sbr.rel (%p309) target = $region32
      $region31: #{loftr_encoder_layer.8} parent=27 // pred_region
        %s312 = smul.u32 2, %s20
      $region32: #{loftr_encoder_layer.8} parent=27 // pred_fallthru
        _
      // Predicated region
      $region33: #{loftr_encoder_layer.8} parent=27 // pred_check
        %p313 = pneg %p124
      $region34: #{loftr_encoder_layer.8} parent=27 // pred_check_branch
        %315 = sbr.rel (%p313) target = $region36
      $region35: #{loftr_encoder_layer.8} parent=27 // pred_region
        %s316 = smul.u32 2, %s20
      $region36: #{loftr_encoder_layer.8} parent=27 // pred_fallthru
        _
    $region28: #{loftr_encoder_layer.8} parent=5 // pred_fallthru
      _
    %p317 = scmp.le.s32.totalorder 2, %s10
    // Predicated region
    $region37: #{loftr_encoder_layer.8} parent=5 // pred_check
      %p318 = pneg %p317
    $region38: #{loftr_encoder_layer.8} parent=5 // pred_check_branch
      %320 = sbr.rel (%p318) target = $region40
    $region39: #{loftr_encoder_layer.8} parent=5 // pred_region
      %s321 = ssub.s32 %s10, 2
      // Predicated region
      $region41: #{loftr_encoder_layer.8} parent=39 // pred_check
        %p322 = pneg %p102
      $region42: #{loftr_encoder_layer.8} parent=39 // pred_check_branch
        %324 = sbr.rel (%p322) target = $region44
      $region43: #{loftr_encoder_layer.8} parent=39 // pred_region
        %s325 = smul.u32 2, %s22
        %p326 = scmp.lt.s32.totalorder %s21, 1
        %s327 = scalar_select %p326, %s21, 1
        %p328 = scmp.lt.s32.totalorder %s325, 1
        %s329 = scalar_select %p328, %s325, 1
        %s330 = smul.addr %s327, 2
        %s331 = sadd.s32 %s329, %s330
        %s332 = smul.addr %s331, 4
        %s333 = scalar_lea.vmem %s2, %s332
      $region44: #{loftr_encoder_layer.8} parent=39 // pred_fallthru
        _
      // Predicated region
      $region45: #{loftr_encoder_layer.8} parent=39 // pred_check
        %p334 = pneg %p130
      $region46: #{loftr_encoder_layer.8} parent=39 // pred_check_branch
        %336 = sbr.rel (%p334) target = $region48
      $region47: #{loftr_encoder_layer.8} parent=39 // pred_region
        %s337 = smul.u32 2, %s22
        %p338 = scmp.lt.s32.totalorder %s21, 1
        %s339 = scalar_select %p338, %s21, 1
        %p340 = scmp.lt.s32.totalorder %s337, 1
        %s341 = scalar_select %p340, %s337, 1
        %s342 = smul.addr %s339, 2
        %s343 = sadd.s32 %s341, %s342
        %s344 = smul.addr %s343, 4
        %s345 = scalar_lea.vmem %s3, %s344
      $region48: #{loftr_encoder_layer.8} parent=39 // pred_fallthru
        _
    $region40: #{loftr_encoder_layer.8} parent=5 // pred_fallthru
      _
  $region6: #{loftr_encoder_layer.8} parent=0 // loop_footer
    %s14 = sadd.s32 1, %s10
  $region7: #{loftr_encoder_layer.8} parent=0 // loop_footer_branch
    %9 = sbr.rel target = $region3
  $region8: #{loftr_encoder_layer.8} parent=0 // loop_exit
    _

// kernel: loftr_encoder_layer.9
$region0: #{loftr_encoder_layer.9}
  #allocation0 [shape = 'u32[]', space=smem, size = 0x4, offset = 0x4, fixed_abs, tag = 'smem constant byte address 0x4 - core index']
  #allocation1 [shape = 'u32[72,128]{1,0:T(1,128)}', space=vmem, size = 0x9000, scoped, tag = 'internal scratch']
  %s0 = inlined_call_operand.vmem [shape: bf16[2,16,32], index: 0, kind: input, shape index: {}]
  %s1 = inlined_call_operand.vmem [shape: bf16[2,16,32], index: 1, kind: input, shape index: {}]
  %s2 = inlined_call_operand.vmem [shape: f32[2,32,32], index: 2, kind: output, shape index: {0}]
  %s3 = inlined_call_operand.vmem [shape: f32[2,1,32], index: 3, kind: output, shape index: {1}]
  %4 = xla_tuple %s2, %s3
  %s5 = sld [smem:[#allocation0]]
  $region53: #{loftr_encoder_layer.9} parent=0
    _
  %s7 = ssub.s32 1, %s5
  %s8 = scalar_select 0, %s7, %s5
  loop: start=0, step=1, limit=4
  $region2: #{loftr_encoder_layer.9} parent=0 // loop_pre_header
    _
  $region3: #{loftr_encoder_layer.9} parent=0 // loop_header
    %s10 = sphi 0, %s14
    %p11 = scmp.ge.s32.totalorder %s10, 4
    %s17 = sphi 0, %s29
    %s18 = sphi 0, %s25
    %s19 = sphi 0, %s17
    %s20 = sphi 0, %s18
    %s21 = sphi 0, %s19
    %s22 = sphi 0, %s20
    %s34 = sphi 0, %s36
    %s37 = sphi 0, %s34
    %s38 = sphi 0, %s37
    %s54 = sphi 0, %s38
    %s62 = sphi 0, %s64
    %s65 = sphi 0, %s62
    %s66 = sphi 0, %s65
    %s82 = sphi 0, %s66
    %s88 = sphi 0, %s90
    %s91 = sphi 0, %s88
    %s92 = sphi 0, %s91
    %s108 = sphi 0, %s92
    %s114 = sphi 0, %s116
    %s117 = sphi 0, %s114
    %s118 = sphi 0, %s117
    %s134 = sphi 0, %s118
  $region4: #{loftr_encoder_layer.9} parent=0 // loop_header_branch
    %13 = sbr.rel (%p11) target = $region8
  $region5: #{loftr_encoder_layer.9} parent=0 // loop_body
    %s15 = ssub.s32 %s10, 1
    %s16 = ssub.s32 %s10, 2
    %s23 = sadd.s32 1, %s18
    %p24 = scmp.ge.s32.totalorder %s23, 1
    %s25 = scalar_select %p24, 0, %s23
    %s26 = sadd.s32 1, %s17
    %s27 = scalar_select %p24, %s26, %s17
    %p28 = scmp.ge.s32.totalorder %s27, 2
    %s29 = scalar_select %p28, 0, %s27
    %s30 = ssub.s32 %s17, %s29
    %s31 = ssub.s32 %s18, %s25
    %s32 = sor.u32 %s30, %s31
    %p33 = scmp.eq.s32.totalorder %s32, 0
    %s35 = sadd.s32 %s34, 1
    %s36 = scalar_select %p33, %s34, %s35
    %p39 = pneg %p33
    %p40 = scmp.eq.s32.totalorder %s10, 1
    %p41 = por %p39, %p40
    %p42 = scmp.ne.s32.totalorder %s34, %s37
    %p43 = scmp.eq.s32.totalorder %s10, 0
    %p44 = por %p42, %p43
    %p45 = scmp.ne.s32.totalorder %s34, %s37
    %p46 = scmp.eq.s32.totalorder %s15, 1
    %p47 = por %p45, %p46
    %p48 = scmp.ne.s32.totalorder %s37, %s38
    %p49 = scmp.eq.s32.totalorder %s15, 0
    %p50 = por %p48, %p49
    %p51 = scmp.ne.s32.totalorder %s37, %s38
    %p52 = scmp.eq.s32.totalorder %s16, 1
    %p53 = por %p51, %p52
    %p55 = scmp.ne.s32.totalorder %s38, %s54
    %p56 = scmp.eq.s32.totalorder %s16, 0
    %p57 = por %p55, %p56
    %s58 = ssub.s32 %s17, %s29
    %s59 = ssub.s32 %s18, %s25
    %s60 = sor.u32 %s58, %s59
    %p61 = scmp.eq.s32.totalorder %s60, 0
    %s63 = sadd.s32 %s62, 1
    %s64 = scalar_select %p61, %s62, %s63
    %p67 = pneg %p61
    %p68 = scmp.eq.s32.totalorder %s10, 1
    %p69 = por %p67, %p68
    %p70 = scmp.ne.s32.totalorder %s62, %s65
    %p71 = scmp.eq.s32.totalorder %s10, 0
    %p72 = por %p70, %p71
    %p73 = scmp.ne.s32.totalorder %s62, %s65
    %p74 = scmp.eq.s32.totalorder %s15, 1
    %p75 = por %p73, %p74
    %p76 = scmp.ne.s32.totalorder %s65, %s66
    %p77 = scmp.eq.s32.totalorder %s15, 0
    %p78 = por %p76, %p77
    %p79 = scmp.ne.s32.totalorder %s65, %s66
    %p80 = scmp.eq.s32.totalorder %s16, 1
    %p81 = por %p79, %p80
    %p83 = scmp.ne.s32.totalorder %s66, %s82
    %p84 = scmp.eq.s32.totalorder %s16, 0
    %p85 = por %p83, %p84
    %s86 = ssub.s32 %s17, %s29
    %p87 = scmp.eq.s32.totalorder %s86, 0
    %s89 = sadd.s32 %s88, 1
    %s90 = scalar_select %p87, %s88, %s89
    %p93 = pneg %p87
    %p94 = scmp.eq.s32.totalorder %s10, 1
    %p95 = por %p93, %p94
    %p96 = scmp.ne.s32.totalorder %s88, %s91
    %p97 = scmp.eq.s32.totalorder %s10, 0
    %p98 = por %p96, %p97
    %p99 = scmp.ne.s32.totalorder %s88, %s91
    %p100 = scmp.eq.s32.totalorder %s15, 1
    %p101 = por %p99, %p100
    %p102 = scmp.ne.s32.totalorder %s91, %s92
    %p103 = scmp.eq.s32.totalorder %s15, 0
    %p104 = por %p102, %p103
    %p105 = scmp.ne.s32.totalorder %s91, %s92
    %p106 = scmp.eq.s32.totalorder %s16, 1
    %p107 = por %p105, %p106
    %p109 = scmp.ne.s32.totalorder %s92, %s108
    %p110 = scmp.eq.s32.totalorder %s16, 0
    %p111 = por %p109, %p110
    %s112 = ssub.s32 %s17, %s29
    %p113 = scmp.eq.s32.totalorder %s112, 0
    %s115 = sadd.s32 %s114, 1
    %s116 = scalar_select %p113, %s114, %s115
    %p119 = pneg %p113
    %p120 = scmp.eq.s32.totalorder %s10, 1
    %p121 = por %p119, %p120
    %p122 = scmp.ne.s32.totalorder %s114, %s117
    %p123 = scmp.eq.s32.totalorder %s10, 0
    %p124 = por %p122, %p123
    %p125 = scmp.ne.s32.totalorder %s114, %s117
    %p126 = scmp.eq.s32.totalorder %s15, 1
    %p127 = por %p125, %p126
    %p128 = scmp.ne.s32.totalorder %s117, %s118
    %p129 = scmp.eq.s32.totalorder %s15, 0
    %p130 = por %p128, %p129
    %p131 = scmp.ne.s32.totalorder %s117, %s118
    %p132 = scmp.eq.s32.totalorder %s16, 1
    %p133 = por %p131, %p132
    %p135 = scmp.ne.s32.totalorder %s118, %s134
    %p136 = scmp.eq.s32.totalorder %s16, 0
    %p137 = por %p135, %p136
    %p138 = scmp.le.s32.totalorder 1, %s10
    %p139 = scmp.lt.s32.totalorder %s10, 3
    %p140 = pnand %p138, %p139
    %p141 = pneg %p140
    // Predicated region
    $region9: #{loftr_encoder_layer.9} parent=5 // pred_check
      _
    $region10: #{loftr_encoder_layer.9} parent=5 // pred_check_branch
      %143 = sbr.rel (%p140) target = $region12
    $region11: #{loftr_encoder_layer.9} parent=5 // pred_region
      %s144 = ssub.s32 %s10, 1
    $region12: #{loftr_encoder_layer.9} parent=5 // pred_fallthru
      _
    %p145 = scmp.lt.s32.totalorder %s10, 2
    // Predicated region
    $region13: #{loftr_encoder_layer.9} parent=5 // pred_check
      %p146 = pneg %p145
    $region14: #{loftr_encoder_layer.9} parent=5 // pred_check_branch
      %148 = sbr.rel (%p146) target = $region16
    $region15: #{loftr_encoder_layer.9} parent=5 // pred_region
      // Predicated region
      $region17: #{loftr_encoder_layer.9} parent=15 // pred_check
        %p149 = pneg %p44
      $region18: #{loftr_encoder_layer.9} parent=15 // pred_check_branch
        %151 = sbr.rel (%p149) target = $region20
      $region19: #{loftr_encoder_layer.9} parent=15 // pred_region
        %s152 = smul.u32 2, %s18
        %p153 = scmp.lt.s32.totalorder %s17, 1
        %s154 = scalar_select %p153, %s17, 1
        %p155 = scmp.lt.s32.totalorder %s152, 1
        %s156 = scalar_select %p155, %s152, 1
        %s157 = smul.addr %s154, 2
        %s158 = sadd.s32 %s156, %s157
        %s159 = smul.addr %s158, 4
        %s160 = scalar_lea.vmem %s0, %s159
        %s161 = smul.u32 2, %s18
      $region20: #{loftr_encoder_layer.9} parent=15 // pred_fallthru
        _
      // Predicated region
      $region21: #{loftr_encoder_layer.9} parent=15 // pred_check
        %p162 = pneg %p72
      $region22: #{loftr_encoder_layer.9} parent=15 // pred_check_branch
        %164 = sbr.rel (%p162) target = $region24
      $region23: #{loftr_encoder_layer.9} parent=15 // pred_region
        %s165 = smul.u32 2, %s18
        %p166 = scmp.lt.s32.totalorder %s17, 1
        %s167 = scalar_select %p166, %s17, 1
        %p168 = scmp.lt.s32.totalorder %s165, 1
        %s169 = scalar_select %p168, %s165, 1
        %s170 = smul.addr %s167, 2
        %s171 = sadd.s32 %s169, %s170
        %s172 = smul.addr %s171, 4
        %s173 = scalar_lea.vmem %s1, %s172
        %s174 = smul.u32 2, %s18
      $region24: #{loftr_encoder_layer.9} parent=15 // pred_fallthru
        _
    $region16: #{loftr_encoder_layer.9} parent=5 // pred_fallthru
      _
    %p175 = scmp.le.s32.totalorder 1, %s10
    %p176 = scmp.lt.s32.totalorder %s10, 3
    %p177 = pnand %p175, %p176
    %p178 = pneg %p177
    // Predicated region
    $region25: #{loftr_encoder_layer.9} parent=5 // pred_check
      _
    $region26: #{loftr_encoder_layer.9} parent=5 // pred_check_branch
      %180 = sbr.rel (%p177) target = $region28
    $region27: #{loftr_encoder_layer.9} parent=5 // pred_region
      %s181 = ssub.s32 %s10, 1
      %s182 = smul.u32 2, %s20
      %p183 = scmp.lt.s32.totalorder %s19, 1
      %s184 = scalar_select %p183, %s19, 1
      %p185 = scmp.lt.s32.totalorder %s182, 1
      %s186 = scalar_select %p185, %s182, 1
      %s187 = smul.addr %s184, 2
      %s188 = sadd.s32 %s186, %s187
      %s189 = smul.addr %s188, 4
      %s190 = scalar_lea.vmem %s0, %s189
      %p191 = pneg %p50
      %p192 = pneg %p47
      %s193 = smul.u32 2, %s20
      %p194 = scmp.lt.s32.totalorder %s19, 1
      %s195 = scalar_select %p194, %s19, 1
      %p196 = scmp.lt.s32.totalorder %s193, 1
      %s197 = scalar_select %p196, %s193, 1
      %s198 = smul.addr %s195, 2
      %s199 = sadd.s32 %s197, %s198
      %s200 = smul.addr %s199, 4
      %s201 = scalar_lea.vmem %s1, %s200
      %p202 = pneg %p78
      %p203 = pneg %p75
      %p204 = pneg %p104
      %p205 = pneg %p101
      %p206 = scmp.lt.s32.totalorder %s19, 1
      %s207 = scalar_select %p206, %s19, 1
      %s208 = smul.addr %s207, 4
      %s209 = smul.addr %s208, 8
      %s210 = scalar_lea.vmem %s2, %s209
      %p211 = pneg %p130
      %p212 = pneg %p127
      %p213 = scmp.lt.s32.totalorder %s19, 1
      %s214 = scalar_select %p213, %s19, 1
      %s215 = scalar_lea.vmem %s3, %s214
      %s216 = smul.u32 2, %s20
      %p217 = scmp.lt.s32.totalorder %s19, 1
      %s218 = scalar_select %p217, %s19, 1
      %p219 = scmp.lt.s32.totalorder %s216, 1
      %s220 = scalar_select %p219, %s216, 1
      %s221 = smul.addr %s218, 2
      %s222 = sadd.s32 %s220, %s221
      %s223 = smul.addr %s222, 4
      %s224 = scalar_lea.vmem %s0, %s223
      %s225 = smul.u32 2, %s20
      %s226 = smul.u32 2, %s20
      %p227 = scmp.lt.s32.totalorder %s19, 1
      %s228 = scalar_select %p227, %s19, 1
      %p229 = scmp.lt.s32.totalorder %s226, 1
      %s230 = scalar_select %p229, %s226, 1
      %s231 = smul.addr %s228, 2
      %s232 = sadd.s32 %s230, %s231
      %s233 = smul.addr %s232, 4
      %s234 = scalar_lea.vmem %s1, %s233
      %s235 = smul.u32 2, %s20
      %p236 = scmp.lt.s32.totalorder %s19, 1
      %s237 = scalar_select %p236, %s19, 1
      %s238 = smul.addr %s237, 4
      %s239 = smul.addr %s238, 8
      %s240 = scalar_lea.vmem %s2, %s239
      %p241 = scmp.lt.s32.totalorder %s19, 1
      %s242 = scalar_select %p241, %s19, 1
      %s243 = scalar_lea.vmem %s3, %s242
      %p245 = scmp.eq.s32.totalorder %s20, 0
      // Predicated region
      $region29: #{loftr_encoder_layer.9} parent=27 // pred_check
        %p246 = pneg %p245
      $region30: #{loftr_encoder_layer.9} parent=27 // pred_check_branch
        %248 = sbr.rel (%p246) target = $region32
      $region31: #{loftr_encoder_layer.9} parent=27 // pred_region
        %vm249 = vcmask 261120
        %250 = vst.msk [vmem:[%s240] sm:$0xff] %vm249, 0.0
        %251 = vst.msk [vmem:[%s240 + $0x8] sm:$0xff] %vm249, 0.0
        %252 = vst.msk [vmem:[%s240 + $0x10] sm:$0xff] %vm249, 0.0
        %253 = vst.msk [vmem:[%s240 + $0x18] sm:$0xff] %vm249, 0.0
        %vm254 = vcmask 253952
        %255 = vst.msk [vmem:[%s243] sm:$0x1] %vm254, 0.0
      $region32: #{loftr_encoder_layer.9} parent=27 // pred_fallthru
        _
      %v256 = vld [vmem:[%s224] sm:$0xf]
      %v257 = vld [vmem:[%s224 + $0x4] sm:$0xf]
      %v258 = vunpack.c.l.bf16 %v256
      %v259 = vunpack.c.l.bf16 %v257
      %vm260 = vcmp.gt.f32.partialorder %v258, 0.0
      %vm261 = vcmp.gt.f32.partialorder %v259, 0.0
      %v262 = vadd.f32 %v258, 1.0
      %v263 = vadd.f32 %v259, 1.0
      %v264 = vmin.f32 %v258, 0.0
      %v265 = vmin.f32 %v259, 0.0
      %v266 = vmul.f32 %v264, 1.442695
      %v267 = vpow.pop %v266
      %v268 = vmul.f32 %v265, 1.442695
      %v269 = vpow.pop %v268
      %v270 = vsel %vm260, %v262, %v267
      %v271 = vsel %vm261, %v263, %v269
      %v272 = vld [vmem:[%s240] sm:$0xff]
      %v273 = vld [vmem:[%s240 + $0x8] sm:$0xff]
      %v274 = vld [vmem:[%s240 + $0x10] sm:$0xff]
      %v275 = vld [vmem:[%s240 + $0x18] sm:$0xff]
      %v276 = vpack.c.bf16 %v271, %v270
      %v277 = vld [vmem:[%s234] sm:$0xf]
      %v278 = vld [vmem:[%s234 + $0x4] sm:$0xf]
      %279 = vxpose.xlu0.c.b16.start [1/8] %v276, 128
      %280 = vxpose.xlu0.c.b16.cont [2/8] 0, 128
      %281 = vxpose.xlu0.c.b16.cont [3/8] 0, 128
      %282 = vxpose.xlu0.c.b16.cont [4/8] 0, 128
      %283 = vxpose.xlu0.c.b16.cont [5/8] 0, 128
      %284 = vxpose.xlu0.c.b16.cont [6/8] 0, 128
      %285 = vxpose.xlu0.c.b16.cont [7/8] 0, 128
      %286 = vxpose.xlu0.c.b16.end [8/8] 0, 128
      %v287 = vpop.trf.xlu0
      %v288 = vpop.trf.xlu0
      %v289 = vpop.trf.xlu0
      %v290 = vpop.trf.xlu0
      %v291 = vpop.trf.xlu0
      %v292 = vpop.trf.xlu0
      %v293 = vpop.trf.xlu0
      %v294 = vpop.trf.xlu0
      %v297 = vunpack.c.l.b16 %v277
      %v298 = vunpack.c.l.b16 %v278
      %v299 = vpack.c.b16 %v298, %v297
      %vm301 = vcmask 130048
      %v303 = vsel %vm301, %v287, 0
      %v306 = vsel %vm301, %v288, 0
      %308 = vmatpush.bf16.msra.mxu0 0
      %309 = vmatpush.bf16.msra.mxu0 0
      %310 = vmatpush.bf16.msra.mxu0 0
      %311 = vmatpush.bf16.msra.mxu0 0
      %312 = vmatpush.bf16.msra.mxu0 0
      %313 = vmatpush.bf16.msra.mxu0 0
      %314 = vmatpush.bf16.msra.mxu0 0
      %315 = vmatpush.bf16.msra.mxu0 %v299
      %316 = vmatmul.bf16.gmra.mxu0 %v303
      %v317 = vpop.f32.mrf.mxu0
      %v318 = vadd.f32 0.0, %v317
      %v319 = vpop.f32.mrf.mxu0
      %v320 = vadd.f32 0.0, %v319
      %321 = vmatmul.bf16.gmra.mxu0 %v306
      %v322 = vpop.f32.mrf.mxu0
      %v323 = vadd.f32 0.0, %v322
      %v324 = vpop.f32.mrf.mxu0
      %v325 = vadd.f32 0.0, %v324
      %326 = vdwg.mxu0
      %v327 = vadd.f32 %v272, %v318
      %v328 = vadd.f32 %v273, %v320
      %v329 = vadd.f32 %v274, %v323
      %v330 = vadd.f32 %v275, %v325
      %vm331 = vcmask 261120
      %332 = vst.msk [vmem:[%s240] sm:$0xff] %vm331, %v327
      %333 = vst.msk [vmem:[%s240 + $0x8] sm:$0xff] %vm331, %v328
      %334 = vst.msk [vmem:[%s240 + $0x10] sm:$0xff] %vm331, %v329
      %335 = vst.msk [vmem:[%s240 + $0x18] sm:$0xff] %vm331, %v330
      %v336 = vld [vmem:[%s243] sm:$0x1]
      %v337 = vsel %vm331, %v270, 0.0
      %v338 = vsel %vm331, %v271, 0.0
      %v339 = vadd.f32 %v337, %v338
      %v340 = vrot.slane %v339, 4
      %v341 = vadd.f32 %v339, %v340
      %v342 = vrot.slane %v341, 2
      %v343 = vadd.f32 %v341, %v342
      %v344 = vrot.slane %v343, 1
      %v345 = vadd.f32 %v343, %v344
      %v346 = vadd.f32 %v336, %v345
      %vm347 = vcmask 253952
      %348 = vst.msk [vmem:[%s243] sm:$0x1] %vm347, %v346
      %p349 = scmp.lt.s32.totalorder %s19, 1
      %s350 = scalar_select %p349, %s19, 1
      %s351 = smul.addr %s350, 4
      %s352 = smul.addr %s351, 8
      %s353 = scalar_lea.vmem %s2, %s352
      %p354 = scmp.lt.s32.totalorder %s19, 1
      %s355 = scalar_select %p354, %s19, 1
      %s356 = scalar_lea.vmem %s3, %s355
      // Predicated region
      $region33: #{loftr_encoder_layer.9} parent=27 // pred_check
        %p357 = pneg %p101
      $region34: #{loftr_encoder_layer.9} parent=27 // pred_check_branch
        %359 = sbr.rel (%p357) target = $region36
      $region35: #{loftr_encoder_layer.9} parent=27 // pred_region
        _
      $region36: #{loftr_encoder_layer.9} parent=27 // pred_fallthru
        _
      // Predicated region
      $region37: #{loftr_encoder_layer.9} parent=27 // pred_check
        %p360 = pneg %p127
      $region38: #{loftr_encoder_layer.9} parent=27 // pred_check_branch
        %362 = sbr.rel (%p360) target = $region40
      $region39: #{loftr_encoder_layer.9} parent=27 // pred_region
        _
      $region40: #{loftr_encoder_layer.9} parent=27 // pred_fallthru
        _
    $region28: #{loftr_encoder_layer.9} parent=5 // pred_fallthru
      _
    %p363 = scmp.le.s32.totalorder 2, %s10
    // Predicated region
    $region41: #{loftr_encoder_layer.9} parent=5 // pred_check
      %p364 = pneg %p363
    $region42: #{loftr_encoder_layer.9} parent=5 // pred_check_branch
      %366 = sbr.rel (%p364) target = $region44
    $region43: #{loftr_encoder_layer.9} parent=5 // pred_region
      %s367 = ssub.s32 %s10, 2
      // Predicated region
      $region45: #{loftr_encoder_layer.9} parent=43 // pred_check
        %p368 = pneg %p107
      $region46: #{loftr_encoder_layer.9} parent=43 // pred_check_branch
        %370 = sbr.rel (%p368) target = $region48
      $region47: #{loftr_encoder_layer.9} parent=43 // pred_region
        %p371 = scmp.lt.s32.totalorder %s21, 1
        %s372 = scalar_select %p371, %s21, 1
        %s373 = smul.addr %s372, 4
        %s374 = smul.addr %s373, 8
        %s375 = scalar_lea.vmem %s2, %s374
      $region48: #{loftr_encoder_layer.9} parent=43 // pred_fallthru
        _
      // Predicated region
      $region49: #{loftr_encoder_layer.9} parent=43 // pred_check
        %p376 = pneg %p133
      $region50: #{loftr_encoder_layer.9} parent=43 // pred_check_branch
        %378 = sbr.rel (%p376) target = $region52
      $region51: #{loftr_encoder_layer.9} parent=43 // pred_region
        %p379 = scmp.lt.s32.totalorder %s21, 1
        %s380 = scalar_select %p379, %s21, 1
        %s381 = scalar_lea.vmem %s3, %s380
      $region52: #{loftr_encoder_layer.9} parent=43 // pred_fallthru
        _
    $region44: #{loftr_encoder_layer.9} parent=5 // pred_fallthru
      _
  $region6: #{loftr_encoder_layer.9} parent=0 // loop_footer
    %s14 = sadd.s32 1, %s10
  $region7: #{loftr_encoder_layer.9} parent=0 // loop_footer_branch
    %9 = sbr.rel target = $region3
  $region8: #{loftr_encoder_layer.9} parent=0 // loop_exit
    _

// kernel: loftr_encoder_layer.7
$region0: #{loftr_encoder_layer.7}
  #allocation0 [shape = 'u32[]', space=smem, size = 0x4, offset = 0x4, fixed_abs, tag = 'smem constant byte address 0x4 - core index']
  #allocation1 [shape = 'u32[72,128]{1,0:T(1,128)}', space=vmem, size = 0x9000, scoped, tag = 'internal scratch']
  %s0 = inlined_call_operand.vmem [shape: bf16[2,8,32], index: 0, kind: input, shape index: {}]
  %s1 = inlined_call_operand.vmem [shape: bf16[32,64], index: 1, kind: input, shape index: {}]
  %s2 = inlined_call_operand.vmem [shape: bf16[2,8,32], index: 2, kind: output, shape index: {0}]
  %s3 = inlined_call_operand.vmem [shape: bf16[2,8,32], index: 3, kind: output, shape index: {1}]
  %4 = xla_tuple %s2, %s3
  %s5 = sld [smem:[#allocation0]]
  $region49: #{loftr_encoder_layer.7} parent=0
    _
  %s7 = ssub.s32 1, %s5
  %s8 = scalar_select 0, %s7, %s5
  loop: start=0, step=1, limit=4
  $region2: #{loftr_encoder_layer.7} parent=0 // loop_pre_header
    _
  $region3: #{loftr_encoder_layer.7} parent=0 // loop_header
    %s10 = sphi 0, %s14
    %p11 = scmp.ge.s32.totalorder %s10, 4
    %s17 = sphi 0, %s29
    %s18 = sphi 0, %s25
    %s19 = sphi 0, %s17
    %s20 = sphi 0, %s18
    %s21 = sphi 0, %s19
    %s22 = sphi 0, %s20
    %s34 = sphi 0, %s36
    %s37 = sphi 0, %s34
    %s38 = sphi 0, %s37
    %s54 = sphi 0, %s38
    %s58 = sphi 0, %s58
    %s60 = sphi 0, %s58
    %s61 = sphi 0, %s60
    %s75 = sphi 0, %s61
    %s83 = sphi 0, %s85
    %s86 = sphi 0, %s83
    %s87 = sphi 0, %s86
    %s103 = sphi 0, %s87
    %s111 = sphi 0, %s113
    %s114 = sphi 0, %s111
    %s115 = sphi 0, %s114
    %s131 = sphi 0, %s115
  $region4: #{loftr_encoder_layer.7} parent=0 // loop_header_branch
    %13 = sbr.rel (%p11) target = $region8
  $region5: #{loftr_encoder_layer.7} parent=0 // loop_body
    %s15 = ssub.s32 %s10, 1
    %s16 = ssub.s32 %s10, 2
    %s23 = sadd.s32 1, %s18
    %p24 = scmp.ge.s32.totalorder %s23, 1
    %s25 = scalar_select %p24, 0, %s23
    %s26 = sadd.s32 1, %s17
    %s27 = scalar_select %p24, %s26, %s17
    %p28 = scmp.ge.s32.totalorder %s27, 2
    %s29 = scalar_select %p28, 0, %s27
    %s30 = ssub.s32 %s17, %s29
    %s31 = ssub.s32 %s18, %s25
    %s32 = sor.u32 %s30, %s31
    %p33 = scmp.eq.s32.totalorder %s32, 0
    %s35 = sadd.s32 %s34, 1
    %s36 = scalar_select %p33, %s34, %s35
    %p39 = pneg %p33
    %p40 = scmp.eq.s32.totalorder %s10, 1
    %p41 = por %p39, %p40
    %p42 = scmp.ne.s32.totalorder %s34, %s37
    %p43 = scmp.eq.s32.totalorder %s10, 0
    %p44 = por %p42, %p43
    %p45 = scmp.ne.s32.totalorder %s34, %s37
    %p46 = scmp.eq.s32.totalorder %s15, 1
    %p47 = por %p45, %p46
    %p48 = scmp.ne.s32.totalorder %s37, %s38
    %p49 = scmp.eq.s32.totalorder %s15, 0
    %p50 = por %p48, %p49
    %p51 = scmp.ne.s32.totalorder %s37, %s38
    %p52 = scmp.eq.s32.totalorder %s16, 1
    %p53 = por %p51, %p52
    %p55 = scmp.ne.s32.totalorder %s38, %s54
    %p56 = scmp.eq.s32.totalorder %s16, 0
    %p57 = por %p55, %p56
    %s59 = sadd.s32 %s58, 1
    %p62 = scmp.eq.s32.totalorder %s10, 1
    %p63 = scmp.ne.s32.totalorder %s58, %s60
    %p64 = scmp.eq.s32.totalorder %s10, 0
    %p65 = por %p63, %p64
    %p66 = scmp.ne.s32.totalorder %s58, %s60
    %p67 = scmp.eq.s32.totalorder %s15, 1
    %p68 = por %p66, %p67
    %p69 = scmp.ne.s32.totalorder %s60, %s61
    %p70 = scmp.eq.s32.totalorder %s15, 0
    %p71 = por %p69, %p70
    %p72 = scmp.ne.s32.totalorder %s60, %s61
    %p73 = scmp.eq.s32.totalorder %s16, 1
    %p74 = por %p72, %p73
    %p76 = scmp.ne.s32.totalorder %s61, %s75
    %p77 = scmp.eq.s32.totalorder %s16, 0
    %p78 = por %p76, %p77
    %s79 = ssub.s32 %s17, %s29
    %s80 = ssub.s32 %s18, %s25
    %s81 = sor.u32 %s79, %s80
    %p82 = scmp.eq.s32.totalorder %s81, 0
    %s84 = sadd.s32 %s83, 1
    %s85 = scalar_select %p82, %s83, %s84
    %p88 = pneg %p82
    %p89 = scmp.eq.s32.totalorder %s10, 1
    %p90 = por %p88, %p89
    %p91 = scmp.ne.s32.totalorder %s83, %s86
    %p92 = scmp.eq.s32.totalorder %s10, 0
    %p93 = por %p91, %p92
    %p94 = scmp.ne.s32.totalorder %s83, %s86
    %p95 = scmp.eq.s32.totalorder %s15, 1
    %p96 = por %p94, %p95
    %p97 = scmp.ne.s32.totalorder %s86, %s87
    %p98 = scmp.eq.s32.totalorder %s15, 0
    %p99 = por %p97, %p98
    %p100 = scmp.ne.s32.totalorder %s86, %s87
    %p101 = scmp.eq.s32.totalorder %s16, 1
    %p102 = por %p100, %p101
    %p104 = scmp.ne.s32.totalorder %s87, %s103
    %p105 = scmp.eq.s32.totalorder %s16, 0
    %p106 = por %p104, %p105
    %s107 = ssub.s32 %s17, %s29
    %s108 = ssub.s32 %s18, %s25
    %s109 = sor.u32 %s107, %s108
    %p110 = scmp.eq.s32.totalorder %s109, 0
    %s112 = sadd.s32 %s111, 1
    %s113 = scalar_select %p110, %s111, %s112
    %p116 = pneg %p110
    %p117 = scmp.eq.s32.totalorder %s10, 1
    %p118 = por %p116, %p117
    %p119 = scmp.ne.s32.totalorder %s111, %s114
    %p120 = scmp.eq.s32.totalorder %s10, 0
    %p121 = por %p119, %p120
    %p122 = scmp.ne.s32.totalorder %s111, %s114
    %p123 = scmp.eq.s32.totalorder %s15, 1
    %p124 = por %p122, %p123
    %p125 = scmp.ne.s32.totalorder %s114, %s115
    %p126 = scmp.eq.s32.totalorder %s15, 0
    %p127 = por %p125, %p126
    %p128 = scmp.ne.s32.totalorder %s114, %s115
    %p129 = scmp.eq.s32.totalorder %s16, 1
    %p130 = por %p128, %p129
    %p132 = scmp.ne.s32.totalorder %s115, %s131
    %p133 = scmp.eq.s32.totalorder %s16, 0
    %p134 = por %p132, %p133
    %p135 = scmp.le.s32.totalorder 1, %s10
    %p136 = scmp.lt.s32.totalorder %s10, 3
    %p137 = pnand %p135, %p136
    %p138 = pneg %p137
    // Predicated region
    $region9: #{loftr_encoder_layer.7} parent=5 // pred_check
      _
    $region10: #{loftr_encoder_layer.7} parent=5 // pred_check_branch
      %140 = sbr.rel (%p137) target = $region12
    $region11: #{loftr_encoder_layer.7} parent=5 // pred_region
      %s141 = ssub.s32 %s10, 1
      // Predicated region
      $region13: #{loftr_encoder_layer.7} parent=11 // pred_check
        %p142 = pneg %p71
      $region14: #{loftr_encoder_layer.7} parent=11 // pred_check_branch
        %144 = sbr.rel (%p142) target = $region16
      $region15: #{loftr_encoder_layer.7} parent=11 // pred_region
        _
      $region16: #{loftr_encoder_layer.7} parent=11 // pred_fallthru
        _
    $region12: #{loftr_encoder_layer.7} parent=5 // pred_fallthru
      _
    %p145 = scmp.lt.s32.totalorder %s10, 2
    // Predicated region
    $region17: #{loftr_encoder_layer.7} parent=5 // pred_check
      %p146 = pneg %p145
    $region18: #{loftr_encoder_layer.7} parent=5 // pred_check_branch
      %148 = sbr.rel (%p146) target = $region20
    $region19: #{loftr_encoder_layer.7} parent=5 // pred_region
      // Predicated region
      $region21: #{loftr_encoder_layer.7} parent=19 // pred_check
        %p149 = pneg %p44
      $region22: #{loftr_encoder_layer.7} parent=19 // pred_check_branch
        %151 = sbr.rel (%p149) target = $region24
      $region23: #{loftr_encoder_layer.7} parent=19 // pred_region
        %p152 = scmp.lt.s32.totalorder %s17, 1
        %s153 = scalar_select %p152, %s17, 1
        %p154 = scmp.lt.s32.totalorder %s18, 0
        %s155 = scalar_select %p154, %s18, 0
        %s156 = sadd.s32 %s155, %s153
        %s157 = smul.addr %s156, 4
        %s158 = scalar_lea.vmem %s0, %s157
      $region24: #{loftr_encoder_layer.7} parent=19 // pred_fallthru
        _
    $region20: #{loftr_encoder_layer.7} parent=5 // pred_fallthru
      _
    %p159 = scmp.le.s32.totalorder 1, %s10
    %p160 = scmp.lt.s32.totalorder %s10, 3
    %p161 = pnand %p159, %p160
    %p162 = pneg %p161
    // Predicated region
    $region25: #{loftr_encoder_layer.7} parent=5 // pred_check
      _
    $region26: #{loftr_encoder_layer.7} parent=5 // pred_check_branch
      %164 = sbr.rel (%p161) target = $region28
    $region27: #{loftr_encoder_layer.7} parent=5 // pred_region
      %s165 = ssub.s32 %s10, 1
      %p166 = scmp.lt.s32.totalorder %s19, 1
      %s167 = scalar_select %p166, %s19, 1
      %p168 = scmp.lt.s32.totalorder %s20, 0
      %s169 = scalar_select %p168, %s20, 0
      %s170 = sadd.s32 %s169, %s167
      %s171 = smul.addr %s170, 4
      %s172 = scalar_lea.vmem %s0, %s171
      %p173 = pneg %p50
      %p174 = pneg %p47
      %p175 = pneg %p71
      %p176 = pneg %p68
      %p177 = pneg %p99
      %p178 = pneg %p96
      %p179 = scmp.lt.s32.totalorder %s19, 1
      %s180 = scalar_select %p179, %s19, 1
      %p181 = scmp.lt.s32.totalorder %s20, 0
      %s182 = scalar_select %p181, %s20, 0
      %s183 = sadd.s32 %s182, %s180
      %s184 = smul.addr %s183, 4
      %s185 = scalar_lea.vmem %s2, %s184
      %p186 = pneg %p127
      %p187 = pneg %p124
      %p188 = scmp.lt.s32.totalorder %s19, 1
      %s189 = scalar_select %p188, %s19, 1
      %p190 = scmp.lt.s32.totalorder %s20, 0
      %s191 = scalar_select %p190, %s20, 0
      %s192 = sadd.s32 %s191, %s189
      %s193 = smul.addr %s192, 4
      %s194 = scalar_lea.vmem %s3, %s193
      %p195 = scmp.lt.s32.totalorder %s19, 1
      %s196 = scalar_select %p195, %s19, 1
      %p197 = scmp.lt.s32.totalorder %s20, 0
      %s198 = scalar_select %p197, %s20, 0
      %s199 = sadd.s32 %s198, %s196
      %s200 = smul.addr %s199, 4
      %s201 = scalar_lea.vmem %s0, %s200
      %p202 = scmp.lt.s32.totalorder %s19, 1
      %s203 = scalar_select %p202, %s19, 1
      %p204 = scmp.lt.s32.totalorder %s20, 0
      %s205 = scalar_select %p204, %s20, 0
      %s206 = sadd.s32 %s205, %s203
      %s207 = smul.addr %s206, 4
      %s208 = scalar_lea.vmem %s2, %s207
      %p209 = scmp.lt.s32.totalorder %s19, 1
      %s210 = scalar_select %p209, %s19, 1
      %p211 = scmp.lt.s32.totalorder %s20, 0
      %s212 = scalar_select %p211, %s20, 0
      %s213 = sadd.s32 %s212, %s210
      %s214 = smul.addr %s213, 4
      %s215 = scalar_lea.vmem %s3, %s214
      %v217 = vld [vmem:[%s201] sm:$0xf]
      %v218 = vld [vmem:[%s1] sm:$0xf]
      %v219 = vld [vmem:[%s1 + $0x4] sm:$0xf]
      %v220 = vld [vmem:[%s1 + $0x8] sm:$0xf]
      %v221 = vld [vmem:[%s1 + $0xc] sm:$0xf]
      %v226 = vunpack.c.l.b16 %v218
      %v227 = vunpack.c.l.b16 %v219
      %v228 = vunpack.c.l.b16 %v220
      %v229 = vunpack.c.l.b16 %v221
      %v230 = vpack.c.b16 %v227, %v226
      %v231 = vpack.c.b16 %v229, %v228
      %vm234 = vcmask 261120
      %v236 = vsel %vm234, %v217, 0
      %238 = vmatpush.bf16.msra.mxu0 0
      %239 = vmatpush.bf16.msra.mxu0 0
      %240 = vmatpush.bf16.msra.mxu0 0
      %241 = vmatpush.bf16.msra.mxu0 0
      %242 = vmatpush.bf16.msra.mxu0 0
      %243 = vmatpush.bf16.msra.mxu0 0
      %244 = vmatpush.bf16.msra.mxu0 %v231
      %245 = vmatpush.bf16.msra.mxu0 %v230
      %246 = vmatmul.bf16.gmra.mxu0 %v236
      %v247 = vpop.f32.mrf.mxu0
      %v248 = vadd.f32 0.0, %v247
      %v249 = vpop.f32.mrf.mxu0
      %250 = vdwg.mxu0
      %v251 = vpack.c.bf16 %v248, %v248
      %vm252 = vcmask 257024
      %253 = vst.msk [vmem:[%s208] sm:$0xf] %vm252, %v251
      %255 = vrot.lane.b32.xlu0 %v251, 96
      %v256 = vpop.permute.xlu0 %255
      %258 = vst.msk [vmem:[%s215] sm:$0xf] %vm252, %v256
      %p259 = scmp.lt.s32.totalorder %s19, 1
      %s260 = scalar_select %p259, %s19, 1
      %p261 = scmp.lt.s32.totalorder %s20, 0
      %s262 = scalar_select %p261, %s20, 0
      %s263 = sadd.s32 %s262, %s260
      %s264 = smul.addr %s263, 4
      %s265 = scalar_lea.vmem %s2, %s264
      %p266 = scmp.lt.s32.totalorder %s19, 1
      %s267 = scalar_select %p266, %s19, 1
      %p268 = scmp.lt.s32.totalorder %s20, 0
      %s269 = scalar_select %p268, %s20, 0
      %s270 = sadd.s32 %s269, %s267
      %s271 = smul.addr %s270, 4
      %s272 = scalar_lea.vmem %s3, %s271
      // Predicated region
      $region29: #{loftr_encoder_layer.7} parent=27 // pred_check
        %p273 = pneg %p96
      $region30: #{loftr_encoder_layer.7} parent=27 // pred_check_branch
        %275 = sbr.rel (%p273) target = $region32
      $region31: #{loftr_encoder_layer.7} parent=27 // pred_region
        _
      $region32: #{loftr_encoder_layer.7} parent=27 // pred_fallthru
        _
      // Predicated region
      $region33: #{loftr_encoder_layer.7} parent=27 // pred_check
        %p276 = pneg %p124
      $region34: #{loftr_encoder_layer.7} parent=27 // pred_check_branch
        %278 = sbr.rel (%p276) target = $region36
      $region35: #{loftr_encoder_layer.7} parent=27 // pred_region
        _
      $region36: #{loftr_encoder_layer.7} parent=27 // pred_fallthru
        _
    $region28: #{loftr_encoder_layer.7} parent=5 // pred_fallthru
      _
    %p279 = scmp.le.s32.totalorder 2, %s10
    // Predicated region
    $region37: #{loftr_encoder_layer.7} parent=5 // pred_check
      %p280 = pneg %p279
    $region38: #{loftr_encoder_layer.7} parent=5 // pred_check_branch
      %282 = sbr.rel (%p280) target = $region40
    $region39: #{loftr_encoder_layer.7} parent=5 // pred_region
      %s283 = ssub.s32 %s10, 2
      // Predicated region
      $region41: #{loftr_encoder_layer.7} parent=39 // pred_check
        %p284 = pneg %p102
      $region42: #{loftr_encoder_layer.7} parent=39 // pred_check_branch
        %286 = sbr.rel (%p284) target = $region44
      $region43: #{loftr_encoder_layer.7} parent=39 // pred_region
        %p287 = scmp.lt.s32.totalorder %s21, 1
        %s288 = scalar_select %p287, %s21, 1
        %p289 = scmp.lt.s32.totalorder %s22, 0
        %s290 = scalar_select %p289, %s22, 0
        %s291 = sadd.s32 %s290, %s288
        %s292 = smul.addr %s291, 4
        %s293 = scalar_lea.vmem %s2, %s292
      $region44: #{loftr_encoder_layer.7} parent=39 // pred_fallthru
        _
      // Predicated region
      $region45: #{loftr_encoder_layer.7} parent=39 // pred_check
        %p294 = pneg %p130
      $region46: #{loftr_encoder_layer.7} parent=39 // pred_check_branch
        %296 = sbr.rel (%p294) target = $region48
      $region47: #{loftr_encoder_layer.7} parent=39 // pred_region
        %p297 = scmp.lt.s32.totalorder %s21, 1
        %s298 = scalar_select %p297, %s21, 1
        %p299 = scmp.lt.s32.totalorder %s22, 0
        %s300 = scalar_select %p299, %s22, 0
        %s301 = sadd.s32 %s300, %s298
        %s302 = smul.addr %s301, 4
        %s303 = scalar_lea.vmem %s3, %s302
      $region48: #{loftr_encoder_layer.7} parent=39 // pred_fallthru
        _
    $region40: #{loftr_encoder_layer.7} parent=5 // pred_fallthru
      _
  $region6: #{loftr_encoder_layer.7} parent=0 // loop_footer
    %s14 = sadd.s32 1, %s10
  $region7: #{loftr_encoder_layer.7} parent=0 // loop_footer_branch
    %9 = sbr.rel target = $region3
  $region8: #{loftr_encoder_layer.7} parent=0 // loop_exit
    _

// kernel: loftr_encoder_layer.12
$region0: #{loftr_encoder_layer.12}
  #allocation0 [shape = 'u32[]', space=smem, size = 0x4, offset = 0x4, fixed_abs, tag = 'smem constant byte address 0x4 - core index']
  #allocation1 [shape = 'u32[72,128]{1,0:T(1,128)}', space=vmem, size = 0x9000, scoped, tag = 'internal scratch']
  %s0 = inlined_call_operand.vmem [shape: bf16[2,8,32], index: 0, kind: input, shape index: {}]
  %s1 = inlined_call_operand.vmem [shape: bf16[2,8,32], index: 1, kind: input, shape index: {}]
  %s2 = inlined_call_operand.vmem [shape: bf16[2,8,32], index: 2, kind: input, shape index: {}]
  %s3 = inlined_call_operand.vmem [shape: bf16[2,32,32], index: 3, kind: input, shape index: {}]
  %s4 = inlined_call_operand.vmem [shape: bf16[2,32,32], index: 4, kind: input, shape index: {}]
  %s5 = inlined_call_operand.vmem [shape: f32[2,1,32], index: 5, kind: input, shape index: {}]
  %s6 = inlined_call_operand.vmem [shape: f32[2,1,32], index: 6, kind: input, shape index: {}]
  %s7 = inlined_call_operand.vmem [shape: f32[32,32], index: 7, kind: input, shape index: {}]
  %s8 = inlined_call_operand.vmem [shape: bf16[32,32], index: 8, kind: input, shape index: {}]
  %s9 = inlined_call_operand.vmem [shape: f32[1,32], index: 9, kind: input, shape index: {}]
  %s10 = inlined_call_operand.vmem [shape: f32[1,32], index: 10, kind: input, shape index: {}]
  %s11 = inlined_call_operand.vmem [shape: bf16[32,64], index: 11, kind: input, shape index: {}]
  %s12 = inlined_call_operand.vmem [shape: bf16[32,64], index: 12, kind: input, shape index: {}]
  %s13 = inlined_call_operand.vmem [shape: bf16[64,32], index: 13, kind: input, shape index: {}]
  %s14 = inlined_call_operand.vmem [shape: f32[1,32], index: 14, kind: input, shape index: {}]
  %s15 = inlined_call_operand.vmem [shape: f32[1,32], index: 15, kind: input, shape index: {}]
  %s16 = inlined_call_operand.vmem [shape: bf16[2,8,32], index: 16, kind: output, shape index: {}]
  %s17 = sld [smem:[#allocation0]]
  $region97: #{loftr_encoder_layer.12} parent=0
    _
  %s19 = ssub.s32 1, %s17
  %s20 = scalar_select 0, %s19, %s17
  loop: start=0, step=1, limit=4
  $region2: #{loftr_encoder_layer.12} parent=0 // loop_pre_header
    _
  $region3: #{loftr_encoder_layer.12} parent=0 // loop_header
    %s22 = sphi 0, %s26
    %p23 = scmp.ge.s32.totalorder %s22, 4
    %s29 = sphi 0, %s41
    %s30 = sphi 0, %s37
    %s31 = sphi 0, %s29
    %s32 = sphi 0, %s30
    %s33 = sphi 0, %s31
    %s34 = sphi 0, %s32
    %s46 = sphi 0, %s48
    %s49 = sphi 0, %s46
    %s50 = sphi 0, %s49
    %s66 = sphi 0, %s50
    %s74 = sphi 0, %s76
    %s77 = sphi 0, %s74
    %s78 = sphi 0, %s77
    %s94 = sphi 0, %s78
    %s102 = sphi 0, %s104
    %s105 = sphi 0, %s102
    %s106 = sphi 0, %s105
    %s122 = sphi 0, %s106
    %s128 = sphi 0, %s130
    %s131 = sphi 0, %s128
    %s132 = sphi 0, %s131
    %s148 = sphi 0, %s132
    %s154 = sphi 0, %s156
    %s157 = sphi 0, %s154
    %s158 = sphi 0, %s157
    %s174 = sphi 0, %s158
    %s180 = sphi 0, %s182
    %s183 = sphi 0, %s180
    %s184 = sphi 0, %s183
    %s200 = sphi 0, %s184
    %s206 = sphi 0, %s208
    %s209 = sphi 0, %s206
    %s210 = sphi 0, %s209
    %s226 = sphi 0, %s210
    %s230 = sphi 0, %s230
    %s232 = sphi 0, %s230
    %s233 = sphi 0, %s232
    %s247 = sphi 0, %s233
    %s251 = sphi 0, %s251
    %s253 = sphi 0, %s251
    %s254 = sphi 0, %s253
    %s268 = sphi 0, %s254
    %s272 = sphi 0, %s272
    %s274 = sphi 0, %s272
    %s275 = sphi 0, %s274
    %s289 = sphi 0, %s275
    %s293 = sphi 0, %s293
    %s295 = sphi 0, %s293
    %s296 = sphi 0, %s295
    %s310 = sphi 0, %s296
    %s314 = sphi 0, %s314
    %s316 = sphi 0, %s314
    %s317 = sphi 0, %s316
    %s331 = sphi 0, %s317
    %s335 = sphi 0, %s335
    %s337 = sphi 0, %s335
    %s338 = sphi 0, %s337
    %s352 = sphi 0, %s338
    %s356 = sphi 0, %s356
    %s358 = sphi 0, %s356
    %s359 = sphi 0, %s358
    %s373 = sphi 0, %s359
    %s377 = sphi 0, %s377
    %s379 = sphi 0, %s377
    %s380 = sphi 0, %s379
    %s394 = sphi 0, %s380
    %s398 = sphi 0, %s398
    %s400 = sphi 0, %s398
    %s401 = sphi 0, %s400
    %s415 = sphi 0, %s401
    %s423 = sphi 0, %s425
    %s426 = sphi 0, %s423
    %s427 = sphi 0, %s426
    %s443 = sphi 0, %s427
  $region4: #{loftr_encoder_layer.12} parent=0 // loop_header_branch
    %25 = sbr.rel (%p23) target = $region8
  $region5: #{loftr_encoder_layer.12} parent=0 // loop_body
    %s27 = ssub.s32 %s22, 1
    %s28 = ssub.s32 %s22, 2
    %s35 = sadd.s32 1, %s30
    %p36 = scmp.ge.s32.totalorder %s35, 1
    %s37 = scalar_select %p36, 0, %s35
    %s38 = sadd.s32 1, %s29
    %s39 = scalar_select %p36, %s38, %s29
    %p40 = scmp.ge.s32.totalorder %s39, 2
    %s41 = scalar_select %p40, 0, %s39
    %s42 = ssub.s32 %s29, %s41
    %s43 = ssub.s32 %s30, %s37
    %s44 = sor.u32 %s42, %s43
    %p45 = scmp.eq.s32.totalorder %s44, 0
    %s47 = sadd.s32 %s46, 1
    %s48 = scalar_select %p45, %s46, %s47
    %p51 = pneg %p45
    %p52 = scmp.eq.s32.totalorder %s22, 1
    %p53 = por %p51, %p52
    %p54 = scmp.ne.s32.totalorder %s46, %s49
    %p55 = scmp.eq.s32.totalorder %s22, 0
    %p56 = por %p54, %p55
    %p57 = scmp.ne.s32.totalorder %s46, %s49
    %p58 = scmp.eq.s32.totalorder %s27, 1
    %p59 = por %p57, %p58
    %p60 = scmp.ne.s32.totalorder %s49, %s50
    %p61 = scmp.eq.s32.totalorder %s27, 0
    %p62 = por %p60, %p61
    %p63 = scmp.ne.s32.totalorder %s49, %s50
    %p64 = scmp.eq.s32.totalorder %s28, 1
    %p65 = por %p63, %p64
    %p67 = scmp.ne.s32.totalorder %s50, %s66
    %p68 = scmp.eq.s32.totalorder %s28, 0
    %p69 = por %p67, %p68
    %s70 = ssub.s32 %s29, %s41
    %s71 = ssub.s32 %s30, %s37
    %s72 = sor.u32 %s70, %s71
    %p73 = scmp.eq.s32.totalorder %s72, 0
    %s75 = sadd.s32 %s74, 1
    %s76 = scalar_select %p73, %s74, %s75
    %p79 = pneg %p73
    %p80 = scmp.eq.s32.totalorder %s22, 1
    %p81 = por %p79, %p80
    %p82 = scmp.ne.s32.totalorder %s74, %s77
    %p83 = scmp.eq.s32.totalorder %s22, 0
    %p84 = por %p82, %p83
    %p85 = scmp.ne.s32.totalorder %s74, %s77
    %p86 = scmp.eq.s32.totalorder %s27, 1
    %p87 = por %p85, %p86
    %p88 = scmp.ne.s32.totalorder %s77, %s78
    %p89 = scmp.eq.s32.totalorder %s27, 0
    %p90 = por %p88, %p89
    %p91 = scmp.ne.s32.totalorder %s77, %s78
    %p92 = scmp.eq.s32.totalorder %s28, 1
    %p93 = por %p91, %p92
    %p95 = scmp.ne.s32.totalorder %s78, %s94
    %p96 = scmp.eq.s32.totalorder %s28, 0
    %p97 = por %p95, %p96
    %s98 = ssub.s32 %s29, %s41
    %s99 = ssub.s32 %s30, %s37
    %s100 = sor.u32 %s98, %s99
    %p101 = scmp.eq.s32.totalorder %s100, 0
    %s103 = sadd.s32 %s102, 1
    %s104 = scalar_select %p101, %s102, %s103
    %p107 = pneg %p101
    %p108 = scmp.eq.s32.totalorder %s22, 1
    %p109 = por %p107, %p108
    %p110 = scmp.ne.s32.totalorder %s102, %s105
    %p111 = scmp.eq.s32.totalorder %s22, 0
    %p112 = por %p110, %p111
    %p113 = scmp.ne.s32.totalorder %s102, %s105
    %p114 = scmp.eq.s32.totalorder %s27, 1
    %p115 = por %p113, %p114
    %p116 = scmp.ne.s32.totalorder %s105, %s106
    %p117 = scmp.eq.s32.totalorder %s27, 0
    %p118 = por %p116, %p117
    %p119 = scmp.ne.s32.totalorder %s105, %s106
    %p120 = scmp.eq.s32.totalorder %s28, 1
    %p121 = por %p119, %p120
    %p123 = scmp.ne.s32.totalorder %s106, %s122
    %p124 = scmp.eq.s32.totalorder %s28, 0
    %p125 = por %p123, %p124
    %s126 = ssub.s32 %s29, %s41
    %p127 = scmp.eq.s32.totalorder %s126, 0
    %s129 = sadd.s32 %s128, 1
    %s130 = scalar_select %p127, %s128, %s129
    %p133 = pneg %p127
    %p134 = scmp.eq.s32.totalorder %s22, 1
    %p135 = por %p133, %p134
    %p136 = scmp.ne.s32.totalorder %s128, %s131
    %p137 = scmp.eq.s32.totalorder %s22, 0
    %p138 = por %p136, %p137
    %p139 = scmp.ne.s32.totalorder %s128, %s131
    %p140 = scmp.eq.s32.totalorder %s27, 1
    %p141 = por %p139, %p140
    %p142 = scmp.ne.s32.totalorder %s131, %s132
    %p143 = scmp.eq.s32.totalorder %s27, 0
    %p144 = por %p142, %p143
    %p145 = scmp.ne.s32.totalorder %s131, %s132
    %p146 = scmp.eq.s32.totalorder %s28, 1
    %p147 = por %p145, %p146
    %p149 = scmp.ne.s32.totalorder %s132, %s148
    %p150 = scmp.eq.s32.totalorder %s28, 0
    %p151 = por %p149, %p150
    %s152 = ssub.s32 %s29, %s41
    %p153 = scmp.eq.s32.totalorder %s152, 0
    %s155 = sadd.s32 %s154, 1
    %s156 = scalar_select %p153, %s154, %s155
    %p159 = pneg %p153
    %p160 = scmp.eq.s32.totalorder %s22, 1
    %p161 = por %p159, %p160
    %p162 = scmp.ne.s32.totalorder %s154, %s157
    %p163 = scmp.eq.s32.totalorder %s22, 0
    %p164 = por %p162, %p163
    %p165 = scmp.ne.s32.totalorder %s154, %s157
    %p166 = scmp.eq.s32.totalorder %s27, 1
    %p167 = por %p165, %p166
    %p168 = scmp.ne.s32.totalorder %s157, %s158
    %p169 = scmp.eq.s32.totalorder %s27, 0
    %p170 = por %p168, %p169
    %p171 = scmp.ne.s32.totalorder %s157, %s158
    %p172 = scmp.eq.s32.totalorder %s28, 1
    %p173 = por %p171, %p172
    %p175 = scmp.ne.s32.totalorder %s158, %s174
    %p176 = scmp.eq.s32.totalorder %s28, 0
    %p177 = por %p175, %p176
    %s178 = ssub.s32 %s29, %s41
    %p179 = scmp.eq.s32.totalorder %s178, 0
    %s181 = sadd.s32 %s180, 1
    %s182 = scalar_select %p179, %s180, %s181
    %p185 = pneg %p179
    %p186 = scmp.eq.s32.totalorder %s22, 1
    %p187 = por %p185, %p186
    %p188 = scmp.ne.s32.totalorder %s180, %s183
    %p189 = scmp.eq.s32.totalorder %s22, 0
    %p190 = por %p188, %p189
    %p191 = scmp.ne.s32.totalorder %s180, %s183
    %p192 = scmp.eq.s32.totalorder %s27, 1
    %p193 = por %p191, %p192
    %p194 = scmp.ne.s32.totalorder %s183, %s184
    %p195 = scmp.eq.s32.totalorder %s27, 0
    %p196 = por %p194, %p195
    %p197 = scmp.ne.s32.totalorder %s183, %s184
    %p198 = scmp.eq.s32.totalorder %s28, 1
    %p199 = por %p197, %p198
    %p201 = scmp.ne.s32.totalorder %s184, %s200
    %p202 = scmp.eq.s32.totalorder %s28, 0
    %p203 = por %p201, %p202
    %s204 = ssub.s32 %s29, %s41
    %p205 = scmp.eq.s32.totalorder %s204, 0
    %s207 = sadd.s32 %s206, 1
    %s208 = scalar_select %p205, %s206, %s207
    %p211 = pneg %p205
    %p212 = scmp.eq.s32.totalorder %s22, 1
    %p213 = por %p211, %p212
    %p214 = scmp.ne.s32.totalorder %s206, %s209
    %p215 = scmp.eq.s32.totalorder %s22, 0
    %p216 = por %p214, %p215
    %p217 = scmp.ne.s32.totalorder %s206, %s209
    %p218 = scmp.eq.s32.totalorder %s27, 1
    %p219 = por %p217, %p218
    %p220 = scmp.ne.s32.totalorder %s209, %s210
    %p221 = scmp.eq.s32.totalorder %s27, 0
    %p222 = por %p220, %p221
    %p223 = scmp.ne.s32.totalorder %s209, %s210
    %p224 = scmp.eq.s32.totalorder %s28, 1
    %p225 = por %p223, %p224
    %p227 = scmp.ne.s32.totalorder %s210, %s226
    %p228 = scmp.eq.s32.totalorder %s28, 0
    %p229 = por %p227, %p228
    %s231 = sadd.s32 %s230, 1
    %p234 = scmp.eq.s32.totalorder %s22, 1
    %p235 = scmp.ne.s32.totalorder %s230, %s232
    %p236 = scmp.eq.s32.totalorder %s22, 0
    %p237 = por %p235, %p236
    %p238 = scmp.ne.s32.totalorder %s230, %s232
    %p239 = scmp.eq.s32.totalorder %s27, 1
    %p240 = por %p238, %p239
    %p241 = scmp.ne.s32.totalorder %s232, %s233
    %p242 = scmp.eq.s32.totalorder %s27, 0
    %p243 = por %p241, %p242
    %p244 = scmp.ne.s32.totalorder %s232, %s233
    %p245 = scmp.eq.s32.totalorder %s28, 1
    %p246 = por %p244, %p245
    %p248 = scmp.ne.s32.totalorder %s233, %s247
    %p249 = scmp.eq.s32.totalorder %s28, 0
    %p250 = por %p248, %p249
    %s252 = sadd.s32 %s251, 1
    %p255 = scmp.eq.s32.totalorder %s22, 1
    %p256 = scmp.ne.s32.totalorder %s251, %s253
    %p257 = scmp.eq.s32.totalorder %s22, 0
    %p258 = por %p256, %p257
    %p259 = scmp.ne.s32.totalorder %s251, %s253
    %p260 = scmp.eq.s32.totalorder %s27, 1
    %p261 = por %p259, %p260
    %p262 = scmp.ne.s32.totalorder %s253, %s254
    %p263 = scmp.eq.s32.totalorder %s27, 0
    %p264 = por %p262, %p263
    %p265 = scmp.ne.s32.totalorder %s253, %s254
    %p266 = scmp.eq.s32.totalorder %s28, 1
    %p267 = por %p265, %p266
    %p269 = scmp.ne.s32.totalorder %s254, %s268
    %p270 = scmp.eq.s32.totalorder %s28, 0
    %p271 = por %p269, %p270
    %s273 = sadd.s32 %s272, 1
    %p276 = scmp.eq.s32.totalorder %s22, 1
    %p277 = scmp.ne.s32.totalorder %s272, %s274
    %p278 = scmp.eq.s32.totalorder %s22, 0
    %p279 = por %p277, %p278
    %p280 = scmp.ne.s32.totalorder %s272, %s274
    %p281 = scmp.eq.s32.totalorder %s27, 1
    %p282 = por %p280, %p281
    %p283 = scmp.ne.s32.totalorder %s274, %s275
    %p284 = scmp.eq.s32.totalorder %s27, 0
    %p285 = por %p283, %p284
    %p286 = scmp.ne.s32.totalorder %s274, %s275
    %p287 = scmp.eq.s32.totalorder %s28, 1
    %p288 = por %p286, %p287
    %p290 = scmp.ne.s32.totalorder %s275, %s289
    %p291 = scmp.eq.s32.totalorder %s28, 0
    %p292 = por %p290, %p291
    %s294 = sadd.s32 %s293, 1
    %p297 = scmp.eq.s32.totalorder %s22, 1
    %p298 = scmp.ne.s32.totalorder %s293, %s295
    %p299 = scmp.eq.s32.totalorder %s22, 0
    %p300 = por %p298, %p299
    %p301 = scmp.ne.s32.totalorder %s293, %s295
    %p302 = scmp.eq.s32.totalorder %s27, 1
    %p303 = por %p301, %p302
    %p304 = scmp.ne.s32.totalorder %s295, %s296
    %p305 = scmp.eq.s32.totalorder %s27, 0
    %p306 = por %p304, %p305
    %p307 = scmp.ne.s32.totalorder %s295, %s296
    %p308 = scmp.eq.s32.totalorder %s28, 1
    %p309 = por %p307, %p308
    %p311 = scmp.ne.s32.totalorder %s296, %s310
    %p312 = scmp.eq.s32.totalorder %s28, 0
    %p313 = por %p311, %p312
    %s315 = sadd.s32 %s314, 1
    %p318 = scmp.eq.s32.totalorder %s22, 1
    %p319 = scmp.ne.s32.totalorder %s314, %s316
    %p320 = scmp.eq.s32.totalorder %s22, 0
    %p321 = por %p319, %p320
    %p322 = scmp.ne.s32.totalorder %s314, %s316
    %p323 = scmp.eq.s32.totalorder %s27, 1
    %p324 = por %p322, %p323
    %p325 = scmp.ne.s32.totalorder %s316, %s317
    %p326 = scmp.eq.s32.totalorder %s27, 0
    %p327 = por %p325, %p326
    %p328 = scmp.ne.s32.totalorder %s316, %s317
    %p329 = scmp.eq.s32.totalorder %s28, 1
    %p330 = por %p328, %p329
    %p332 = scmp.ne.s32.totalorder %s317, %s331
    %p333 = scmp.eq.s32.totalorder %s28, 0
    %p334 = por %p332, %p333
    %s336 = sadd.s32 %s335, 1
    %p339 = scmp.eq.s32.totalorder %s22, 1
    %p340 = scmp.ne.s32.totalorder %s335, %s337
    %p341 = scmp.eq.s32.totalorder %s22, 0
    %p342 = por %p340, %p341
    %p343 = scmp.ne.s32.totalorder %s335, %s337
    %p344 = scmp.eq.s32.totalorder %s27, 1
    %p345 = por %p343, %p344
    %p346 = scmp.ne.s32.totalorder %s337, %s338
    %p347 = scmp.eq.s32.totalorder %s27, 0
    %p348 = por %p346, %p347
    %p349 = scmp.ne.s32.totalorder %s337, %s338
    %p350 = scmp.eq.s32.totalorder %s28, 1
    %p351 = por %p349, %p350
    %p353 = scmp.ne.s32.totalorder %s338, %s352
    %p354 = scmp.eq.s32.totalorder %s28, 0
    %p355 = por %p353, %p354
    %s357 = sadd.s32 %s356, 1
    %p360 = scmp.eq.s32.totalorder %s22, 1
    %p361 = scmp.ne.s32.totalorder %s356, %s358
    %p362 = scmp.eq.s32.totalorder %s22, 0
    %p363 = por %p361, %p362
    %p364 = scmp.ne.s32.totalorder %s356, %s358
    %p365 = scmp.eq.s32.totalorder %s27, 1
    %p366 = por %p364, %p365
    %p367 = scmp.ne.s32.totalorder %s358, %s359
    %p368 = scmp.eq.s32.totalorder %s27, 0
    %p369 = por %p367, %p368
    %p370 = scmp.ne.s32.totalorder %s358, %s359
    %p371 = scmp.eq.s32.totalorder %s28, 1
    %p372 = por %p370, %p371
    %p374 = scmp.ne.s32.totalorder %s359, %s373
    %p375 = scmp.eq.s32.totalorder %s28, 0
    %p376 = por %p374, %p375
    %s378 = sadd.s32 %s377, 1
    %p381 = scmp.eq.s32.totalorder %s22, 1
    %p382 = scmp.ne.s32.totalorder %s377, %s379
    %p383 = scmp.eq.s32.totalorder %s22, 0
    %p384 = por %p382, %p383
    %p385 = scmp.ne.s32.totalorder %s377, %s379
    %p386 = scmp.eq.s32.totalorder %s27, 1
    %p387 = por %p385, %p386
    %p388 = scmp.ne.s32.totalorder %s379, %s380
    %p389 = scmp.eq.s32.totalorder %s27, 0
    %p390 = por %p388, %p389
    %p391 = scmp.ne.s32.totalorder %s379, %s380
    %p392 = scmp.eq.s32.totalorder %s28, 1
    %p393 = por %p391, %p392
    %p395 = scmp.ne.s32.totalorder %s380, %s394
    %p396 = scmp.eq.s32.totalorder %s28, 0
    %p397 = por %p395, %p396
    %s399 = sadd.s32 %s398, 1
    %p402 = scmp.eq.s32.totalorder %s22, 1
    %p403 = scmp.ne.s32.totalorder %s398, %s400
    %p404 = scmp.eq.s32.totalorder %s22, 0
    %p405 = por %p403, %p404
    %p406 = scmp.ne.s32.totalorder %s398, %s400
    %p407 = scmp.eq.s32.totalorder %s27, 1
    %p408 = por %p406, %p407
    %p409 = scmp.ne.s32.totalorder %s400, %s401
    %p410 = scmp.eq.s32.totalorder %s27, 0
    %p411 = por %p409, %p410
    %p412 = scmp.ne.s32.totalorder %s400, %s401
    %p413 = scmp.eq.s32.totalorder %s28, 1
    %p414 = por %p412, %p413
    %p416 = scmp.ne.s32.totalorder %s401, %s415
    %p417 = scmp.eq.s32.totalorder %s28, 0
    %p418 = por %p416, %p417
    %s419 = ssub.s32 %s29, %s41
    %s420 = ssub.s32 %s30, %s37
    %s421 = sor.u32 %s419, %s420
    %p422 = scmp.eq.s32.totalorder %s421, 0
    %s424 = sadd.s32 %s423, 1
    %s425 = scalar_select %p422, %s423, %s424
    %p428 = pneg %p422
    %p429 = scmp.eq.s32.totalorder %s22, 1
    %p430 = por %p428, %p429
    %p431 = scmp.ne.s32.totalorder %s423, %s426
    %p432 = scmp.eq.s32.totalorder %s22, 0
    %p433 = por %p431, %p432
    %p434 = scmp.ne.s32.totalorder %s423, %s426
    %p435 = scmp.eq.s32.totalorder %s27, 1
    %p436 = por %p434, %p435
    %p437 = scmp.ne.s32.totalorder %s426, %s427
    %p438 = scmp.eq.s32.totalorder %s27, 0
    %p439 = por %p437, %p438
    %p440 = scmp.ne.s32.totalorder %s426, %s427
    %p441 = scmp.eq.s32.totalorder %s28, 1
    %p442 = por %p440, %p441
    %p444 = scmp.ne.s32.totalorder %s427, %s443
    %p445 = scmp.eq.s32.totalorder %s28, 0
    %p446 = por %p444, %p445
    %p447 = scmp.le.s32.totalorder 1, %s22
    %p448 = scmp.lt.s32.totalorder %s22, 3
    %p449 = pnand %p447, %p448
    %p450 = pneg %p449
    // Predicated region
    $region9: #{loftr_encoder_layer.12} parent=5 // pred_check
      _
    $region10: #{loftr_encoder_layer.12} parent=5 // pred_check_branch
      %452 = sbr.rel (%p449) target = $region12
    $region11: #{loftr_encoder_layer.12} parent=5 // pred_region
      %s453 = ssub.s32 %s22, 1
      // Predicated region
      $region13: #{loftr_encoder_layer.12} parent=11 // pred_check
        %p454 = pneg %p243
      $region14: #{loftr_encoder_layer.12} parent=11 // pred_check_branch
        %456 = sbr.rel (%p454) target = $region16
      $region15: #{loftr_encoder_layer.12} parent=11 // pred_region
        _
      $region16: #{loftr_encoder_layer.12} parent=11 // pred_fallthru
        _
      // Predicated region
      $region17: #{loftr_encoder_layer.12} parent=11 // pred_check
        %p457 = pneg %p264
      $region18: #{loftr_encoder_layer.12} parent=11 // pred_check_branch
        %459 = sbr.rel (%p457) target = $region20
      $region19: #{loftr_encoder_layer.12} parent=11 // pred_region
        _
      $region20: #{loftr_encoder_layer.12} parent=11 // pred_fallthru
        _
      // Predicated region
      $region21: #{loftr_encoder_layer.12} parent=11 // pred_check
        %p460 = pneg %p285
      $region22: #{loftr_encoder_layer.12} parent=11 // pred_check_branch
        %462 = sbr.rel (%p460) target = $region24
      $region23: #{loftr_encoder_layer.12} parent=11 // pred_region
        _
      $region24: #{loftr_encoder_layer.12} parent=11 // pred_fallthru
        _
      // Predicated region
      $region25: #{loftr_encoder_layer.12} parent=11 // pred_check
        %p463 = pneg %p306
      $region26: #{loftr_encoder_layer.12} parent=11 // pred_check_branch
        %465 = sbr.rel (%p463) target = $region28
      $region27: #{loftr_encoder_layer.12} parent=11 // pred_region
        _
      $region28: #{loftr_encoder_layer.12} parent=11 // pred_fallthru
        _
      // Predicated region
      $region29: #{loftr_encoder_layer.12} parent=11 // pred_check
        %p466 = pneg %p327
      $region30: #{loftr_encoder_layer.12} parent=11 // pred_check_branch
        %468 = sbr.rel (%p466) target = $region32
      $region31: #{loftr_encoder_layer.12} parent=11 // pred_region
        _
      $region32: #{loftr_encoder_layer.12} parent=11 // pred_fallthru
        _
      // Predicated region
      $region33: #{loftr_encoder_layer.12} parent=11 // pred_check
        %p469 = pneg %p348
      $region34: #{loftr_encoder_layer.12} parent=11 // pred_check_branch
        %471 = sbr.rel (%p469) target = $region36
      $region35: #{loftr_encoder_layer.12} parent=11 // pred_region
        _
      $region36: #{loftr_encoder_layer.12} parent=11 // pred_fallthru
        _
      // Predicated region
      $region37: #{loftr_encoder_layer.12} parent=11 // pred_check
        %p472 = pneg %p369
      $region38: #{loftr_encoder_layer.12} parent=11 // pred_check_branch
        %474 = sbr.rel (%p472) target = $region40
      $region39: #{loftr_encoder_layer.12} parent=11 // pred_region
        _
      $region40: #{loftr_encoder_layer.12} parent=11 // pred_fallthru
        _
      // Predicated region
      $region41: #{loftr_encoder_layer.12} parent=11 // pred_check
        %p475 = pneg %p390
      $region42: #{loftr_encoder_layer.12} parent=11 // pred_check_branch
        %477 = sbr.rel (%p475) target = $region44
      $region43: #{loftr_encoder_layer.12} parent=11 // pred_region
        _
      $region44: #{loftr_encoder_layer.12} parent=11 // pred_fallthru
        _
      // Predicated region
      $region45: #{loftr_encoder_layer.12} parent=11 // pred_check
        %p478 = pneg %p411
      $region46: #{loftr_encoder_layer.12} parent=11 // pred_check_branch
        %480 = sbr.rel (%p478) target = $region48
      $region47: #{loftr_encoder_layer.12} parent=11 // pred_region
        _
      $region48: #{loftr_encoder_layer.12} parent=11 // pred_fallthru
        _
    $region12: #{loftr_encoder_layer.12} parent=5 // pred_fallthru
      _
    %p481 = scmp.lt.s32.totalorder %s22, 2
    // Predicated region
    $region49: #{loftr_encoder_layer.12} parent=5 // pred_check
      %p482 = pneg %p481
    $region50: #{loftr_encoder_layer.12} parent=5 // pred_check_branch
      %484 = sbr.rel (%p482) target = $region52
    $region51: #{loftr_encoder_layer.12} parent=5 // pred_region
      // Predicated region
      $region53: #{loftr_encoder_layer.12} parent=51 // pred_check
        %p485 = pneg %p56
      $region54: #{loftr_encoder_layer.12} parent=51 // pred_check_branch
        %487 = sbr.rel (%p485) target = $region56
      $region55: #{loftr_encoder_layer.12} parent=51 // pred_region
        %p488 = scmp.lt.s32.totalorder %s29, 1
        %s489 = scalar_select %p488, %s29, 1
        %p490 = scmp.lt.s32.totalorder %s30, 0
        %s491 = scalar_select %p490, %s30, 0
        %s492 = sadd.s32 %s491, %s489
        %s493 = smul.addr %s492, 4
        %s494 = scalar_lea.vmem %s0, %s493
      $region56: #{loftr_encoder_layer.12} parent=51 // pred_fallthru
        _
      // Predicated region
      $region57: #{loftr_encoder_layer.12} parent=51 // pred_check
        %p495 = pneg %p84
      $region58: #{loftr_encoder_layer.12} parent=51 // pred_check_branch
        %497 = sbr.rel (%p495) target = $region60
      $region59: #{loftr_encoder_layer.12} parent=51 // pred_region
        %p498 = scmp.lt.s32.totalorder %s29, 1
        %s499 = scalar_select %p498, %s29, 1
        %p500 = scmp.lt.s32.totalorder %s30, 0
        %s501 = scalar_select %p500, %s30, 0
        %s502 = sadd.s32 %s501, %s499
        %s503 = smul.addr %s502, 4
        %s504 = scalar_lea.vmem %s1, %s503
      $region60: #{loftr_encoder_layer.12} parent=51 // pred_fallthru
        _
      // Predicated region
      $region61: #{loftr_encoder_layer.12} parent=51 // pred_check
        %p505 = pneg %p112
      $region62: #{loftr_encoder_layer.12} parent=51 // pred_check_branch
        %507 = sbr.rel (%p505) target = $region64
      $region63: #{loftr_encoder_layer.12} parent=51 // pred_region
        %p508 = scmp.lt.s32.totalorder %s29, 1
        %s509 = scalar_select %p508, %s29, 1
        %p510 = scmp.lt.s32.totalorder %s30, 0
        %s511 = scalar_select %p510, %s30, 0
        %s512 = sadd.s32 %s511, %s509
        %s513 = smul.addr %s512, 4
        %s514 = scalar_lea.vmem %s2, %s513
      $region64: #{loftr_encoder_layer.12} parent=51 // pred_fallthru
        _
      // Predicated region
      $region65: #{loftr_encoder_layer.12} parent=51 // pred_check
        %p515 = pneg %p138
      $region66: #{loftr_encoder_layer.12} parent=51 // pred_check_branch
        %517 = sbr.rel (%p515) target = $region68
      $region67: #{loftr_encoder_layer.12} parent=51 // pred_region
        %p518 = scmp.lt.s32.totalorder %s29, 1
        %s519 = scalar_select %p518, %s29, 1
        %s520 = smul.addr %s519, 4
        %s521 = smul.addr %s520, 4
        %s522 = scalar_lea.vmem %s3, %s521
      $region68: #{loftr_encoder_layer.12} parent=51 // pred_fallthru
        _
      // Predicated region
      $region69: #{loftr_encoder_layer.12} parent=51 // pred_check
        %p523 = pneg %p164
      $region70: #{loftr_encoder_layer.12} parent=51 // pred_check_branch
        %525 = sbr.rel (%p523) target = $region72
      $region71: #{loftr_encoder_layer.12} parent=51 // pred_region
        %p526 = scmp.lt.s32.totalorder %s29, 1
        %s527 = scalar_select %p526, %s29, 1
        %s528 = smul.addr %s527, 4
        %s529 = smul.addr %s528, 4
        %s530 = scalar_lea.vmem %s4, %s529
      $region72: #{loftr_encoder_layer.12} parent=51 // pred_fallthru
        _
      // Predicated region
      $region73: #{loftr_encoder_layer.12} parent=51 // pred_check
        %p531 = pneg %p190
      $region74: #{loftr_encoder_layer.12} parent=51 // pred_check_branch
        %533 = sbr.rel (%p531) target = $region76
      $region75: #{loftr_encoder_layer.12} parent=51 // pred_region
        %p534 = scmp.lt.s32.totalorder %s29, 1
        %s535 = scalar_select %p534, %s29, 1
        %s536 = scalar_lea.vmem %s5, %s535
      $region76: #{loftr_encoder_layer.12} parent=51 // pred_fallthru
        _
      // Predicated region
      $region77: #{loftr_encoder_layer.12} parent=51 // pred_check
        %p537 = pneg %p216
      $region78: #{loftr_encoder_layer.12} parent=51 // pred_check_branch
        %539 = sbr.rel (%p537) target = $region80
      $region79: #{loftr_encoder_layer.12} parent=51 // pred_region
        %p540 = scmp.lt.s32.totalorder %s29, 1
        %s541 = scalar_select %p540, %s29, 1
        %s542 = scalar_lea.vmem %s6, %s541
      $region80: #{loftr_encoder_layer.12} parent=51 // pred_fallthru
        _
    $region52: #{loftr_encoder_layer.12} parent=5 // pred_fallthru
      _
    %p543 = scmp.le.s32.totalorder 1, %s22
    %p544 = scmp.lt.s32.totalorder %s22, 3
    %p545 = pnand %p543, %p544
    %p546 = pneg %p545
    // Predicated region
    $region81: #{loftr_encoder_layer.12} parent=5 // pred_check
      _
    $region82: #{loftr_encoder_layer.12} parent=5 // pred_check_branch
      %548 = sbr.rel (%p545) target = $region84
    $region83: #{loftr_encoder_layer.12} parent=5 // pred_region
      %s549 = ssub.s32 %s22, 1
      %p550 = scmp.lt.s32.totalorder %s31, 1
      %s551 = scalar_select %p550, %s31, 1
      %p552 = scmp.lt.s32.totalorder %s32, 0
      %s553 = scalar_select %p552, %s32, 0
      %s554 = sadd.s32 %s553, %s551
      %s555 = smul.addr %s554, 4
      %s556 = scalar_lea.vmem %s0, %s555
      %p557 = pneg %p62
      %p558 = pneg %p59
      %p559 = scmp.lt.s32.totalorder %s31, 1
      %s560 = scalar_select %p559, %s31, 1
      %p561 = scmp.lt.s32.totalorder %s32, 0
      %s562 = scalar_select %p561, %s32, 0
      %s563 = sadd.s32 %s562, %s560
      %s564 = smul.addr %s563, 4
      %s565 = scalar_lea.vmem %s1, %s564
      %p566 = pneg %p90
      %p567 = pneg %p87
      %p568 = scmp.lt.s32.totalorder %s31, 1
      %s569 = scalar_select %p568, %s31, 1
      %p570 = scmp.lt.s32.totalorder %s32, 0
      %s571 = scalar_select %p570, %s32, 0
      %s572 = sadd.s32 %s571, %s569
      %s573 = smul.addr %s572, 4
      %s574 = scalar_lea.vmem %s2, %s573
      %p575 = pneg %p118
      %p576 = pneg %p115
      %p577 = scmp.lt.s32.totalorder %s31, 1
      %s578 = scalar_select %p577, %s31, 1
      %s579 = smul.addr %s578, 4
      %s580 = smul.addr %s579, 4
      %s581 = scalar_lea.vmem %s3, %s580
      %p582 = pneg %p144
      %p583 = pneg %p141
      %p584 = scmp.lt.s32.totalorder %s31, 1
      %s585 = scalar_select %p584, %s31, 1
      %s586 = smul.addr %s585, 4
      %s587 = smul.addr %s586, 4
      %s588 = scalar_lea.vmem %s4, %s587
      %p589 = pneg %p170
      %p590 = pneg %p167
      %p591 = scmp.lt.s32.totalorder %s31, 1
      %s592 = scalar_select %p591, %s31, 1
      %s593 = scalar_lea.vmem %s5, %s592
      %p594 = pneg %p196
      %p595 = pneg %p193
      %p596 = scmp.lt.s32.totalorder %s31, 1
      %s597 = scalar_select %p596, %s31, 1
      %s598 = scalar_lea.vmem %s6, %s597
      %p599 = pneg %p222
      %p600 = pneg %p219
      %p601 = pneg %p243
      %p602 = pneg %p240
      %p603 = pneg %p264
      %p604 = pneg %p261
      %p605 = pneg %p285
      %p606 = pneg %p282
      %p607 = pneg %p306
      %p608 = pneg %p303
      %p609 = pneg %p327
      %p610 = pneg %p324
      %p611 = pneg %p348
      %p612 = pneg %p345
      %p613 = pneg %p369
      %p614 = pneg %p366
      %p615 = pneg %p390
      %p616 = pneg %p387
      %p617 = pneg %p411
      %p618 = pneg %p408
      %p619 = pneg %p439
      %p620 = pneg %p436
      %p621 = scmp.lt.s32.totalorder %s31, 1
      %s622 = scalar_select %p621, %s31, 1
      %p623 = scmp.lt.s32.totalorder %s32, 0
      %s624 = scalar_select %p623, %s32, 0
      %s625 = sadd.s32 %s624, %s622
      %s626 = smul.addr %s625, 4
      %s627 = scalar_lea.vmem %s16, %s626
      %p628 = scmp.lt.s32.totalorder %s31, 1
      %s629 = scalar_select %p628, %s31, 1
      %p630 = scmp.lt.s32.totalorder %s32, 0
      %s631 = scalar_select %p630, %s32, 0
      %s632 = sadd.s32 %s631, %s629
      %s633 = smul.addr %s632, 4
      %s634 = scalar_lea.vmem %s0, %s633
      %p635 = scmp.lt.s32.totalorder %s31, 1
      %s636 = scalar_select %p635, %s31, 1
      %p637 = scmp.lt.s32.totalorder %s32, 0
      %s638 = scalar_select %p637, %s32, 0
      %s639 = sadd.s32 %s638, %s636
      %s640 = smul.addr %s639, 4
      %s641 = scalar_lea.vmem %s1, %s640
      %p642 = scmp.lt.s32.totalorder %s31, 1
      %s643 = scalar_select %p642, %s31, 1
      %p644 = scmp.lt.s32.totalorder %s32, 0
      %s645 = scalar_select %p644, %s32, 0
      %s646 = sadd.s32 %s645, %s643
      %s647 = smul.addr %s646, 4
      %s648 = scalar_lea.vmem %s2, %s647
      %p649 = scmp.lt.s32.totalorder %s31, 1
      %s650 = scalar_select %p649, %s31, 1
      %s651 = smul.addr %s650, 4
      %s652 = smul.addr %s651, 4
      %s653 = scalar_lea.vmem %s3, %s652
      %p654 = scmp.lt.s32.totalorder %s31, 1
      %s655 = scalar_select %p654, %s31, 1
      %s656 = smul.addr %s655, 4
      %s657 = smul.addr %s656, 4
      %s658 = scalar_lea.vmem %s4, %s657
      %p659 = scmp.lt.s32.totalorder %s31, 1
      %s660 = scalar_select %p659, %s31, 1
      %s661 = scalar_lea.vmem %s5, %s660
      %p662 = scmp.lt.s32.totalorder %s31, 1
      %s663 = scalar_select %p662, %s31, 1
      %s664 = scalar_lea.vmem %s6, %s663
      %p665 = scmp.lt.s32.totalorder %s31, 1
      %s666 = scalar_select %p665, %s31, 1
      %p667 = scmp.lt.s32.totalorder %s32, 0
      %s668 = scalar_select %p667, %s32, 0
      %s669 = sadd.s32 %s668, %s666
      %s670 = smul.addr %s669, 4
      %s671 = scalar_lea.vmem %s16, %s670
      %v673 = vld [vmem:[%s634] sm:$0xf]
      %v674 = vunpack.c.l.bf16 %v673
      %v675 = vld [vmem:[%s7] sm:$0xff]
      %v676 = vld [vmem:[%s7 + $0x8] sm:$0xff]
      %v677 = vld [vmem:[%s7 + $0x10] sm:$0xff]
      %v678 = vld [vmem:[%s7 + $0x18] sm:$0xff]
      %v679 = vld [vmem:[%s641] sm:$0xf]
      %v680 = vld [vmem:[%s653] sm:$0xf]
      %v681 = vld [vmem:[%s653 + $0x4] sm:$0xf]
      %v682 = vld [vmem:[%s653 + $0x8] sm:$0xf]
      %v683 = vld [vmem:[%s653 + $0xc] sm:$0xf]
      %v684 = vld [vmem:[%s661] sm:$0x1]
      %v685 = vunpack.c.l.bf16 %v679
      %vm686 = vcmp.gt.f32.partialorder %v685, 0.0
      %v687 = vadd.f32 %v685, 1.0
      %v688 = vmin.f32 %v685, 0.0
      %v689 = vmul.f32 %v688, 1.442695
      %v690 = vpow.pop %v689
      %v691 = vsel %vm686, %v687, %v690
      %v692 = vpack.c.bf16 %v691, %v691
      %v697 = vunpack.c.l.b16 %v680
      %v698 = vunpack.c.l.b16 %v681
      %v699 = vunpack.c.l.b16 %v682
      %v700 = vunpack.c.l.b16 %v683
      %v701 = vpack.c.b16 %v698, %v697
      %v702 = vpack.c.b16 %v700, %v699
      %vm705 = vcmask 261120
      %v707 = vsel %vm705, %v692, 0
      %709 = vmatpush.bf16.msra.mxu0 0
      %710 = vmatpush.bf16.msra.mxu0 0
      %711 = vmatpush.bf16.msra.mxu0 0
      %712 = vmatpush.bf16.msra.mxu0 0
      %713 = vmatpush.bf16.msra.mxu0 0
      %714 = vmatpush.bf16.msra.mxu0 0
      %715 = vmatpush.bf16.msra.mxu0 %v702
      %716 = vmatpush.bf16.msra.mxu0 %v701
      %717 = vmatmul.bf16.gmra.mxu0 %v707
      %v718 = vpop.f32.mrf.mxu0
      %v719 = vadd.f32 0.0, %v718
      %v720 = vpop.f32.mrf.mxu0
      %721 = vdwg.mxu0
      %v723 = vperm.slane %v684, 0
      %v725 = vmul.f32 %v691, %v723
      %v727 = vsel %vm705, %v725, 0
      %729 = vmatpush.msra.mxu0 0.0
      %730 = vmatpush.msra.mxu0 0.0
      %731 = vmatpush.msra.mxu0 0.0
      %732 = vmatpush.msra.mxu0 0.0
      %733 = vmatpush.msra.mxu0 0.0
      %734 = vmatpush.msra.mxu0 0.0
      %735 = vmatpush.msra.mxu0 0.0
      %736 = vmatpush.msra.mxu0 0.0
      %737 = vmatpush.msra.mxu0 0.0
      %738 = vmatpush.msra.mxu0 0.0
      %739 = vmatpush.msra.mxu0 0.0
      %740 = vmatpush.msra.mxu0 0.0
      %741 = vmatpush.msra.mxu0 %v678
      %742 = vmatpush.msra.mxu0 %v677
      %743 = vmatpush.msra.mxu0 %v676
      %744 = vmatpush.msra.mxu0 %v675
      %745 = vmatmul.f32.gmra.mxu0 %v727
      %v746 = vpop.f32.mrf.mxu0
      %v747 = vadd.f32 1e-06, %v746
      %748 = vdwg.mxu0
      %v749 = vrcp.pop %v747
      %v750 = vmul.f32 %v747, %v749
      %v751 = vsub.f32 1.0, %v750
      %v752 = vmul.f32 %v749, %v751
      %v753 = vadd.f32 %v749, %v752
      %vm754 = vweird.f32 %v747
      %vm755 = vweird.f32 %v749
      %vm756 = vmor %vm754, %vm755
      %v757 = vsel %vm756, %v749, %v753
      %v758 = vand.u32 2147483647, %v747
      %vm759 = vcmp.eq.f32.partialorder %v758, 8.507059e+37
      %v760 = vand.u32 %v747, 2147483648
      %v761 = vor.u32 1.1754944e-38, %v760
      %v762 = vsel %vm759, %v761, %v757
      %v763 = vmul.f32 %v719, %v762
      %v764 = vpack.c.bf16 %v763, %v763
      %v765 = vld [vmem:[%s8] sm:$0xf]
      %v766 = vld [vmem:[%s8 + $0x4] sm:$0xf]
      %v767 = vld [vmem:[%s8 + $0x8] sm:$0xf]
      %v768 = vld [vmem:[%s8 + $0xc] sm:$0xf]
      %v773 = vunpack.c.l.b16 %v765
      %v774 = vunpack.c.l.b16 %v766
      %v775 = vunpack.c.l.b16 %v767
      %v776 = vunpack.c.l.b16 %v768
      %v777 = vpack.c.b16 %v774, %v773
      %v778 = vpack.c.b16 %v776, %v775
      %v782 = vsel %vm705, %v764, 0
      %784 = vmatpush.bf16.msra.mxu0 0
      %785 = vmatpush.bf16.msra.mxu0 0
      %786 = vmatpush.bf16.msra.mxu0 0
      %787 = vmatpush.bf16.msra.mxu0 0
      %788 = vmatpush.bf16.msra.mxu0 0
      %789 = vmatpush.bf16.msra.mxu0 0
      %790 = vmatpush.bf16.msra.mxu0 %v778
      %791 = vmatpush.bf16.msra.mxu0 %v777
      %792 = vmatmul.bf16.gmra.mxu0 %v782
      %v793 = vpop.f32.mrf.mxu0
      %v794 = vadd.f32 0.0, %v793
      %v795 = vpop.f32.mrf.mxu0
      %796 = vdwg.mxu0
      %v797 = vsel %vm705, %v794, 0.0
      %798 = vadd.xlane.f32.xlu0 %v797
      %v799 = vpop.xlane.xlu0 %798
      %v800 = vrcp.pop 32.0
      %v801 = vmul.f32 32.0, %v800
      %v802 = vsub.f32 1.0, %v801
      %v803 = vmul.f32 %v800, %v802
      %v804 = vadd.f32 %v800, %v803
      %vm805 = vweird.f32 %v800
      %v806 = vsel %vm805, %v800, %v804
      %v807 = vmul.f32 %v799, %v806
      %v808 = vsub.f32 %v794, %v807
      %v809 = vmul.f32 %v808, %v808
      %v810 = vsel %vm705, %v809, 0.0
      %811 = vadd.xlane.f32.xlu0 %v810
      %v812 = vpop.xlane.xlu0 %811
      %v813 = vmul.f32 %v812, %v806
      %v814 = vadd.f32 %v813, 1e-05
      %v815 = vrsqrt.pop %v814
      %v816 = vmul.f32 %v815, %v814
      %v817 = vmul.f32 %v816, %v815
      %v818 = vmul.f32 0.5, %v817
      %v819 = vsub.f32 1.5, %v818
      %v820 = vmul.f32 %v815, %v819
      %vm821 = vweird.f32 %v814
      %vm822 = vweird.f32 %v815
      %vm823 = vmor %vm821, %vm822
      %v824 = vsel %vm823, %v815, %v820
      %v825 = vmul.f32 %v808, %v824
      %v826 = vld [vmem:[%s9] sm:$0x1]
      %v828 = vperm.slane %v826, 0
      %v830 = vmul.f32 %v825, %v828
      %v831 = vld [vmem:[%s10] sm:$0x1]
      %v833 = vperm.slane %v831, 0
      %v835 = vadd.f32 %v830, %v833
      %v836 = vld [vmem:[%s11] sm:$0xf]
      %v837 = vld [vmem:[%s11 + $0x4] sm:$0xf]
      %v838 = vld [vmem:[%s11 + $0x8] sm:$0xf]
      %v839 = vld [vmem:[%s11 + $0xc] sm:$0xf]
      %v840 = vpack.c.bf16 %v835, %v835
      %v841 = vld [vmem:[%s12] sm:$0xf]
      %v842 = vld [vmem:[%s12 + $0x4] sm:$0xf]
      %v843 = vld [vmem:[%s12 + $0x8] sm:$0xf]
      %v844 = vld [vmem:[%s12 + $0xc] sm:$0xf]
      %v849 = vunpack.c.l.b16 %v841
      %v850 = vunpack.c.l.b16 %v842
      %v851 = vunpack.c.l.b16 %v843
      %v852 = vunpack.c.l.b16 %v844
      %v853 = vpack.c.b16 %v850, %v849
      %v854 = vpack.c.b16 %v852, %v851
      %v858 = vsel %vm705, %v840, 0
      %860 = vmatpush.bf16.msra.mxu0 0
      %861 = vmatpush.bf16.msra.mxu0 0
      %862 = vmatpush.bf16.msra.mxu0 0
      %863 = vmatpush.bf16.msra.mxu0 0
      %864 = vmatpush.bf16.msra.mxu0 0
      %865 = vmatpush.bf16.msra.mxu0 0
      %866 = vmatpush.bf16.msra.mxu0 %v854
      %867 = vmatpush.bf16.msra.mxu0 %v853
      %868 = vmatmul.bf16.gmra.mxu0 %v858
      %v869 = vpop.f32.mrf.mxu0
      %v870 = vadd.f32 0.0, %v869
      %v871 = vpop.f32.mrf.mxu0
      %872 = vdwg.mxu0
      %v877 = vunpack.c.l.b16 %v836
      %v878 = vunpack.c.l.b16 %v837
      %v879 = vunpack.c.l.b16 %v838
      %v880 = vunpack.c.l.b16 %v839
      %v881 = vpack.c.b16 %v878, %v877
      %v882 = vpack.c.b16 %v880, %v879
      %v886 = vsel %vm705, %v673, 0
      %888 = vmatpush.bf16.msra.mxu0 0
      %889 = vmatpush.bf16.msra.mxu0 0
      %890 = vmatpush.bf16.msra.mxu0 0
      %891 = vmatpush.bf16.msra.mxu0 0
      %892 = vmatpush.bf16.msra.mxu0 0
      %893 = vmatpush.bf16.msra.mxu0 0
      %894 = vmatpush.bf16.msra.mxu0 %v882
      %895 = vmatpush.bf16.msra.mxu0 %v881
      %896 = vmatmul.bf16.gmra.mxu0 %v886
      %v897 = vpop.f32.mrf.mxu0
      %v898 = vadd.f32 %v870, %v897
      %v899 = vpop.f32.mrf.mxu0
      %900 = vdwg.mxu0
      %v901 = vmax.f32 %v898, 0.0
      %v902 = vpack.c.bf16 %v901, %v901
      %v903 = vld [vmem:[%s13] sm:$0xf]
      %v904 = vld [vmem:[%s13 + $0x4] sm:$0xf]
      %v905 = vld [vmem:[%s13 + $0x8] sm:$0xf]
      %v906 = vld [vmem:[%s13 + $0xc] sm:$0xf]
      %v907 = vld [vmem:[%s13 + $0x10] sm:$0xf]
      %v908 = vld [vmem:[%s13 + $0x14] sm:$0xf]
      %v909 = vld [vmem:[%s13 + $0x18] sm:$0xf]
      %v910 = vld [vmem:[%s13 + $0x1c] sm:$0xf]
      %v919 = vunpack.c.l.b16 %v903
      %v920 = vunpack.c.l.b16 %v904
      %v921 = vunpack.c.l.b16 %v905
      %v922 = vunpack.c.l.b16 %v906
      %v923 = vunpack.c.l.b16 %v907
      %v924 = vunpack.c.l.b16 %v908
      %v925 = vunpack.c.l.b16 %v909
      %v926 = vunpack.c.l.b16 %v910
      %v927 = vpack.c.b16 %v920, %v919
      %v928 = vpack.c.b16 %v922, %v921
      %v929 = vpack.c.b16 %v924, %v923
      %v930 = vpack.c.b16 %v926, %v925
      %vm935 = vcmask 523264
      %v937 = vsel %vm935, %v902, 0
      %939 = vmatpush.bf16.msra.mxu0 0
      %940 = vmatpush.bf16.msra.mxu0 0
      %941 = vmatpush.bf16.msra.mxu0 0
      %942 = vmatpush.bf16.msra.mxu0 0
      %943 = vmatpush.bf16.msra.mxu0 %v930
      %944 = vmatpush.bf16.msra.mxu0 %v929
      %945 = vmatpush.bf16.msra.mxu0 %v928
      %946 = vmatpush.bf16.msra.mxu0 %v927
      %947 = vmatmul.bf16.gmra.mxu0 %v937
      %v948 = vpop.f32.mrf.mxu0
      %v949 = vadd.f32 0.0, %v948
      %v950 = vpop.f32.mrf.mxu0
      %951 = vdwg.mxu0
      %v952 = vsel %vm705, %v949, 0.0
      %953 = vadd.xlane.f32.xlu0 %v952
      %v954 = vpop.xlane.xlu0 %953
      %v955 = vmul.f32 %v954, %v806
      %v956 = vsub.f32 %v949, %v955
      %v957 = vmul.f32 %v956, %v956
      %v958 = vsel %vm705, %v957, 0.0
      %959 = vadd.xlane.f32.xlu0 %v958
      %v960 = vpop.xlane.xlu0 %959
      %v961 = vmul.f32 %v960, %v806
      %v962 = vadd.f32 %v961, 1e-05
      %v963 = vrsqrt.pop %v962
      %v964 = vmul.f32 %v963, %v962
      %v965 = vmul.f32 %v964, %v963
      %v966 = vmul.f32 0.5, %v965
      %v967 = vsub.f32 1.5, %v966
      %v968 = vmul.f32 %v963, %v967
      %vm969 = vweird.f32 %v962
      %vm970 = vweird.f32 %v963
      %vm971 = vmor %vm969, %vm970
      %v972 = vsel %vm971, %v963, %v968
      %v973 = vmul.f32 %v956, %v972
      %v974 = vld [vmem:[%s14] sm:$0x1]
      %v976 = vperm.slane %v974, 0
      %v978 = vmul.f32 %v973, %v976
      %v979 = vld [vmem:[%s15] sm:$0x1]
      %v981 = vperm.slane %v979, 0
      %v983 = vadd.f32 %v978, %v981
      %v984 = vld [vmem:[%s648] sm:$0xf]
      %v985 = vld [vmem:[%s658] sm:$0xf]
      %v986 = vld [vmem:[%s658 + $0x4] sm:$0xf]
      %v987 = vld [vmem:[%s658 + $0x8] sm:$0xf]
      %v988 = vld [vmem:[%s658 + $0xc] sm:$0xf]
      %v989 = vld [vmem:[%s664] sm:$0x1]
      %v990 = vunpack.c.l.bf16 %v984
      %vm991 = vcmp.gt.f32.partialorder %v990, 0.0
      %v992 = vadd.f32 %v990, 1.0
      %v993 = vmin.f32 %v990, 0.0
      %v994 = vmul.f32 %v993, 1.442695
      %v995 = vpow.pop %v994
      %v996 = vsel %vm991, %v992, %v995
      %v997 = vpack.c.bf16 %v996, %v996
      %v1002 = vunpack.c.l.b16 %v985
      %v1003 = vunpack.c.l.b16 %v986
      %v1004 = vunpack.c.l.b16 %v987
      %v1005 = vunpack.c.l.b16 %v988
      %v1006 = vpack.c.b16 %v1003, %v1002
      %v1007 = vpack.c.b16 %v1005, %v1004
      %v1011 = vsel %vm705, %v997, 0
      %1013 = vmatpush.bf16.msra.mxu0 0
      %1014 = vmatpush.bf16.msra.mxu0 0
      %1015 = vmatpush.bf16.msra.mxu0 0
      %1016 = vmatpush.bf16.msra.mxu0 0
      %1017 = vmatpush.bf16.msra.mxu0 0
      %1018 = vmatpush.bf16.msra.mxu0 0
      %1019 = vmatpush.bf16.msra.mxu0 %v1007
      %1020 = vmatpush.bf16.msra.mxu0 %v1006
      %1021 = vmatmul.bf16.gmra.mxu0 %v1011
      %v1022 = vpop.f32.mrf.mxu0
      %v1023 = vadd.f32 0.0, %v1022
      %v1024 = vpop.f32.mrf.mxu0
      %1025 = vdwg.mxu0
      %v1027 = vperm.slane %v989, 0
      %v1029 = vmul.f32 %v996, %v1027
      %v1031 = vsel %vm705, %v1029, 0
      %1033 = vmatpush.msra.mxu0 0.0
      %1034 = vmatpush.msra.mxu0 0.0
      %1035 = vmatpush.msra.mxu0 0.0
      %1036 = vmatpush.msra.mxu0 0.0
      %1037 = vmatpush.msra.mxu0 0.0
      %1038 = vmatpush.msra.mxu0 0.0
      %1039 = vmatpush.msra.mxu0 0.0
      %1040 = vmatpush.msra.mxu0 0.0
      %1041 = vmatpush.msra.mxu0 0.0
      %1042 = vmatpush.msra.mxu0 0.0
      %1043 = vmatpush.msra.mxu0 0.0
      %1044 = vmatpush.msra.mxu0 0.0
      %1045 = vmatpush.msra.mxu0 %v678
      %1046 = vmatpush.msra.mxu0 %v677
      %1047 = vmatpush.msra.mxu0 %v676
      %1048 = vmatpush.msra.mxu0 %v675
      %1049 = vmatmul.f32.gmra.mxu0 %v1031
      %v1050 = vpop.f32.mrf.mxu0
      %v1051 = vadd.f32 1e-06, %v1050
      %1052 = vdwg.mxu0
      %v1053 = vrcp.pop %v1051
      %v1054 = vmul.f32 %v1051, %v1053
      %v1055 = vsub.f32 1.0, %v1054
      %v1056 = vmul.f32 %v1053, %v1055
      %v1057 = vadd.f32 %v1053, %v1056
      %vm1058 = vweird.f32 %v1051
      %vm1059 = vweird.f32 %v1053
      %vm1060 = vmor %vm1058, %vm1059
      %v1061 = vsel %vm1060, %v1053, %v1057
      %v1062 = vand.u32 2147483647, %v1051
      %vm1063 = vcmp.eq.f32.partialorder %v1062, 8.507059e+37
      %v1064 = vand.u32 %v1051, 2147483648
      %v1065 = vor.u32 1.1754944e-38, %v1064
      %v1066 = vsel %vm1063, %v1065, %v1061
      %v1067 = vmul.f32 %v1023, %v1066
      %v1068 = vpack.c.bf16 %v1067, %v1067
      %v1070 = vsel %vm705, %v1068, 0
      %1072 = vmatpush.bf16.msra.mxu0 0
      %1073 = vmatpush.bf16.msra.mxu0 0
      %1074 = vmatpush.bf16.msra.mxu0 0
      %1075 = vmatpush.bf16.msra.mxu0 0
      %1076 = vmatpush.bf16.msra.mxu0 0
      %1077 = vmatpush.bf16.msra.mxu0 0
      %1078 = vmatpush.bf16.msra.mxu0 %v778
      %1079 = vmatpush.bf16.msra.mxu0 %v777
      %1080 = vmatmul.bf16.gmra.mxu0 %v1070
      %v1081 = vpop.f32.mrf.mxu0
      %v1082 = vadd.f32 0.0, %v1081
      %v1083 = vpop.f32.mrf.mxu0
      %1084 = vdwg.mxu0
      %v1085 = vsel %vm705, %v1082, 0.0
      %1086 = vadd.xlane.f32.xlu0 %v1085
      %v1087 = vpop.xlane.xlu0 %1086
      %v1088 = vmul.f32 %v1087, %v806
      %v1089 = vsub.f32 %v1082, %v1088
      %v1090 = vmul.f32 %v1089, %v1089
      %v1091 = vsel %vm705, %v1090, 0.0
      %1092 = vadd.xlane.f32.xlu0 %v1091
      %v1093 = vpop.xlane.xlu0 %1092
      %v1094 = vmul.f32 %v1093, %v806
      %v1095 = vadd.f32 %v1094, 1e-05
      %v1096 = vrsqrt.pop %v1095
      %v1097 = vmul.f32 %v1096, %v1095
      %v1098 = vmul.f32 %v1097, %v1096
      %v1099 = vmul.f32 0.5, %v1098
      %v1100 = vsub.f32 1.5, %v1099
      %v1101 = vmul.f32 %v1096, %v1100
      %vm1102 = vweird.f32 %v1095
      %vm1103 = vweird.f32 %v1096
      %vm1104 = vmor %vm1102, %vm1103
      %v1105 = vsel %vm1104, %v1096, %v1101
      %v1106 = vmul.f32 %v1089, %v1105
      %v1107 = vmul.f32 %v1106, %v828
      %v1108 = vadd.f32 %v1107, %v833
      %v1109 = vpack.c.bf16 %v1108, %v1108
      %v1111 = vsel %vm705, %v1109, 0
      %1113 = vmatpush.bf16.msra.mxu0 0
      %1114 = vmatpush.bf16.msra.mxu0 0
      %1115 = vmatpush.bf16.msra.mxu0 0
      %1116 = vmatpush.bf16.msra.mxu0 0
      %1117 = vmatpush.bf16.msra.mxu0 0
      %1118 = vmatpush.bf16.msra.mxu0 0
      %1119 = vmatpush.bf16.msra.mxu0 %v854
      %1120 = vmatpush.bf16.msra.mxu0 %v853
      %1121 = vmatmul.bf16.gmra.mxu0 %v1111
      %v1122 = vpop.f32.mrf.mxu0
      %v1123 = vadd.f32 0.0, %v1122
      %v1124 = vpop.f32.mrf.mxu0
      %1125 = vdwg.mxu0
      %1126 = vmatpush.bf16.msra.mxu0 0
      %1127 = vmatpush.bf16.msra.mxu0 0
      %1128 = vmatpush.bf16.msra.mxu0 0
      %1129 = vmatpush.bf16.msra.mxu0 0
      %1130 = vmatpush.bf16.msra.mxu0 0
      %1131 = vmatpush.bf16.msra.mxu0 0
      %1132 = vmatpush.bf16.msra.mxu0 %v882
      %1133 = vmatpush.bf16.msra.mxu0 %v881
      %1134 = vmatmul.bf16.gmra.mxu0 %v886
      %v1135 = vpop.f32.mrf.mxu0
      %v1136 = vadd.f32 %v1123, %v1135
      %v1137 = vpop.f32.mrf.mxu0
      %1138 = vdwg.mxu0
      %v1139 = vmax.f32 %v1136, 0.0
      %v1140 = vpack.c.bf16 %v1139, %v1139
      %v1142 = vsel %vm935, %v1140, 0
      %1144 = vmatpush.bf16.msra.mxu0 0
      %1145 = vmatpush.bf16.msra.mxu0 0
      %1146 = vmatpush.bf16.msra.mxu0 0
      %1147 = vmatpush.bf16.msra.mxu0 0
      %1148 = vmatpush.bf16.msra.mxu0 %v930
      %1149 = vmatpush.bf16.msra.mxu0 %v929
      %1150 = vmatpush.bf16.msra.mxu0 %v928
      %1151 = vmatpush.bf16.msra.mxu0 %v927
      %1152 = vmatmul.bf16.gmra.mxu0 %v1142
      %v1153 = vpop.f32.mrf.mxu0
      %v1154 = vadd.f32 0.0, %v1153
      %v1155 = vpop.f32.mrf.mxu0
      %1156 = vdwg.mxu0
      %v1157 = vsel %vm705, %v1154, 0.0
      %1158 = vadd.xlane.f32.xlu0 %v1157
      %v1159 = vpop.xlane.xlu0 %1158
      %v1160 = vmul.f32 %v1159, %v806
      %v1161 = vsub.f32 %v1154, %v1160
      %v1162 = vmul.f32 %v1161, %v1161
      %v1163 = vsel %vm705, %v1162, 0.0
      %1164 = vadd.xlane.f32.xlu0 %v1163
      %v1165 = vpop.xlane.xlu0 %1164
      %v1166 = vmul.f32 %v1165, %v806
      %v1167 = vadd.f32 %v1166, 1e-05
      %v1168 = vrsqrt.pop %v1167
      %v1169 = vmul.f32 %v1168, %v1167
      %v1170 = vmul.f32 %v1169, %v1168
      %v1171 = vmul.f32 0.5, %v1170
      %v1172 = vsub.f32 1.5, %v1171
      %v1173 = vmul.f32 %v1168, %v1172
      %vm1174 = vweird.f32 %v1167
      %vm1175 = vweird.f32 %v1168
      %vm1176 = vmor %vm1174, %vm1175
      %v1177 = vsel %vm1176, %v1168, %v1173
      %v1178 = vmul.f32 %v1161, %v1177
      %v1179 = vmul.f32 %v1178, %v976
      %v1180 = vadd.f32 %v1179, %v981
      %v1181 = vadd.f32 %v983, %v1180
      %v1182 = vmul.f32 %v1181, 0.5
      %v1183 = vadd.f32 %v674, %v1182
      %v1184 = vpack.c.bf16 %v1183, %v1183
      %vm1185 = vcmask 257024
      %1186 = vst.msk [vmem:[%s671] sm:$0xf] %vm1185, %v1184
      %p1187 = scmp.lt.s32.totalorder %s31, 1
      %s1188 = scalar_select %p1187, %s31, 1
      %p1189 = scmp.lt.s32.totalorder %s32, 0
      %s1190 = scalar_select %p1189, %s32, 0
      %s1191 = sadd.s32 %s1190, %s1188
      %s1192 = smul.addr %s1191, 4
      %s1193 = scalar_lea.vmem %s16, %s1192
      // Predicated region
      $region85: #{loftr_encoder_layer.12} parent=83 // pred_check
        %p1194 = pneg %p436
      $region86: #{loftr_encoder_layer.12} parent=83 // pred_check_branch
        %1196 = sbr.rel (%p1194) target = $region88
      $region87: #{loftr_encoder_layer.12} parent=83 // pred_region
        _
      $region88: #{loftr_encoder_layer.12} parent=83 // pred_fallthru
        _
    $region84: #{loftr_encoder_layer.12} parent=5 // pred_fallthru
      _
    %p1197 = scmp.le.s32.totalorder 2, %s22
    // Predicated region
    $region89: #{loftr_encoder_layer.12} parent=5 // pred_check
      %p1198 = pneg %p1197
    $region90: #{loftr_encoder_layer.12} parent=5 // pred_check_branch
      %1200 = sbr.rel (%p1198) target = $region92
    $region91: #{loftr_encoder_layer.12} parent=5 // pred_region
      %s1201 = ssub.s32 %s22, 2
      // Predicated region
      $region93: #{loftr_encoder_layer.12} parent=91 // pred_check
        %p1202 = pneg %p442
      $region94: #{loftr_encoder_layer.12} parent=91 // pred_check_branch
        %1204 = sbr.rel (%p1202) target = $region96
      $region95: #{loftr_encoder_layer.12} parent=91 // pred_region
        %p1205 = scmp.lt.s32.totalorder %s33, 1
        %s1206 = scalar_select %p1205, %s33, 1
        %p1207 = scmp.lt.s32.totalorder %s34, 0
        %s1208 = scalar_select %p1207, %s34, 0
        %s1209 = sadd.s32 %s1208, %s1206
        %s1210 = smul.addr %s1209, 4
        %s1211 = scalar_lea.vmem %s16, %s1210
      $region96: #{loftr_encoder_layer.12} parent=91 // pred_fallthru
        _
    $region92: #{loftr_encoder_layer.12} parent=5 // pred_fallthru
      _
  $region6: #{loftr_encoder_layer.12} parent=0 // loop_footer
    %s26 = sadd.s32 1, %s22
  $region7: #{loftr_encoder_layer.12} parent=0 // loop_footer_branch
    %21 = sbr.rel target = $region3
  $region8: #{loftr_encoder_layer.12} parent=0 // loop_exit
    _

// kernel: loftr_encoder_layer.13
$region0: #{loftr_encoder_layer.13}
  #allocation0 [shape = 'u32[]', space=smem, size = 0x4, offset = 0x4, fixed_abs, tag = 'smem constant byte address 0x4 - core index']
  #allocation1 [shape = 'u32[72,128]{1,0:T(1,128)}', space=vmem, size = 0x9000, scoped, tag = 'internal scratch']
  %s0 = inlined_call_operand.vmem [shape: bf16[2,8,32], index: 0, kind: input, shape index: {}]
  %s1 = inlined_call_operand.vmem [shape: bf16[2,8,32], index: 1, kind: input, shape index: {}]
  %s2 = inlined_call_operand.vmem [shape: bf16[2,8,32], index: 2, kind: input, shape index: {}]
  %s3 = inlined_call_operand.vmem [shape: bf16[2,32,32], index: 3, kind: input, shape index: {}]
  %s4 = inlined_call_operand.vmem [shape: bf16[2,32,32], index: 4, kind: input, shape index: {}]
  %s5 = inlined_call_operand.vmem [shape: f32[2,1,32], index: 5, kind: input, shape index: {}]
  %s6 = inlined_call_operand.vmem [shape: f32[2,1,32], index: 6, kind: input, shape index: {}]
  %s7 = inlined_call_operand.vmem [shape: f32[32,32], index: 7, kind: input, shape index: {}]
  %s8 = inlined_call_operand.vmem [shape: bf16[32,32], index: 8, kind: input, shape index: {}]
  %s9 = inlined_call_operand.vmem [shape: f32[1,32], index: 9, kind: input, shape index: {}]
  %s10 = inlined_call_operand.vmem [shape: f32[1,32], index: 10, kind: input, shape index: {}]
  %s11 = inlined_call_operand.vmem [shape: bf16[32,64], index: 11, kind: input, shape index: {}]
  %s12 = inlined_call_operand.vmem [shape: bf16[32,64], index: 12, kind: input, shape index: {}]
  %s13 = inlined_call_operand.vmem [shape: bf16[64,32], index: 13, kind: input, shape index: {}]
  %s14 = inlined_call_operand.vmem [shape: f32[1,32], index: 14, kind: input, shape index: {}]
  %s15 = inlined_call_operand.vmem [shape: f32[1,32], index: 15, kind: input, shape index: {}]
  %s16 = inlined_call_operand.hbm [shape: f32[2,8,32], index: 16, kind: output, shape index: {}]
  %s17 = sld [smem:[#allocation0]]
  $region97: #{loftr_encoder_layer.13} parent=0
    _
  %s19 = ssub.s32 1, %s17
  %s20 = scalar_select 0, %s19, %s17
  $region1: #{loftr_encoder_layer.13} parent=0
    #allocation2 [shape = 'u8[8192]{0}', space=vmem, size = 0x2000, scoped, tag = 'output window, operand 0']
    #allocation3 [shape = 's32[2]{0}', space=sflag, size = 0x8, scoped, tag = 'scoped memory for loftr_encoder_layer.13']
    %21 = vsyncpa [#allocation3], 0
    %s22 = scalar_lea.sflag [#allocation3], 1
    %23 = vsyncpa %s22, 0
    loop: start=0, step=1, limit=4
    $region2: #{loftr_encoder_layer.13} parent=1 // loop_pre_header
      _
    $region3: #{loftr_encoder_layer.13} parent=1 // loop_header
      %s25 = sphi 0, %s29
      %p26 = scmp.ge.s32.totalorder %s25, 4
      %s32 = sphi 0, %s44
      %s33 = sphi 0, %s40
      %s34 = sphi 0, %s32
      %s35 = sphi 0, %s33
      %s36 = sphi 0, %s34
      %s37 = sphi 0, %s35
      %s49 = sphi 0, %s51
      %s52 = sphi 0, %s49
      %s53 = sphi 0, %s52
      %s69 = sphi 0, %s53
      %s77 = sphi 0, %s79
      %s80 = sphi 0, %s77
      %s81 = sphi 0, %s80
      %s97 = sphi 0, %s81
      %s105 = sphi 0, %s107
      %s108 = sphi 0, %s105
      %s109 = sphi 0, %s108
      %s125 = sphi 0, %s109
      %s131 = sphi 0, %s133
      %s134 = sphi 0, %s131
      %s135 = sphi 0, %s134
      %s151 = sphi 0, %s135
      %s157 = sphi 0, %s159
      %s160 = sphi 0, %s157
      %s161 = sphi 0, %s160
      %s177 = sphi 0, %s161
      %s183 = sphi 0, %s185
      %s186 = sphi 0, %s183
      %s187 = sphi 0, %s186
      %s203 = sphi 0, %s187
      %s209 = sphi 0, %s211
      %s212 = sphi 0, %s209
      %s213 = sphi 0, %s212
      %s229 = sphi 0, %s213
      %s233 = sphi 0, %s233
      %s235 = sphi 0, %s233
      %s236 = sphi 0, %s235
      %s250 = sphi 0, %s236
      %s254 = sphi 0, %s254
      %s256 = sphi 0, %s254
      %s257 = sphi 0, %s256
      %s271 = sphi 0, %s257
      %s275 = sphi 0, %s275
      %s277 = sphi 0, %s275
      %s278 = sphi 0, %s277
      %s292 = sphi 0, %s278
      %s296 = sphi 0, %s296
      %s298 = sphi 0, %s296
      %s299 = sphi 0, %s298
      %s313 = sphi 0, %s299
      %s317 = sphi 0, %s317
      %s319 = sphi 0, %s317
      %s320 = sphi 0, %s319
      %s334 = sphi 0, %s320
      %s338 = sphi 0, %s338
      %s340 = sphi 0, %s338
      %s341 = sphi 0, %s340
      %s355 = sphi 0, %s341
      %s359 = sphi 0, %s359
      %s361 = sphi 0, %s359
      %s362 = sphi 0, %s361
      %s376 = sphi 0, %s362
      %s380 = sphi 0, %s380
      %s382 = sphi 0, %s380
      %s383 = sphi 0, %s382
      %s397 = sphi 0, %s383
      %s401 = sphi 0, %s401
      %s403 = sphi 0, %s401
      %s404 = sphi 0, %s403
      %s418 = sphi 0, %s404
      %s426 = sphi 0, %s428
      %s429 = sphi 0, %s426
      %s430 = sphi 0, %s429
      %s446 = sphi 0, %s430
    $region4: #{loftr_encoder_layer.13} parent=1 // loop_header_branch
      %28 = sbr.rel (%p26) target = $region8
    $region5: #{loftr_encoder_layer.13} parent=1 // loop_body
      %s30 = ssub.s32 %s25, 1
      %s31 = ssub.s32 %s25, 2
      %s38 = sadd.s32 1, %s33
      %p39 = scmp.ge.s32.totalorder %s38, 1
      %s40 = scalar_select %p39, 0, %s38
      %s41 = sadd.s32 1, %s32
      %s42 = scalar_select %p39, %s41, %s32
      %p43 = scmp.ge.s32.totalorder %s42, 2
      %s44 = scalar_select %p43, 0, %s42
      %s45 = ssub.s32 %s32, %s44
      %s46 = ssub.s32 %s33, %s40
      %s47 = sor.u32 %s45, %s46
      %p48 = scmp.eq.s32.totalorder %s47, 0
      %s50 = sadd.s32 %s49, 1
      %s51 = scalar_select %p48, %s49, %s50
      %p54 = pneg %p48
      %p55 = scmp.eq.s32.totalorder %s25, 1
      %p56 = por %p54, %p55
      %p57 = scmp.ne.s32.totalorder %s49, %s52
      %p58 = scmp.eq.s32.totalorder %s25, 0
      %p59 = por %p57, %p58
      %p60 = scmp.ne.s32.totalorder %s49, %s52
      %p61 = scmp.eq.s32.totalorder %s30, 1
      %p62 = por %p60, %p61
      %p63 = scmp.ne.s32.totalorder %s52, %s53
      %p64 = scmp.eq.s32.totalorder %s30, 0
      %p65 = por %p63, %p64
      %p66 = scmp.ne.s32.totalorder %s52, %s53
      %p67 = scmp.eq.s32.totalorder %s31, 1
      %p68 = por %p66, %p67
      %p70 = scmp.ne.s32.totalorder %s53, %s69
      %p71 = scmp.eq.s32.totalorder %s31, 0
      %p72 = por %p70, %p71
      %s73 = ssub.s32 %s32, %s44
      %s74 = ssub.s32 %s33, %s40
      %s75 = sor.u32 %s73, %s74
      %p76 = scmp.eq.s32.totalorder %s75, 0
      %s78 = sadd.s32 %s77, 1
      %s79 = scalar_select %p76, %s77, %s78
      %p82 = pneg %p76
      %p83 = scmp.eq.s32.totalorder %s25, 1
      %p84 = por %p82, %p83
      %p85 = scmp.ne.s32.totalorder %s77, %s80
      %p86 = scmp.eq.s32.totalorder %s25, 0
      %p87 = por %p85, %p86
      %p88 = scmp.ne.s32.totalorder %s77, %s80
      %p89 = scmp.eq.s32.totalorder %s30, 1
      %p90 = por %p88, %p89
      %p91 = scmp.ne.s32.totalorder %s80, %s81
      %p92 = scmp.eq.s32.totalorder %s30, 0
      %p93 = por %p91, %p92
      %p94 = scmp.ne.s32.totalorder %s80, %s81
      %p95 = scmp.eq.s32.totalorder %s31, 1
      %p96 = por %p94, %p95
      %p98 = scmp.ne.s32.totalorder %s81, %s97
      %p99 = scmp.eq.s32.totalorder %s31, 0
      %p100 = por %p98, %p99
      %s101 = ssub.s32 %s32, %s44
      %s102 = ssub.s32 %s33, %s40
      %s103 = sor.u32 %s101, %s102
      %p104 = scmp.eq.s32.totalorder %s103, 0
      %s106 = sadd.s32 %s105, 1
      %s107 = scalar_select %p104, %s105, %s106
      %p110 = pneg %p104
      %p111 = scmp.eq.s32.totalorder %s25, 1
      %p112 = por %p110, %p111
      %p113 = scmp.ne.s32.totalorder %s105, %s108
      %p114 = scmp.eq.s32.totalorder %s25, 0
      %p115 = por %p113, %p114
      %p116 = scmp.ne.s32.totalorder %s105, %s108
      %p117 = scmp.eq.s32.totalorder %s30, 1
      %p118 = por %p116, %p117
      %p119 = scmp.ne.s32.totalorder %s108, %s109
      %p120 = scmp.eq.s32.totalorder %s30, 0
      %p121 = por %p119, %p120
      %p122 = scmp.ne.s32.totalorder %s108, %s109
      %p123 = scmp.eq.s32.totalorder %s31, 1
      %p124 = por %p122, %p123
      %p126 = scmp.ne.s32.totalorder %s109, %s125
      %p127 = scmp.eq.s32.totalorder %s31, 0
      %p128 = por %p126, %p127
      %s129 = ssub.s32 %s32, %s44
      %p130 = scmp.eq.s32.totalorder %s129, 0
      %s132 = sadd.s32 %s131, 1
      %s133 = scalar_select %p130, %s131, %s132
      %p136 = pneg %p130
      %p137 = scmp.eq.s32.totalorder %s25, 1
      %p138 = por %p136, %p137
      %p139 = scmp.ne.s32.totalorder %s131, %s134
      %p140 = scmp.eq.s32.totalorder %s25, 0
      %p141 = por %p139, %p140
      %p142 = scmp.ne.s32.totalorder %s131, %s134
      %p143 = scmp.eq.s32.totalorder %s30, 1
      %p144 = por %p142, %p143
      %p145 = scmp.ne.s32.totalorder %s134, %s135
      %p146 = scmp.eq.s32.totalorder %s30, 0
      %p147 = por %p145, %p146
      %p148 = scmp.ne.s32.totalorder %s134, %s135
      %p149 = scmp.eq.s32.totalorder %s31, 1
      %p150 = por %p148, %p149
      %p152 = scmp.ne.s32.totalorder %s135, %s151
      %p153 = scmp.eq.s32.totalorder %s31, 0
      %p154 = por %p152, %p153
      %s155 = ssub.s32 %s32, %s44
      %p156 = scmp.eq.s32.totalorder %s155, 0
      %s158 = sadd.s32 %s157, 1
      %s159 = scalar_select %p156, %s157, %s158
      %p162 = pneg %p156
      %p163 = scmp.eq.s32.totalorder %s25, 1
      %p164 = por %p162, %p163
      %p165 = scmp.ne.s32.totalorder %s157, %s160
      %p166 = scmp.eq.s32.totalorder %s25, 0
      %p167 = por %p165, %p166
      %p168 = scmp.ne.s32.totalorder %s157, %s160
      %p169 = scmp.eq.s32.totalorder %s30, 1
      %p170 = por %p168, %p169
      %p171 = scmp.ne.s32.totalorder %s160, %s161
      %p172 = scmp.eq.s32.totalorder %s30, 0
      %p173 = por %p171, %p172
      %p174 = scmp.ne.s32.totalorder %s160, %s161
      %p175 = scmp.eq.s32.totalorder %s31, 1
      %p176 = por %p174, %p175
      %p178 = scmp.ne.s32.totalorder %s161, %s177
      %p179 = scmp.eq.s32.totalorder %s31, 0
      %p180 = por %p178, %p179
      %s181 = ssub.s32 %s32, %s44
      %p182 = scmp.eq.s32.totalorder %s181, 0
      %s184 = sadd.s32 %s183, 1
      %s185 = scalar_select %p182, %s183, %s184
      %p188 = pneg %p182
      %p189 = scmp.eq.s32.totalorder %s25, 1
      %p190 = por %p188, %p189
      %p191 = scmp.ne.s32.totalorder %s183, %s186
      %p192 = scmp.eq.s32.totalorder %s25, 0
      %p193 = por %p191, %p192
      %p194 = scmp.ne.s32.totalorder %s183, %s186
      %p195 = scmp.eq.s32.totalorder %s30, 1
      %p196 = por %p194, %p195
      %p197 = scmp.ne.s32.totalorder %s186, %s187
      %p198 = scmp.eq.s32.totalorder %s30, 0
      %p199 = por %p197, %p198
      %p200 = scmp.ne.s32.totalorder %s186, %s187
      %p201 = scmp.eq.s32.totalorder %s31, 1
      %p202 = por %p200, %p201
      %p204 = scmp.ne.s32.totalorder %s187, %s203
      %p205 = scmp.eq.s32.totalorder %s31, 0
      %p206 = por %p204, %p205
      %s207 = ssub.s32 %s32, %s44
      %p208 = scmp.eq.s32.totalorder %s207, 0
      %s210 = sadd.s32 %s209, 1
      %s211 = scalar_select %p208, %s209, %s210
      %p214 = pneg %p208
      %p215 = scmp.eq.s32.totalorder %s25, 1
      %p216 = por %p214, %p215
      %p217 = scmp.ne.s32.totalorder %s209, %s212
      %p218 = scmp.eq.s32.totalorder %s25, 0
      %p219 = por %p217, %p218
      %p220 = scmp.ne.s32.totalorder %s209, %s212
      %p221 = scmp.eq.s32.totalorder %s30, 1
      %p222 = por %p220, %p221
      %p223 = scmp.ne.s32.totalorder %s212, %s213
      %p224 = scmp.eq.s32.totalorder %s30, 0
      %p225 = por %p223, %p224
      %p226 = scmp.ne.s32.totalorder %s212, %s213
      %p227 = scmp.eq.s32.totalorder %s31, 1
      %p228 = por %p226, %p227
      %p230 = scmp.ne.s32.totalorder %s213, %s229
      %p231 = scmp.eq.s32.totalorder %s31, 0
      %p232 = por %p230, %p231
      %s234 = sadd.s32 %s233, 1
      %p237 = scmp.eq.s32.totalorder %s25, 1
      %p238 = scmp.ne.s32.totalorder %s233, %s235
      %p239 = scmp.eq.s32.totalorder %s25, 0
      %p240 = por %p238, %p239
      %p241 = scmp.ne.s32.totalorder %s233, %s235
      %p242 = scmp.eq.s32.totalorder %s30, 1
      %p243 = por %p241, %p242
      %p244 = scmp.ne.s32.totalorder %s235, %s236
      %p245 = scmp.eq.s32.totalorder %s30, 0
      %p246 = por %p244, %p245
      %p247 = scmp.ne.s32.totalorder %s235, %s236
      %p248 = scmp.eq.s32.totalorder %s31, 1
      %p249 = por %p247, %p248
      %p251 = scmp.ne.s32.totalorder %s236, %s250
      %p252 = scmp.eq.s32.totalorder %s31, 0
      %p253 = por %p251, %p252
      %s255 = sadd.s32 %s254, 1
      %p258 = scmp.eq.s32.totalorder %s25, 1
      %p259 = scmp.ne.s32.totalorder %s254, %s256
      %p260 = scmp.eq.s32.totalorder %s25, 0
      %p261 = por %p259, %p260
      %p262 = scmp.ne.s32.totalorder %s254, %s256
      %p263 = scmp.eq.s32.totalorder %s30, 1
      %p264 = por %p262, %p263
      %p265 = scmp.ne.s32.totalorder %s256, %s257
      %p266 = scmp.eq.s32.totalorder %s30, 0
      %p267 = por %p265, %p266
      %p268 = scmp.ne.s32.totalorder %s256, %s257
      %p269 = scmp.eq.s32.totalorder %s31, 1
      %p270 = por %p268, %p269
      %p272 = scmp.ne.s32.totalorder %s257, %s271
      %p273 = scmp.eq.s32.totalorder %s31, 0
      %p274 = por %p272, %p273
      %s276 = sadd.s32 %s275, 1
      %p279 = scmp.eq.s32.totalorder %s25, 1
      %p280 = scmp.ne.s32.totalorder %s275, %s277
      %p281 = scmp.eq.s32.totalorder %s25, 0
      %p282 = por %p280, %p281
      %p283 = scmp.ne.s32.totalorder %s275, %s277
      %p284 = scmp.eq.s32.totalorder %s30, 1
      %p285 = por %p283, %p284
      %p286 = scmp.ne.s32.totalorder %s277, %s278
      %p287 = scmp.eq.s32.totalorder %s30, 0
      %p288 = por %p286, %p287
      %p289 = scmp.ne.s32.totalorder %s277, %s278
      %p290 = scmp.eq.s32.totalorder %s31, 1
      %p291 = por %p289, %p290
      %p293 = scmp.ne.s32.totalorder %s278, %s292
      %p294 = scmp.eq.s32.totalorder %s31, 0
      %p295 = por %p293, %p294
      %s297 = sadd.s32 %s296, 1
      %p300 = scmp.eq.s32.totalorder %s25, 1
      %p301 = scmp.ne.s32.totalorder %s296, %s298
      %p302 = scmp.eq.s32.totalorder %s25, 0
      %p303 = por %p301, %p302
      %p304 = scmp.ne.s32.totalorder %s296, %s298
      %p305 = scmp.eq.s32.totalorder %s30, 1
      %p306 = por %p304, %p305
      %p307 = scmp.ne.s32.totalorder %s298, %s299
      %p308 = scmp.eq.s32.totalorder %s30, 0
      %p309 = por %p307, %p308
      %p310 = scmp.ne.s32.totalorder %s298, %s299
      %p311 = scmp.eq.s32.totalorder %s31, 1
      %p312 = por %p310, %p311
      %p314 = scmp.ne.s32.totalorder %s299, %s313
      %p315 = scmp.eq.s32.totalorder %s31, 0
      %p316 = por %p314, %p315
      %s318 = sadd.s32 %s317, 1
      %p321 = scmp.eq.s32.totalorder %s25, 1
      %p322 = scmp.ne.s32.totalorder %s317, %s319
      %p323 = scmp.eq.s32.totalorder %s25, 0
      %p324 = por %p322, %p323
      %p325 = scmp.ne.s32.totalorder %s317, %s319
      %p326 = scmp.eq.s32.totalorder %s30, 1
      %p327 = por %p325, %p326
      %p328 = scmp.ne.s32.totalorder %s319, %s320
      %p329 = scmp.eq.s32.totalorder %s30, 0
      %p330 = por %p328, %p329
      %p331 = scmp.ne.s32.totalorder %s319, %s320
      %p332 = scmp.eq.s32.totalorder %s31, 1
      %p333 = por %p331, %p332
      %p335 = scmp.ne.s32.totalorder %s320, %s334
      %p336 = scmp.eq.s32.totalorder %s31, 0
      %p337 = por %p335, %p336
      %s339 = sadd.s32 %s338, 1
      %p342 = scmp.eq.s32.totalorder %s25, 1
      %p343 = scmp.ne.s32.totalorder %s338, %s340
      %p344 = scmp.eq.s32.totalorder %s25, 0
      %p345 = por %p343, %p344
      %p346 = scmp.ne.s32.totalorder %s338, %s340
      %p347 = scmp.eq.s32.totalorder %s30, 1
      %p348 = por %p346, %p347
      %p349 = scmp.ne.s32.totalorder %s340, %s341
      %p350 = scmp.eq.s32.totalorder %s30, 0
      %p351 = por %p349, %p350
      %p352 = scmp.ne.s32.totalorder %s340, %s341
      %p353 = scmp.eq.s32.totalorder %s31, 1
      %p354 = por %p352, %p353
      %p356 = scmp.ne.s32.totalorder %s341, %s355
      %p357 = scmp.eq.s32.totalorder %s31, 0
      %p358 = por %p356, %p357
      %s360 = sadd.s32 %s359, 1
      %p363 = scmp.eq.s32.totalorder %s25, 1
      %p364 = scmp.ne.s32.totalorder %s359, %s361
      %p365 = scmp.eq.s32.totalorder %s25, 0
      %p366 = por %p364, %p365
      %p367 = scmp.ne.s32.totalorder %s359, %s361
      %p368 = scmp.eq.s32.totalorder %s30, 1
      %p369 = por %p367, %p368
      %p370 = scmp.ne.s32.totalorder %s361, %s362
      %p371 = scmp.eq.s32.totalorder %s30, 0
      %p372 = por %p370, %p371
      %p373 = scmp.ne.s32.totalorder %s361, %s362
      %p374 = scmp.eq.s32.totalorder %s31, 1
      %p375 = por %p373, %p374
      %p377 = scmp.ne.s32.totalorder %s362, %s376
      %p378 = scmp.eq.s32.totalorder %s31, 0
      %p379 = por %p377, %p378
      %s381 = sadd.s32 %s380, 1
      %p384 = scmp.eq.s32.totalorder %s25, 1
      %p385 = scmp.ne.s32.totalorder %s380, %s382
      %p386 = scmp.eq.s32.totalorder %s25, 0
      %p387 = por %p385, %p386
      %p388 = scmp.ne.s32.totalorder %s380, %s382
      %p389 = scmp.eq.s32.totalorder %s30, 1
      %p390 = por %p388, %p389
      %p391 = scmp.ne.s32.totalorder %s382, %s383
      %p392 = scmp.eq.s32.totalorder %s30, 0
      %p393 = por %p391, %p392
      %p394 = scmp.ne.s32.totalorder %s382, %s383
      %p395 = scmp.eq.s32.totalorder %s31, 1
      %p396 = por %p394, %p395
      %p398 = scmp.ne.s32.totalorder %s383, %s397
      %p399 = scmp.eq.s32.totalorder %s31, 0
      %p400 = por %p398, %p399
      %s402 = sadd.s32 %s401, 1
      %p405 = scmp.eq.s32.totalorder %s25, 1
      %p406 = scmp.ne.s32.totalorder %s401, %s403
      %p407 = scmp.eq.s32.totalorder %s25, 0
      %p408 = por %p406, %p407
      %p409 = scmp.ne.s32.totalorder %s401, %s403
      %p410 = scmp.eq.s32.totalorder %s30, 1
      %p411 = por %p409, %p410
      %p412 = scmp.ne.s32.totalorder %s403, %s404
      %p413 = scmp.eq.s32.totalorder %s30, 0
      %p414 = por %p412, %p413
      %p415 = scmp.ne.s32.totalorder %s403, %s404
      %p416 = scmp.eq.s32.totalorder %s31, 1
      %p417 = por %p415, %p416
      %p419 = scmp.ne.s32.totalorder %s404, %s418
      %p420 = scmp.eq.s32.totalorder %s31, 0
      %p421 = por %p419, %p420
      %s422 = ssub.s32 %s32, %s44
      %s423 = ssub.s32 %s33, %s40
      %s424 = sor.u32 %s422, %s423
      %p425 = scmp.eq.s32.totalorder %s424, 0
      %s427 = sadd.s32 %s426, 1
      %s428 = scalar_select %p425, %s426, %s427
      %p431 = pneg %p425
      %p432 = scmp.eq.s32.totalorder %s25, 1
      %p433 = por %p431, %p432
      %p434 = scmp.ne.s32.totalorder %s426, %s429
      %p435 = scmp.eq.s32.totalorder %s25, 0
      %p436 = por %p434, %p435
      %p437 = scmp.ne.s32.totalorder %s426, %s429
      %p438 = scmp.eq.s32.totalorder %s30, 1
      %p439 = por %p437, %p438
      %p440 = scmp.ne.s32.totalorder %s429, %s430
      %p441 = scmp.eq.s32.totalorder %s30, 0
      %p442 = por %p440, %p441
      %p443 = scmp.ne.s32.totalorder %s429, %s430
      %p444 = scmp.eq.s32.totalorder %s31, 1
      %p445 = por %p443, %p444
      %p447 = scmp.ne.s32.totalorder %s430, %s446
      %p448 = scmp.eq.s32.totalorder %s31, 0
      %p449 = por %p447, %p448
      %p450 = scmp.le.s32.totalorder 1, %s25
      %p451 = scmp.lt.s32.totalorder %s25, 3
      %p452 = pnand %p450, %p451
      %p453 = pneg %p452
      // Predicated region
      $region9: #{loftr_encoder_layer.13} parent=5 // pred_check
        _
      $region10: #{loftr_encoder_layer.13} parent=5 // pred_check_branch
        %455 = sbr.rel (%p452) target = $region12
      $region11: #{loftr_encoder_layer.13} parent=5 // pred_region
        %s456 = ssub.s32 %s25, 1
        // Predicated region
        $region13: #{loftr_encoder_layer.13} parent=11 // pred_check
          %p457 = pneg %p246
        $region14: #{loftr_encoder_layer.13} parent=11 // pred_check_branch
          %459 = sbr.rel (%p457) target = $region16
        $region15: #{loftr_encoder_layer.13} parent=11 // pred_region
          _
        $region16: #{loftr_encoder_layer.13} parent=11 // pred_fallthru
          _
        // Predicated region
        $region17: #{loftr_encoder_layer.13} parent=11 // pred_check
          %p460 = pneg %p267
        $region18: #{loftr_encoder_layer.13} parent=11 // pred_check_branch
          %462 = sbr.rel (%p460) target = $region20
        $region19: #{loftr_encoder_layer.13} parent=11 // pred_region
          _
        $region20: #{loftr_encoder_layer.13} parent=11 // pred_fallthru
          _
        // Predicated region
        $region21: #{loftr_encoder_layer.13} parent=11 // pred_check
          %p463 = pneg %p288
        $region22: #{loftr_encoder_layer.13} parent=11 // pred_check_branch
          %465 = sbr.rel (%p463) target = $region24
        $region23: #{loftr_encoder_layer.13} parent=11 // pred_region
          _
        $region24: #{loftr_encoder_layer.13} parent=11 // pred_fallthru
          _
        // Predicated region
        $region25: #{loftr_encoder_layer.13} parent=11 // pred_check
          %p466 = pneg %p309
        $region26: #{loftr_encoder_layer.13} parent=11 // pred_check_branch
          %468 = sbr.rel (%p466) target = $region28
        $region27: #{loftr_encoder_layer.13} parent=11 // pred_region
          _
        $region28: #{loftr_encoder_layer.13} parent=11 // pred_fallthru
          _
        // Predicated region
        $region29: #{loftr_encoder_layer.13} parent=11 // pred_check
          %p469 = pneg %p330
        $region30: #{loftr_encoder_layer.13} parent=11 // pred_check_branch
          %471 = sbr.rel (%p469) target = $region32
        $region31: #{loftr_encoder_layer.13} parent=11 // pred_region
          _
        $region32: #{loftr_encoder_layer.13} parent=11 // pred_fallthru
          _
        // Predicated region
        $region33: #{loftr_encoder_layer.13} parent=11 // pred_check
          %p472 = pneg %p351
        $region34: #{loftr_encoder_layer.13} parent=11 // pred_check_branch
          %474 = sbr.rel (%p472) target = $region36
        $region35: #{loftr_encoder_layer.13} parent=11 // pred_region
          _
        $region36: #{loftr_encoder_layer.13} parent=11 // pred_fallthru
          _
        // Predicated region
        $region37: #{loftr_encoder_layer.13} parent=11 // pred_check
          %p475 = pneg %p372
        $region38: #{loftr_encoder_layer.13} parent=11 // pred_check_branch
          %477 = sbr.rel (%p475) target = $region40
        $region39: #{loftr_encoder_layer.13} parent=11 // pred_region
          _
        $region40: #{loftr_encoder_layer.13} parent=11 // pred_fallthru
          _
        // Predicated region
        $region41: #{loftr_encoder_layer.13} parent=11 // pred_check
          %p478 = pneg %p393
        $region42: #{loftr_encoder_layer.13} parent=11 // pred_check_branch
          %480 = sbr.rel (%p478) target = $region44
        $region43: #{loftr_encoder_layer.13} parent=11 // pred_region
          _
        $region44: #{loftr_encoder_layer.13} parent=11 // pred_fallthru
          _
        // Predicated region
        $region45: #{loftr_encoder_layer.13} parent=11 // pred_check
          %p481 = pneg %p414
        $region46: #{loftr_encoder_layer.13} parent=11 // pred_check_branch
          %483 = sbr.rel (%p481) target = $region48
        $region47: #{loftr_encoder_layer.13} parent=11 // pred_region
          _
        $region48: #{loftr_encoder_layer.13} parent=11 // pred_fallthru
          _
      $region12: #{loftr_encoder_layer.13} parent=5 // pred_fallthru
        _
      %p484 = scmp.lt.s32.totalorder %s25, 2
      // Predicated region
      $region49: #{loftr_encoder_layer.13} parent=5 // pred_check
        %p485 = pneg %p484
      $region50: #{loftr_encoder_layer.13} parent=5 // pred_check_branch
        %487 = sbr.rel (%p485) target = $region52
      $region51: #{loftr_encoder_layer.13} parent=5 // pred_region
        // Predicated region
        $region53: #{loftr_encoder_layer.13} parent=51 // pred_check
          %p488 = pneg %p59
        $region54: #{loftr_encoder_layer.13} parent=51 // pred_check_branch
          %490 = sbr.rel (%p488) target = $region56
        $region55: #{loftr_encoder_layer.13} parent=51 // pred_region
          %p491 = scmp.lt.s32.totalorder %s32, 1
          %s492 = scalar_select %p491, %s32, 1
          %p493 = scmp.lt.s32.totalorder %s33, 0
          %s494 = scalar_select %p493, %s33, 0
          %s495 = sadd.s32 %s494, %s492
          %s496 = smul.addr %s495, 4
          %s497 = scalar_lea.vmem %s0, %s496
        $region56: #{loftr_encoder_layer.13} parent=51 // pred_fallthru
          _
        // Predicated region
        $region57: #{loftr_encoder_layer.13} parent=51 // pred_check
          %p498 = pneg %p87
        $region58: #{loftr_encoder_layer.13} parent=51 // pred_check_branch
          %500 = sbr.rel (%p498) target = $region60
        $region59: #{loftr_encoder_layer.13} parent=51 // pred_region
          %p501 = scmp.lt.s32.totalorder %s32, 1
          %s502 = scalar_select %p501, %s32, 1
          %p503 = scmp.lt.s32.totalorder %s33, 0
          %s504 = scalar_select %p503, %s33, 0
          %s505 = sadd.s32 %s504, %s502
          %s506 = smul.addr %s505, 4
          %s507 = scalar_lea.vmem %s1, %s506
        $region60: #{loftr_encoder_layer.13} parent=51 // pred_fallthru
          _
        // Predicated region
        $region61: #{loftr_encoder_layer.13} parent=51 // pred_check
          %p508 = pneg %p115
        $region62: #{loftr_encoder_layer.13} parent=51 // pred_check_branch
          %510 = sbr.rel (%p508) target = $region64
        $region63: #{loftr_encoder_layer.13} parent=51 // pred_region
          %p511 = scmp.lt.s32.totalorder %s32, 1
          %s512 = scalar_select %p511, %s32, 1
          %p513 = scmp.lt.s32.totalorder %s33, 0
          %s514 = scalar_select %p513, %s33, 0
          %s515 = sadd.s32 %s514, %s512
          %s516 = smul.addr %s515, 4
          %s517 = scalar_lea.vmem %s2, %s516
        $region64: #{loftr_encoder_layer.13} parent=51 // pred_fallthru
          _
        // Predicated region
        $region65: #{loftr_encoder_layer.13} parent=51 // pred_check
          %p518 = pneg %p141
        $region66: #{loftr_encoder_layer.13} parent=51 // pred_check_branch
          %520 = sbr.rel (%p518) target = $region68
        $region67: #{loftr_encoder_layer.13} parent=51 // pred_region
          %p521 = scmp.lt.s32.totalorder %s32, 1
          %s522 = scalar_select %p521, %s32, 1
          %s523 = smul.addr %s522, 4
          %s524 = smul.addr %s523, 4
          %s525 = scalar_lea.vmem %s3, %s524
        $region68: #{loftr_encoder_layer.13} parent=51 // pred_fallthru
          _
        // Predicated region
        $region69: #{loftr_encoder_layer.13} parent=51 // pred_check
          %p526 = pneg %p167
        $region70: #{loftr_encoder_layer.13} parent=51 // pred_check_branch
          %528 = sbr.rel (%p526) target = $region72
        $region71: #{loftr_encoder_layer.13} parent=51 // pred_region
          %p529 = scmp.lt.s32.totalorder %s32, 1
          %s530 = scalar_select %p529, %s32, 1
          %s531 = smul.addr %s530, 4
          %s532 = smul.addr %s531, 4
          %s533 = scalar_lea.vmem %s4, %s532
        $region72: #{loftr_encoder_layer.13} parent=51 // pred_fallthru
          _
        // Predicated region
        $region73: #{loftr_encoder_layer.13} parent=51 // pred_check
          %p534 = pneg %p193
        $region74: #{loftr_encoder_layer.13} parent=51 // pred_check_branch
          %536 = sbr.rel (%p534) target = $region76
        $region75: #{loftr_encoder_layer.13} parent=51 // pred_region
          %p537 = scmp.lt.s32.totalorder %s32, 1
          %s538 = scalar_select %p537, %s32, 1
          %s539 = scalar_lea.vmem %s5, %s538
        $region76: #{loftr_encoder_layer.13} parent=51 // pred_fallthru
          _
        // Predicated region
        $region77: #{loftr_encoder_layer.13} parent=51 // pred_check
          %p540 = pneg %p219
        $region78: #{loftr_encoder_layer.13} parent=51 // pred_check_branch
          %542 = sbr.rel (%p540) target = $region80
        $region79: #{loftr_encoder_layer.13} parent=51 // pred_region
          %p543 = scmp.lt.s32.totalorder %s32, 1
          %s544 = scalar_select %p543, %s32, 1
          %s545 = scalar_lea.vmem %s6, %s544
        $region80: #{loftr_encoder_layer.13} parent=51 // pred_fallthru
          _
      $region52: #{loftr_encoder_layer.13} parent=5 // pred_fallthru
        _
      %p546 = scmp.le.s32.totalorder 1, %s25
      %p547 = scmp.lt.s32.totalorder %s25, 3
      %p548 = pnand %p546, %p547
      %p549 = pneg %p548
      // Predicated region
      $region81: #{loftr_encoder_layer.13} parent=5 // pred_check
        _
      $region82: #{loftr_encoder_layer.13} parent=5 // pred_check_branch
        %551 = sbr.rel (%p548) target = $region84
      $region83: #{loftr_encoder_layer.13} parent=5 // pred_region
        %s552 = ssub.s32 %s25, 1
        %p553 = scmp.lt.s32.totalorder %s34, 1
        %s554 = scalar_select %p553, %s34, 1
        %p555 = scmp.lt.s32.totalorder %s35, 0
        %s556 = scalar_select %p555, %s35, 0
        %s557 = sadd.s32 %s556, %s554
        %s558 = smul.addr %s557, 4
        %s559 = scalar_lea.vmem %s0, %s558
        %p560 = pneg %p65
        %p561 = pneg %p62
        %p562 = scmp.lt.s32.totalorder %s34, 1
        %s563 = scalar_select %p562, %s34, 1
        %p564 = scmp.lt.s32.totalorder %s35, 0
        %s565 = scalar_select %p564, %s35, 0
        %s566 = sadd.s32 %s565, %s563
        %s567 = smul.addr %s566, 4
        %s568 = scalar_lea.vmem %s1, %s567
        %p569 = pneg %p93
        %p570 = pneg %p90
        %p571 = scmp.lt.s32.totalorder %s34, 1
        %s572 = scalar_select %p571, %s34, 1
        %p573 = scmp.lt.s32.totalorder %s35, 0
        %s574 = scalar_select %p573, %s35, 0
        %s575 = sadd.s32 %s574, %s572
        %s576 = smul.addr %s575, 4
        %s577 = scalar_lea.vmem %s2, %s576
        %p578 = pneg %p121
        %p579 = pneg %p118
        %p580 = scmp.lt.s32.totalorder %s34, 1
        %s581 = scalar_select %p580, %s34, 1
        %s582 = smul.addr %s581, 4
        %s583 = smul.addr %s582, 4
        %s584 = scalar_lea.vmem %s3, %s583
        %p585 = pneg %p147
        %p586 = pneg %p144
        %p587 = scmp.lt.s32.totalorder %s34, 1
        %s588 = scalar_select %p587, %s34, 1
        %s589 = smul.addr %s588, 4
        %s590 = smul.addr %s589, 4
        %s591 = scalar_lea.vmem %s4, %s590
        %p592 = pneg %p173
        %p593 = pneg %p170
        %p594 = scmp.lt.s32.totalorder %s34, 1
        %s595 = scalar_select %p594, %s34, 1
        %s596 = scalar_lea.vmem %s5, %s595
        %p597 = pneg %p199
        %p598 = pneg %p196
        %p599 = scmp.lt.s32.totalorder %s34, 1
        %s600 = scalar_select %p599, %s34, 1
        %s601 = scalar_lea.vmem %s6, %s600
        %p602 = pneg %p225
        %p603 = pneg %p222
        %p604 = pneg %p246
        %p605 = pneg %p243
        %p606 = pneg %p267
        %p607 = pneg %p264
        %p608 = pneg %p288
        %p609 = pneg %p285
        %p610 = pneg %p309
        %p611 = pneg %p306
        %p612 = pneg %p330
        %p613 = pneg %p327
        %p614 = pneg %p351
        %p615 = pneg %p348
        %p616 = pneg %p372
        %p617 = pneg %p369
        %p618 = pneg %p393
        %p619 = pneg %p390
        %p620 = pneg %p414
        %p621 = pneg %p411
        %p622 = pneg %p442
        %p623 = pneg %p439
        %s624 = sand.u32 %s429, 1
        %s625 = scalar_lea.sflag [#allocation3], %s624
        %s626 = sand.u32 %s429, 1
        %s627 = smul.addr %s626, 8
        %s628 = scalar_lea.vmem [#allocation2], %s627
        %p629 = scmp.lt.s32.totalorder %s34, 1
        %s630 = scalar_select %p629, %s34, 1
        %p631 = scmp.lt.s32.totalorder %s35, 0
        %s632 = scalar_select %p631, %s35, 0
        %s633 = sadd.s32 %s632, %s630
        %s634 = smul.addr %s633, 4
        %s635 = scalar_lea.vmem %s0, %s634
        %p636 = scmp.lt.s32.totalorder %s34, 1
        %s637 = scalar_select %p636, %s34, 1
        %p638 = scmp.lt.s32.totalorder %s35, 0
        %s639 = scalar_select %p638, %s35, 0
        %s640 = sadd.s32 %s639, %s637
        %s641 = smul.addr %s640, 4
        %s642 = scalar_lea.vmem %s1, %s641
        %p643 = scmp.lt.s32.totalorder %s34, 1
        %s644 = scalar_select %p643, %s34, 1
        %p645 = scmp.lt.s32.totalorder %s35, 0
        %s646 = scalar_select %p645, %s35, 0
        %s647 = sadd.s32 %s646, %s644
        %s648 = smul.addr %s647, 4
        %s649 = scalar_lea.vmem %s2, %s648
        %p650 = scmp.lt.s32.totalorder %s34, 1
        %s651 = scalar_select %p650, %s34, 1
        %s652 = smul.addr %s651, 4
        %s653 = smul.addr %s652, 4
        %s654 = scalar_lea.vmem %s3, %s653
        %p655 = scmp.lt.s32.totalorder %s34, 1
        %s656 = scalar_select %p655, %s34, 1
        %s657 = smul.addr %s656, 4
        %s658 = smul.addr %s657, 4
        %s659 = scalar_lea.vmem %s4, %s658
        %p660 = scmp.lt.s32.totalorder %s34, 1
        %s661 = scalar_select %p660, %s34, 1
        %s662 = scalar_lea.vmem %s5, %s661
        %p663 = scmp.lt.s32.totalorder %s34, 1
        %s664 = scalar_select %p663, %s34, 1
        %s665 = scalar_lea.vmem %s6, %s664
        %v667 = vld [vmem:[%s635] sm:$0xf]
        %v668 = vunpack.c.l.bf16 %v667
        %v669 = vld [vmem:[%s7] sm:$0xff]
        %v670 = vld [vmem:[%s7 + $0x8] sm:$0xff]
        %v671 = vld [vmem:[%s7 + $0x10] sm:$0xff]
        %v672 = vld [vmem:[%s7 + $0x18] sm:$0xff]
        %v673 = vld [vmem:[%s642] sm:$0xf]
        %v674 = vld [vmem:[%s654] sm:$0xf]
        %v675 = vld [vmem:[%s654 + $0x4] sm:$0xf]
        %v676 = vld [vmem:[%s654 + $0x8] sm:$0xf]
        %v677 = vld [vmem:[%s654 + $0xc] sm:$0xf]
        %v678 = vld [vmem:[%s662] sm:$0x1]
        %v679 = vunpack.c.l.bf16 %v673
        %vm680 = vcmp.gt.f32.partialorder %v679, 0.0
        %v681 = vadd.f32 %v679, 1.0
        %v682 = vmin.f32 %v679, 0.0
        %v683 = vmul.f32 %v682, 1.442695
        %v684 = vpow.pop %v683
        %v685 = vsel %vm680, %v681, %v684
        %v686 = vpack.c.bf16 %v685, %v685
        %v691 = vunpack.c.l.b16 %v674
        %v692 = vunpack.c.l.b16 %v675
        %v693 = vunpack.c.l.b16 %v676
        %v694 = vunpack.c.l.b16 %v677
        %v695 = vpack.c.b16 %v692, %v691
        %v696 = vpack.c.b16 %v694, %v693
        %vm699 = vcmask 261120
        %v701 = vsel %vm699, %v686, 0
        %703 = vmatpush.bf16.msra.mxu0 0
        %704 = vmatpush.bf16.msra.mxu0 0
        %705 = vmatpush.bf16.msra.mxu0 0
        %706 = vmatpush.bf16.msra.mxu0 0
        %707 = vmatpush.bf16.msra.mxu0 0
        %708 = vmatpush.bf16.msra.mxu0 0
        %709 = vmatpush.bf16.msra.mxu0 %v696
        %710 = vmatpush.bf16.msra.mxu0 %v695
        %711 = vmatmul.bf16.gmra.mxu0 %v701
        %v712 = vpop.f32.mrf.mxu0
        %v713 = vadd.f32 0.0, %v712
        %v714 = vpop.f32.mrf.mxu0
        %715 = vdwg.mxu0
        %v717 = vperm.slane %v678, 0
        %v719 = vmul.f32 %v685, %v717
        %v721 = vsel %vm699, %v719, 0
        %723 = vmatpush.msra.mxu0 0.0
        %724 = vmatpush.msra.mxu0 0.0
        %725 = vmatpush.msra.mxu0 0.0
        %726 = vmatpush.msra.mxu0 0.0
        %727 = vmatpush.msra.mxu0 0.0
        %728 = vmatpush.msra.mxu0 0.0
        %729 = vmatpush.msra.mxu0 0.0
        %730 = vmatpush.msra.mxu0 0.0
        %731 = vmatpush.msra.mxu0 0.0
        %732 = vmatpush.msra.mxu0 0.0
        %733 = vmatpush.msra.mxu0 0.0
        %734 = vmatpush.msra.mxu0 0.0
        %735 = vmatpush.msra.mxu0 %v672
        %736 = vmatpush.msra.mxu0 %v671
        %737 = vmatpush.msra.mxu0 %v670
        %738 = vmatpush.msra.mxu0 %v669
        %739 = vmatmul.f32.gmra.mxu0 %v721
        %v740 = vpop.f32.mrf.mxu0
        %v741 = vadd.f32 1e-06, %v740
        %742 = vdwg.mxu0
        %v743 = vrcp.pop %v741
        %v744 = vmul.f32 %v741, %v743
        %v745 = vsub.f32 1.0, %v744
        %v746 = vmul.f32 %v743, %v745
        %v747 = vadd.f32 %v743, %v746
        %vm748 = vweird.f32 %v741
        %vm749 = vweird.f32 %v743
        %vm750 = vmor %vm748, %vm749
        %v751 = vsel %vm750, %v743, %v747
        %v752 = vand.u32 2147483647, %v741
        %vm753 = vcmp.eq.f32.partialorder %v752, 8.507059e+37
        %v754 = vand.u32 %v741, 2147483648
        %v755 = vor.u32 1.1754944e-38, %v754
        %v756 = vsel %vm753, %v755, %v751
        %v757 = vmul.f32 %v713, %v756
        %v758 = vpack.c.bf16 %v757, %v757
        %v759 = vld [vmem:[%s8] sm:$0xf]
        %v760 = vld [vmem:[%s8 + $0x4] sm:$0xf]
        %v761 = vld [vmem:[%s8 + $0x8] sm:$0xf]
        %v762 = vld [vmem:[%s8 + $0xc] sm:$0xf]
        %v767 = vunpack.c.l.b16 %v759
        %v768 = vunpack.c.l.b16 %v760
        %v769 = vunpack.c.l.b16 %v761
        %v770 = vunpack.c.l.b16 %v762
        %v771 = vpack.c.b16 %v768, %v767
        %v772 = vpack.c.b16 %v770, %v769
        %v776 = vsel %vm699, %v758, 0
        %778 = vmatpush.bf16.msra.mxu0 0
        %779 = vmatpush.bf16.msra.mxu0 0
        %780 = vmatpush.bf16.msra.mxu0 0
        %781 = vmatpush.bf16.msra.mxu0 0
        %782 = vmatpush.bf16.msra.mxu0 0
        %783 = vmatpush.bf16.msra.mxu0 0
        %784 = vmatpush.bf16.msra.mxu0 %v772
        %785 = vmatpush.bf16.msra.mxu0 %v771
        %786 = vmatmul.bf16.gmra.mxu0 %v776
        %v787 = vpop.f32.mrf.mxu0
        %v788 = vadd.f32 0.0, %v787
        %v789 = vpop.f32.mrf.mxu0
        %790 = vdwg.mxu0
        %v791 = vsel %vm699, %v788, 0.0
        %792 = vadd.xlane.f32.xlu0 %v791
        %v793 = vpop.xlane.xlu0 %792
        %v794 = vrcp.pop 32.0
        %v795 = vmul.f32 32.0, %v794
        %v796 = vsub.f32 1.0, %v795
        %v797 = vmul.f32 %v794, %v796
        %v798 = vadd.f32 %v794, %v797
        %vm799 = vweird.f32 %v794
        %v800 = vsel %vm799, %v794, %v798
        %v801 = vmul.f32 %v793, %v800
        %v802 = vsub.f32 %v788, %v801
        %v803 = vmul.f32 %v802, %v802
        %v804 = vsel %vm699, %v803, 0.0
        %805 = vadd.xlane.f32.xlu0 %v804
        %v806 = vpop.xlane.xlu0 %805
        %v807 = vmul.f32 %v806, %v800
        %v808 = vadd.f32 %v807, 1e-05
        %v809 = vrsqrt.pop %v808
        %v810 = vmul.f32 %v809, %v808
        %v811 = vmul.f32 %v810, %v809
        %v812 = vmul.f32 0.5, %v811
        %v813 = vsub.f32 1.5, %v812
        %v814 = vmul.f32 %v809, %v813
        %vm815 = vweird.f32 %v808
        %vm816 = vweird.f32 %v809
        %vm817 = vmor %vm815, %vm816
        %v818 = vsel %vm817, %v809, %v814
        %v819 = vmul.f32 %v802, %v818
        %v820 = vld [vmem:[%s9] sm:$0x1]
        %v822 = vperm.slane %v820, 0
        %v824 = vmul.f32 %v819, %v822
        %v825 = vld [vmem:[%s10] sm:$0x1]
        %v827 = vperm.slane %v825, 0
        %v829 = vadd.f32 %v824, %v827
        %v830 = vld [vmem:[%s11] sm:$0xf]
        %v831 = vld [vmem:[%s11 + $0x4] sm:$0xf]
        %v832 = vld [vmem:[%s11 + $0x8] sm:$0xf]
        %v833 = vld [vmem:[%s11 + $0xc] sm:$0xf]
        %v834 = vpack.c.bf16 %v829, %v829
        %v835 = vld [vmem:[%s12] sm:$0xf]
        %v836 = vld [vmem:[%s12 + $0x4] sm:$0xf]
        %v837 = vld [vmem:[%s12 + $0x8] sm:$0xf]
        %v838 = vld [vmem:[%s12 + $0xc] sm:$0xf]
        %v843 = vunpack.c.l.b16 %v835
        %v844 = vunpack.c.l.b16 %v836
        %v845 = vunpack.c.l.b16 %v837
        %v846 = vunpack.c.l.b16 %v838
        %v847 = vpack.c.b16 %v844, %v843
        %v848 = vpack.c.b16 %v846, %v845
        %v852 = vsel %vm699, %v834, 0
        %854 = vmatpush.bf16.msra.mxu0 0
        %855 = vmatpush.bf16.msra.mxu0 0
        %856 = vmatpush.bf16.msra.mxu0 0
        %857 = vmatpush.bf16.msra.mxu0 0
        %858 = vmatpush.bf16.msra.mxu0 0
        %859 = vmatpush.bf16.msra.mxu0 0
        %860 = vmatpush.bf16.msra.mxu0 %v848
        %861 = vmatpush.bf16.msra.mxu0 %v847
        %862 = vmatmul.bf16.gmra.mxu0 %v852
        %v863 = vpop.f32.mrf.mxu0
        %v864 = vadd.f32 0.0, %v863
        %v865 = vpop.f32.mrf.mxu0
        %866 = vdwg.mxu0
        %v871 = vunpack.c.l.b16 %v830
        %v872 = vunpack.c.l.b16 %v831
        %v873 = vunpack.c.l.b16 %v832
        %v874 = vunpack.c.l.b16 %v833
        %v875 = vpack.c.b16 %v872, %v871
        %v876 = vpack.c.b16 %v874, %v873
        %v880 = vsel %vm699, %v667, 0
        %882 = vmatpush.bf16.msra.mxu0 0
        %883 = vmatpush.bf16.msra.mxu0 0
        %884 = vmatpush.bf16.msra.mxu0 0
        %885 = vmatpush.bf16.msra.mxu0 0
        %886 = vmatpush.bf16.msra.mxu0 0
        %887 = vmatpush.bf16.msra.mxu0 0
        %888 = vmatpush.bf16.msra.mxu0 %v876
        %889 = vmatpush.bf16.msra.mxu0 %v875
        %890 = vmatmul.bf16.gmra.mxu0 %v880
        %v891 = vpop.f32.mrf.mxu0
        %v892 = vadd.f32 %v864, %v891
        %v893 = vpop.f32.mrf.mxu0
        %894 = vdwg.mxu0
        %v895 = vmax.f32 %v892, 0.0
        %v896 = vpack.c.bf16 %v895, %v895
        %v897 = vld [vmem:[%s13] sm:$0xf]
        %v898 = vld [vmem:[%s13 + $0x4] sm:$0xf]
        %v899 = vld [vmem:[%s13 + $0x8] sm:$0xf]
        %v900 = vld [vmem:[%s13 + $0xc] sm:$0xf]
        %v901 = vld [vmem:[%s13 + $0x10] sm:$0xf]
        %v902 = vld [vmem:[%s13 + $0x14] sm:$0xf]
        %v903 = vld [vmem:[%s13 + $0x18] sm:$0xf]
        %v904 = vld [vmem:[%s13 + $0x1c] sm:$0xf]
        %v913 = vunpack.c.l.b16 %v897
        %v914 = vunpack.c.l.b16 %v898
        %v915 = vunpack.c.l.b16 %v899
        %v916 = vunpack.c.l.b16 %v900
        %v917 = vunpack.c.l.b16 %v901
        %v918 = vunpack.c.l.b16 %v902
        %v919 = vunpack.c.l.b16 %v903
        %v920 = vunpack.c.l.b16 %v904
        %v921 = vpack.c.b16 %v914, %v913
        %v922 = vpack.c.b16 %v916, %v915
        %v923 = vpack.c.b16 %v918, %v917
        %v924 = vpack.c.b16 %v920, %v919
        %vm929 = vcmask 523264
        %v931 = vsel %vm929, %v896, 0
        %933 = vmatpush.bf16.msra.mxu0 0
        %934 = vmatpush.bf16.msra.mxu0 0
        %935 = vmatpush.bf16.msra.mxu0 0
        %936 = vmatpush.bf16.msra.mxu0 0
        %937 = vmatpush.bf16.msra.mxu0 %v924
        %938 = vmatpush.bf16.msra.mxu0 %v923
        %939 = vmatpush.bf16.msra.mxu0 %v922
        %940 = vmatpush.bf16.msra.mxu0 %v921
        %941 = vmatmul.bf16.gmra.mxu0 %v931
        %v942 = vpop.f32.mrf.mxu0
        %v943 = vadd.f32 0.0, %v942
        %v944 = vpop.f32.mrf.mxu0
        %945 = vdwg.mxu0
        %v946 = vsel %vm699, %v943, 0.0
        %947 = vadd.xlane.f32.xlu0 %v946
        %v948 = vpop.xlane.xlu0 %947
        %v949 = vmul.f32 %v948, %v800
        %v950 = vsub.f32 %v943, %v949
        %v951 = vmul.f32 %v950, %v950
        %v952 = vsel %vm699, %v951, 0.0
        %953 = vadd.xlane.f32.xlu0 %v952
        %v954 = vpop.xlane.xlu0 %953
        %v955 = vmul.f32 %v954, %v800
        %v956 = vadd.f32 %v955, 1e-05
        %v957 = vrsqrt.pop %v956
        %v958 = vmul.f32 %v957, %v956
        %v959 = vmul.f32 %v958, %v957
        %v960 = vmul.f32 0.5, %v959
        %v961 = vsub.f32 1.5, %v960
        %v962 = vmul.f32 %v957, %v961
        %vm963 = vweird.f32 %v956
        %vm964 = vweird.f32 %v957
        %vm965 = vmor %vm963, %vm964
        %v966 = vsel %vm965, %v957, %v962
        %v967 = vmul.f32 %v950, %v966
        %v968 = vld [vmem:[%s14] sm:$0x1]
        %v970 = vperm.slane %v968, 0
        %v972 = vmul.f32 %v967, %v970
        %v973 = vld [vmem:[%s15] sm:$0x1]
        %v975 = vperm.slane %v973, 0
        %v977 = vadd.f32 %v972, %v975
        %v978 = vld [vmem:[%s649] sm:$0xf]
        %v979 = vld [vmem:[%s659] sm:$0xf]
        %v980 = vld [vmem:[%s659 + $0x4] sm:$0xf]
        %v981 = vld [vmem:[%s659 + $0x8] sm:$0xf]
        %v982 = vld [vmem:[%s659 + $0xc] sm:$0xf]
        %v983 = vld [vmem:[%s665] sm:$0x1]
        %v984 = vunpack.c.l.bf16 %v978
        %vm985 = vcmp.gt.f32.partialorder %v984, 0.0
        %v986 = vadd.f32 %v984, 1.0
        %v987 = vmin.f32 %v984, 0.0
        %v988 = vmul.f32 %v987, 1.442695
        %v989 = vpow.pop %v988
        %v990 = vsel %vm985, %v986, %v989
        %v991 = vpack.c.bf16 %v990, %v990
        %v996 = vunpack.c.l.b16 %v979
        %v997 = vunpack.c.l.b16 %v980
        %v998 = vunpack.c.l.b16 %v981
        %v999 = vunpack.c.l.b16 %v982
        %v1000 = vpack.c.b16 %v997, %v996
        %v1001 = vpack.c.b16 %v999, %v998
        %v1005 = vsel %vm699, %v991, 0
        %1007 = vmatpush.bf16.msra.mxu0 0
        %1008 = vmatpush.bf16.msra.mxu0 0
        %1009 = vmatpush.bf16.msra.mxu0 0
        %1010 = vmatpush.bf16.msra.mxu0 0
        %1011 = vmatpush.bf16.msra.mxu0 0
        %1012 = vmatpush.bf16.msra.mxu0 0
        %1013 = vmatpush.bf16.msra.mxu0 %v1001
        %1014 = vmatpush.bf16.msra.mxu0 %v1000
        %1015 = vmatmul.bf16.gmra.mxu0 %v1005
        %v1016 = vpop.f32.mrf.mxu0
        %v1017 = vadd.f32 0.0, %v1016
        %v1018 = vpop.f32.mrf.mxu0
        %1019 = vdwg.mxu0
        %v1021 = vperm.slane %v983, 0
        %v1023 = vmul.f32 %v990, %v1021
        %v1025 = vsel %vm699, %v1023, 0
        %1027 = vmatpush.msra.mxu0 0.0
        %1028 = vmatpush.msra.mxu0 0.0
        %1029 = vmatpush.msra.mxu0 0.0
        %1030 = vmatpush.msra.mxu0 0.0
        %1031 = vmatpush.msra.mxu0 0.0
        %1032 = vmatpush.msra.mxu0 0.0
        %1033 = vmatpush.msra.mxu0 0.0
        %1034 = vmatpush.msra.mxu0 0.0
        %1035 = vmatpush.msra.mxu0 0.0
        %1036 = vmatpush.msra.mxu0 0.0
        %1037 = vmatpush.msra.mxu0 0.0
        %1038 = vmatpush.msra.mxu0 0.0
        %1039 = vmatpush.msra.mxu0 %v672
        %1040 = vmatpush.msra.mxu0 %v671
        %1041 = vmatpush.msra.mxu0 %v670
        %1042 = vmatpush.msra.mxu0 %v669
        %1043 = vmatmul.f32.gmra.mxu0 %v1025
        %v1044 = vpop.f32.mrf.mxu0
        %v1045 = vadd.f32 1e-06, %v1044
        %1046 = vdwg.mxu0
        %v1047 = vrcp.pop %v1045
        %v1048 = vmul.f32 %v1045, %v1047
        %v1049 = vsub.f32 1.0, %v1048
        %v1050 = vmul.f32 %v1047, %v1049
        %v1051 = vadd.f32 %v1047, %v1050
        %vm1052 = vweird.f32 %v1045
        %vm1053 = vweird.f32 %v1047
        %vm1054 = vmor %vm1052, %vm1053
        %v1055 = vsel %vm1054, %v1047, %v1051
        %v1056 = vand.u32 2147483647, %v1045
        %vm1057 = vcmp.eq.f32.partialorder %v1056, 8.507059e+37
        %v1058 = vand.u32 %v1045, 2147483648
        %v1059 = vor.u32 1.1754944e-38, %v1058
        %v1060 = vsel %vm1057, %v1059, %v1055
        %v1061 = vmul.f32 %v1017, %v1060
        %v1062 = vpack.c.bf16 %v1061, %v1061
        %v1064 = vsel %vm699, %v1062, 0
        %1066 = vmatpush.bf16.msra.mxu0 0
        %1067 = vmatpush.bf16.msra.mxu0 0
        %1068 = vmatpush.bf16.msra.mxu0 0
        %1069 = vmatpush.bf16.msra.mxu0 0
        %1070 = vmatpush.bf16.msra.mxu0 0
        %1071 = vmatpush.bf16.msra.mxu0 0
        %1072 = vmatpush.bf16.msra.mxu0 %v772
        %1073 = vmatpush.bf16.msra.mxu0 %v771
        %1074 = vmatmul.bf16.gmra.mxu0 %v1064
        %v1075 = vpop.f32.mrf.mxu0
        %v1076 = vadd.f32 0.0, %v1075
        %v1077 = vpop.f32.mrf.mxu0
        %1078 = vdwg.mxu0
        %v1079 = vsel %vm699, %v1076, 0.0
        %1080 = vadd.xlane.f32.xlu0 %v1079
        %v1081 = vpop.xlane.xlu0 %1080
        %v1082 = vmul.f32 %v1081, %v800
        %v1083 = vsub.f32 %v1076, %v1082
        %v1084 = vmul.f32 %v1083, %v1083
        %v1085 = vsel %vm699, %v1084, 0.0
        %1086 = vadd.xlane.f32.xlu0 %v1085
        %v1087 = vpop.xlane.xlu0 %1086
        %v1088 = vmul.f32 %v1087, %v800
        %v1089 = vadd.f32 %v1088, 1e-05
        %v1090 = vrsqrt.pop %v1089
        %v1091 = vmul.f32 %v1090, %v1089
        %v1092 = vmul.f32 %v1091, %v1090
        %v1093 = vmul.f32 0.5, %v1092
        %v1094 = vsub.f32 1.5, %v1093
        %v1095 = vmul.f32 %v1090, %v1094
        %vm1096 = vweird.f32 %v1089
        %vm1097 = vweird.f32 %v1090
        %vm1098 = vmor %vm1096, %vm1097
        %v1099 = vsel %vm1098, %v1090, %v1095
        %v1100 = vmul.f32 %v1083, %v1099
        %v1101 = vmul.f32 %v1100, %v822
        %v1102 = vadd.f32 %v1101, %v827
        %v1103 = vpack.c.bf16 %v1102, %v1102
        %v1105 = vsel %vm699, %v1103, 0
        %1107 = vmatpush.bf16.msra.mxu0 0
        %1108 = vmatpush.bf16.msra.mxu0 0
        %1109 = vmatpush.bf16.msra.mxu0 0
        %1110 = vmatpush.bf16.msra.mxu0 0
        %1111 = vmatpush.bf16.msra.mxu0 0
        %1112 = vmatpush.bf16.msra.mxu0 0
        %1113 = vmatpush.bf16.msra.mxu0 %v848
        %1114 = vmatpush.bf16.msra.mxu0 %v847
        %1115 = vmatmul.bf16.gmra.mxu0 %v1105
        %v1116 = vpop.f32.mrf.mxu0
        %v1117 = vadd.f32 0.0, %v1116
        %v1118 = vpop.f32.mrf.mxu0
        %1119 = vdwg.mxu0
        %1120 = vmatpush.bf16.msra.mxu0 0
        %1121 = vmatpush.bf16.msra.mxu0 0
        %1122 = vmatpush.bf16.msra.mxu0 0
        %1123 = vmatpush.bf16.msra.mxu0 0
        %1124 = vmatpush.bf16.msra.mxu0 0
        %1125 = vmatpush.bf16.msra.mxu0 0
        %1126 = vmatpush.bf16.msra.mxu0 %v876
        %1127 = vmatpush.bf16.msra.mxu0 %v875
        %1128 = vmatmul.bf16.gmra.mxu0 %v880
        %v1129 = vpop.f32.mrf.mxu0
        %v1130 = vadd.f32 %v1117, %v1129
        %v1131 = vpop.f32.mrf.mxu0
        %1132 = vdwg.mxu0
        %v1133 = vmax.f32 %v1130, 0.0
        %v1134 = vpack.c.bf16 %v1133, %v1133
        %v1136 = vsel %vm929, %v1134, 0
        %1138 = vmatpush.bf16.msra.mxu0 0
        %1139 = vmatpush.bf16.msra.mxu0 0
        %1140 = vmatpush.bf16.msra.mxu0 0
        %1141 = vmatpush.bf16.msra.mxu0 0
        %1142 = vmatpush.bf16.msra.mxu0 %v924
        %1143 = vmatpush.bf16.msra.mxu0 %v923
        %1144 = vmatpush.bf16.msra.mxu0 %v922
        %1145 = vmatpush.bf16.msra.mxu0 %v921
        %1146 = vmatmul.bf16.gmra.mxu0 %v1136
        %v1147 = vpop.f32.mrf.mxu0
        %v1148 = vadd.f32 0.0, %v1147
        %v1149 = vpop.f32.mrf.mxu0
        %1150 = vdwg.mxu0
        %v1151 = vsel %vm699, %v1148, 0.0
        %1152 = vadd.xlane.f32.xlu0 %v1151
        %v1153 = vpop.xlane.xlu0 %1152
        %v1154 = vmul.f32 %v1153, %v800
        %v1155 = vsub.f32 %v1148, %v1154
        %v1156 = vmul.f32 %v1155, %v1155
        %v1157 = vsel %vm699, %v1156, 0.0
        %1158 = vadd.xlane.f32.xlu0 %v1157
        %v1159 = vpop.xlane.xlu0 %1158
        %v1160 = vmul.f32 %v1159, %v800
        %v1161 = vadd.f32 %v1160, 1e-05
        %v1162 = vrsqrt.pop %v1161
        %v1163 = vmul.f32 %v1162, %v1161
        %v1164 = vmul.f32 %v1163, %v1162
        %v1165 = vmul.f32 0.5, %v1164
        %v1166 = vsub.f32 1.5, %v1165
        %v1167 = vmul.f32 %v1162, %v1166
        %vm1168 = vweird.f32 %v1161
        %vm1169 = vweird.f32 %v1162
        %vm1170 = vmor %vm1168, %vm1169
        %v1171 = vsel %vm1170, %v1162, %v1167
        %v1172 = vmul.f32 %v1155, %v1171
        %v1173 = vmul.f32 %v1172, %v970
        %v1174 = vadd.f32 %v1173, %v975
        %v1175 = vadd.f32 %v977, %v1174
        %v1176 = vmul.f32 %v1175, 0.5
        %v1177 = vadd.f32 %v668, %v1176
        %1178 = vst.msk [vmem:[%s628] sm:$0xff] %vm699, %v1177
        %s1179 = sand.u32 %s429, 1
        %s1180 = scalar_lea.sflag [#allocation3], %s1179
        %s1181 = sand.u32 %s429, 1
        %s1182 = smul.addr %s1181, 8
        %s1183 = scalar_lea.vmem [#allocation2], %s1182
        // Predicated region
        $region85: #{loftr_encoder_layer.13} parent=83 // pred_check
          %p1184 = pneg %p439
        $region86: #{loftr_encoder_layer.13} parent=83 // pred_check_branch
          %1186 = sbr.rel (%p1184) target = $region88
        $region87: #{loftr_encoder_layer.13} parent=83 // pred_region
          %1188 = vsyncadd %s1180, 0
          %s1189 = sadd.s32 %s35, %s34
          %s1190 = smul.addr %s1189, 8
          %s1191 = scalar_lea.hbm %s16, %s1190
          %s1193 = sshll.u32 %s1183, 4
          %s1194 = int_to_ptr.vmem [resolvable:$true] %s1193
          %s1195 = sshll.u32 %s1191, 4
          %s1196 = int_to_ptr.hbm [resolvable:$true] %s1195
          %1198 = dma.vmem_to_hbm [thread:$0]  %s1194, 128, %s1196, %s1180
        $region88: #{loftr_encoder_layer.13} parent=83 // pred_fallthru
          _
      $region84: #{loftr_encoder_layer.13} parent=5 // pred_fallthru
        _
      %p1199 = scmp.le.s32.totalorder 2, %s25
      // Predicated region
      $region89: #{loftr_encoder_layer.13} parent=5 // pred_check
        %p1200 = pneg %p1199
      $region90: #{loftr_encoder_layer.13} parent=5 // pred_check_branch
        %1202 = sbr.rel (%p1200) target = $region92
      $region91: #{loftr_encoder_layer.13} parent=5 // pred_region
        %s1203 = ssub.s32 %s25, 2
        // Predicated region
        $region93: #{loftr_encoder_layer.13} parent=91 // pred_check
          %p1204 = pneg %p445
        $region94: #{loftr_encoder_layer.13} parent=91 // pred_check_branch
          %1206 = sbr.rel (%p1204) target = $region96
        $region95: #{loftr_encoder_layer.13} parent=91 // pred_region
          %s1207 = sand.u32 %s430, 1
          %s1208 = scalar_lea.sflag [#allocation3], %s1207
          %s1209 = sand.u32 %s430, 1
          %s1210 = smul.addr %s1209, 8
          %s1211 = scalar_lea.vmem [#allocation2], %s1210
          %1213 = dma.done %s1208, 128
        $region96: #{loftr_encoder_layer.13} parent=91 // pred_fallthru
          _
      $region92: #{loftr_encoder_layer.13} parent=5 // pred_fallthru
        _
    $region6: #{loftr_encoder_layer.13} parent=1 // loop_footer
      %s29 = sadd.s32 1, %s25
    $region7: #{loftr_encoder_layer.13} parent=1 // loop_footer_branch
      %24 = sbr.rel target = $region3
    $region8: #{loftr_encoder_layer.13} parent=1 // loop_exit
      _
    %1214 = vsyncpa [#allocation3], 1
    %s1215 = scalar_lea.sflag [#allocation3], 1
    %1216 = vsyncpa %s1215, 1

</llo_original>
